<compile_context>
chip_gen: v5e
topology: v5e:2x2
jax: 0.10.0
libtpu: 0.0.40
codegen_flags: <defaults>
</compile_context>

<pallas_src>
import jax
import jax.numpy as jnp
import numpy as np
from jax.experimental import pallas as pl
from jax.experimental.pallas import tpu as pltpu

TB_MAX = 64  # max batch-tile rows per grid step (raise with more VMEM budget)


def _round_up(x, m):
    return ((x + m - 1) // m) * m


def _batch_tiling(b, tb_max=TB_MAX):
    """Pick (batch_tile, padded_batch).  Tiles are multiples of 8; the grid is
    forced to have >= 2 steps so both v7x TensorCores get work even for tiny
    batches (padded rows are discarded and cost microseconds)."""
    tb = min(tb_max, _round_up(max(b, 1), 8))
    bp = _round_up(b, tb)
    if bp // tb < 2 and tb > 8:
        tb = max(8, _round_up(tb // 2, 8))
        bp = _round_up(b, tb)
    if bp // tb < 2:
        bp = 2 * tb
    return tb, bp


# ------------------------------- Pallas kernel ------------------------------ #

def _cnn_fused_kernel(x_ref, wt1_ref, b1_ref, wt2_ref, b2_ref,
                      w3_ref, b3_ref, w4_ref, b4_ref, w5_ref, b5_ref, o_ref):
    """Fused conv1+ReLU+pool -> conv2+ReLU+pool -> fc1+ReLU+fc2+ReLU+fc3.

    x_ref:  (2, tb*12, 160) bf16  conv1 LHS, rows grouped by output-row parity
                                  s, then (b, q); lanes = tap*32 + input col
    wt1_ref:(160, 768) bf16       conv1 Toeplitz, N = p*32 + cout with the 24
                                  output columns reordered (even x | odd x)
    b1_ref: (1, 768) f32
    wt2_ref:(5, 384, 256) bf16    conv2 width/cin Toeplitz per height tap,
                                  N = p*32 + cout reordered (even w | odd w)
    b2_ref: (1, 256) f32
    w3..w5: fc1 (512,128), fc2 (128,128 pad), fc3 (128,128 pad)   bf16
    b3..b5: (1, 128) f32
    o_ref:  (tb, 128) f32         logits; columns 10..127 are padding
    """
    tb = o_ref.shape[0]
    npar = 12 * tb

    # -------- conv1 (1->32, k5) + bias + ReLU + 2x2 maxpool ---------------- #
    xc = x_ref[...].reshape(2 * npar, 160)                  # parity-major rows
    acc = jnp.dot(xc, wt1_ref[...], preferred_element_type=jnp.float32)
    a = jnp.maximum(acc[:npar], acc[npar:])                 # height pool (y=2q vs 2q+1)
    a = jnp.maximum(a + b1_ref[...], 0.0)                   # bias + ReLU (commute w/ max)
    a = jnp.maximum(a[:, :384], a[:, 384:])                 # width pool (lane halves)
    a1 = a.reshape(tb, 12, 384).astype(jnp.bfloat16)        # lane-dense NHWC (q, w*32+c)

    # -------- conv2 (32->32, k5) + bias + ReLU + 2x2 maxpool --------------- #
    acc = jnp.zeros((tb * 8, 256), jnp.float32)
    for di in range(5):                                      # 5 K=384, N=256 MXU dots
        lhs = a1[:, di:di + 8, :].reshape(tb * 8, 384)
        acc = acc + jnp.dot(lhs, wt2_ref[di],
                            preferred_element_type=jnp.float32)
    acc = jnp.maximum(acc + b2_ref[...], 0.0)                # bias + ReLU
    acc = jnp.maximum(acc[:, :128], acc[:, 128:])            # width pool (lane halves)
    acc = acc.reshape(tb, 4, 2, 128)
    acc = jnp.maximum(acc[:, :, 0, :], acc[:, :, 1, :])      # height pool
    h2 = acc.reshape(tb, 512).astype(jnp.bfloat16)           # NHWC flatten (h,w,c)

    # -------- fc1 + ReLU + fc2 + ReLU + fc3 (N padded to 128) -------------- #
    h = jnp.dot(h2, w3_ref[...], preferred_element_type=jnp.float32)
    h = jnp.maximum(h + b3_ref[...], 0.0)
    h = jnp.dot(h.astype(jnp.bfloat16), w4_ref[...],
                preferred_element_type=jnp.float32)
    h = jnp.maximum(h + b4_ref[...], 0.0)
    h = jnp.dot(h.astype(jnp.bfloat16), w5_ref[...],
                preferred_element_type=jnp.float32)
    o_ref[...] = (h + b5_ref[...]).astype(o_ref.dtype)


# ----------------------- Parameter preprocessing (host) --------------------- #

def prepare_params(params):
    """One-time weight layout prep (pure layout transforms, done once)."""
    c1w, c1b, c2w, c2b, f1w, f1b, f2w, f2b, f3w, f3b = [
        np.asarray(p, np.float32) for p in params]

    # conv1: single K=160 Toeplitz.  K = di*32 + win (win 0..27 real, 28..31
    # zero pad).  N columns reordered (all even x, then all odd x) so the 2x2
    # width pool is a max of the two 384-lane halves inside the kernel.
    T1 = np.zeros((5, 32, 24, 32), np.float32)              # (di, win, x, cout)
    for di in range(5):
        for dj in range(5):
            for x in range(24):
                T1[di, x + dj, x, :] = c1w[:, 0, di, dj]
    T1 = np.concatenate([T1[:, :, 0::2, :], T1[:, :, 1::2, :]], axis=2)
    wt1 = T1.reshape(160, 768)
    b1 = np.tile(c1b, 24).reshape(1, 768)

    # conv2: per height tap di, a (384, 256) width/cin Toeplitz.
    # K = w_in*32 + cin; N reordered (even w_out | odd w_out) as above.
    T2 = np.zeros((5, 12, 32, 8, 32), np.float32)           # (di, w_in, cin, wo, cout)
    for di in range(5):
        for dj in range(5):
            for wo in range(8):
                T2[di, wo + dj, :, wo, :] = c2w[:, :, di, dj].T
    T2 = np.concatenate([T2[:, :, :, 0::2, :], T2[:, :, :, 1::2, :]], axis=3)
    wt2 = T2.reshape(5, 384, 256)
    b2 = np.tile(c2b, 8).reshape(1, 256)

    # fc1 permuted to consume NHWC-flattened activations (j = h*128 + w*32 + c)
    # matching PyTorch's NCHW flatten (c*16 + h*4 + w).
    j = np.arange(512)
    perm = (j % 32) * 16 + (j // 128) * 4 + ((j // 32) % 4)
    fc1_w = f1w[:, perm].T                                   # (512, 128)
    fc1_b = f1b.reshape(1, 128)
    # fc2/fc3 zero-padded to 128 output lanes (lane-dense stores).
    fc2_w = np.zeros((128, 128), np.float32); fc2_w[:, :32] = f2w.T
    fc2_b = np.zeros((1, 128), np.float32);   fc2_b[0, :32] = f2b
    fc3_w = np.zeros((128, 128), np.float32); fc3_w[:32, :10] = f3w.T
    fc3_b = np.zeros((1, 128), np.float32);   fc3_b[0, :10] = f3b

    bf16 = jnp.bfloat16
    return dict(
        wt1=jnp.asarray(wt1).astype(bf16), b1=jnp.asarray(b1),
        wt2=jnp.asarray(wt2).astype(bf16), b2=jnp.asarray(b2),
        fc1_w=jnp.asarray(fc1_w).astype(bf16), fc1_b=jnp.asarray(fc1_b),
        fc2_w=jnp.asarray(fc2_w).astype(bf16), fc2_b=jnp.asarray(fc2_b),
        fc3_w=jnp.asarray(fc3_w).astype(bf16), fc3_b=jnp.asarray(fc3_b),
    )


# ------------------------------ Forward pass -------------------------------- #

def _build_conv1_lhs(x2, bp):
    """x2: (bp, 28, 32) bf16 (width zero-padded 28->32).  Returns the
    tap-folded conv1 LHS of shape (2, bp*12, 160):
        out[s, b*12 + q, di*32 + win] = x2[b, 2q + s + di, win]
    (pure layout gather, done in XLA so the kernel's conv1 is a single dot)."""
    rows = []
    for s in range(2):
        taps = [x2[:, s + di: s + di + 23: 2, :] for di in range(5)]
        rows.append(jnp.concatenate(taps, axis=-1).reshape(bp * 12, 160))
    return jnp.stack(rows, axis=0)


def cnn_forward(x, p, *, tb_max=TB_MAX):
    """x: (B, 1, 28, 28) f32 NCHW (as in PyTorch).  Returns (B, 10) f32."""
    b = x.shape[0]
    tb, bp = _batch_tiling(b, tb_max)

    x2 = x.reshape(b, 28, 28).astype(jnp.bfloat16)           # Cin == 1, bf16 input
    x2 = jnp.pad(x2, ((0, bp - b), (0, 0), (0, 4)))          # batch pad + width 28->32
    xcat = _build_conv1_lhs(x2, bp)                          # (2, bp*12, 160) bf16

    out = pl.pallas_call(
        _cnn_fused_kernel,
        out_shape=jax.ShapeDtypeStruct((bp, 128), jnp.float32),
        grid=(bp // tb,),
        in_specs=[
            pl.BlockSpec((2, tb * 12, 160), lambda i: (0, i, 0)),   # conv1 LHS
            pl.BlockSpec((160, 768), lambda i: (0, 0)),             # conv1 W
            pl.BlockSpec((1, 768), lambda i: (0, 0)),               # conv1 b
            pl.BlockSpec((5, 384, 256), lambda i: (0, 0, 0)),       # conv2 W
            pl.BlockSpec((1, 256), lambda i: (0, 0)),               # conv2 b
            pl.BlockSpec((512, 128), lambda i: (0, 0)),             # fc1 W
            pl.BlockSpec((1, 128), lambda i: (0, 0)),               # fc1 b
            pl.BlockSpec((128, 128), lambda i: (0, 0)),             # fc2 W (padded)
            pl.BlockSpec((1, 128), lambda i: (0, 0)),               # fc2 b (padded)
            pl.BlockSpec((128, 128), lambda i: (0, 0)),             # fc3 W (padded)
            pl.BlockSpec((1, 128), lambda i: (0, 0)),               # fc3 b (padded)
        ],
        out_specs=pl.BlockSpec((tb, 128), lambda i: (i, 0)),
        compiler_params=pltpu.CompilerParams(
            dimension_semantics=("parallel",),
            vmem_limit_bytes=48 * 1024 * 1024),
    )(xcat, p["wt1"], p["b1"], p["wt2"], p["b2"],
      p["fc1_w"], p["fc1_b"], p["fc2_w"], p["fc2_b"], p["fc3_w"], p["fc3_b"])
    return out[:b, :10]


# --------------------------- Pure-JAX reference ----------------------------- #

def cnn_reference(x, params):
    (c1w, c1b, c2w, c2b, f1w, f1b, f2w, f2b, f3w, f3b) = params

    def conv(x, w, b):
        y = jax.lax.conv_general_dilated(
            x, w, window_strides=(1, 1), padding="VALID",
            dimension_numbers=("NCHW", "OIHW", "NCHW"))
        return y + b.reshape(1, -1, 1, 1)

    def pool(x):
        return jax.lax.reduce_window(
            x, -jnp.inf, jax.lax.max,
            window_dimensions=(1, 1, 2, 2), window_strides=(1, 1, 2, 2),
            padding="VALID")

    h = jax.nn.relu(conv(x, c1w, c1b))
    h = pool(h)
    h = jax.nn.relu(conv(h, c2w, c2b))
    h = pool(h)
    h = h.reshape(h.shape[0], -1)
    h = jax.nn.relu(h @ f1w.T + f1b)
    h = jax.nn.relu(h @ f2w.T + f2b)
    return h @ f3w.T + f3b


# --------------------------------- Main ------------------------------------- #

if __name__ == "__main__":
    key = jax.random.PRNGKey(0)
    ks = jax.random.split(key, 11)

    scale = 0.05
    conv1_w = scale * jax.random.normal(ks[0], (32, 1, 5, 5), jnp.float32)
    conv1_b = scale * jax.random.normal(ks[1], (32,), jnp.float32)
    conv2_w = scale * jax.random.normal(ks[2], (32, 32, 5, 5), jnp.float32)
    conv2_b = scale * jax.random.normal(ks[3], (32,), jnp.float32)
    fc1_w = scale * jax.random.normal(ks[4], (128, 512), jnp.float32)
    fc1_b = scale * jax.random.normal(ks[5], (128,), jnp.float32)
    fc2_w = scale * jax.random.normal(ks[6], (32, 128), jnp.float32)
    fc2_b = scale * jax.random.normal(ks[7], (32,), jnp.float32)
    fc3_w = scale * jax.random.normal(ks[8], (10, 32), jnp.float32)
    fc3_b = scale * jax.random.normal(ks[9], (10,), jnp.float32)
    params = (conv1_w, conv1_b, conv2_w, conv2_b,
              fc1_w, fc1_b, fc2_w, fc2_b, fc3_w, fc3_b)
    prepared = prepare_params(params)

    # Input: batch=2, NCHW, 28x28 (fc1 requires 28x28 input).
    x = jax.random.normal(ks[10], (2, 1, 28, 28), jnp.float32)

    out = jax.block_until_ready(jax.jit(cnn_forward)(x, prepared))
    ref = jax.block_until_ready(cnn_reference(x, params))

    assert out.shape == (2, 10), out.shape
    np.testing.assert_allclose(np.asarray(out), np.asarray(ref),
                               rtol=2e-2, atol=2e-2)

    print("KERNEL_OK")
</pallas_src>

<mosaic_0001>
module attributes {stable_mosaic.version = 11 : i64} {
  func.func @_cnn_fused_kernel(%arg0: i32, %arg1: memref<2x96x160xbf16, #tpu.memory_space<vmem>>, %arg2: memref<160x768xbf16, #tpu.memory_space<vmem>>, %arg3: memref<1x768xf32, #tpu.memory_space<vmem>>, %arg4: memref<5x384x256xbf16, #tpu.memory_space<vmem>>, %arg5: memref<1x256xf32, #tpu.memory_space<vmem>>, %arg6: memref<512x128xbf16, #tpu.memory_space<vmem>>, %arg7: memref<1x128xf32, #tpu.memory_space<vmem>>, %arg8: memref<128x128xbf16, #tpu.memory_space<vmem>>, %arg9: memref<1x128xf32, #tpu.memory_space<vmem>>, %arg10: memref<128x128xbf16, #tpu.memory_space<vmem>>, %arg11: memref<1x128xf32, #tpu.memory_space<vmem>>, %arg12: memref<8x128xf32, #tpu.memory_space<vmem>>) attributes {dimension_semantics = [#tpu.dimension_semantics<parallel>], iteration_bounds = array<i64: 2>, scalar_prefetch = 0 : i64, scratch_operands = 0 : i64, tpu.core_type = #tpu.core_type<tc>, window_params = [{transform_indices = @transform_0, window_bounds = array<i64: 2, 96, 160>}, {pipeline_mode = #tpu.pipeline_mode<synchronous>, transform_indices = @transform_1, window_bounds = array<i64: 160, 768>}, {pipeline_mode = #tpu.pipeline_mode<synchronous>, transform_indices = @transform_2, window_bounds = array<i64: 1, 768>}, {pipeline_mode = #tpu.pipeline_mode<synchronous>, transform_indices = @transform_3, window_bounds = array<i64: 5, 384, 256>}, {pipeline_mode = #tpu.pipeline_mode<synchronous>, transform_indices = @transform_4, window_bounds = array<i64: 1, 256>}, {pipeline_mode = #tpu.pipeline_mode<synchronous>, transform_indices = @transform_5, window_bounds = array<i64: 512, 128>}, {pipeline_mode = #tpu.pipeline_mode<synchronous>, transform_indices = @transform_6, window_bounds = array<i64: 1, 128>}, {pipeline_mode = #tpu.pipeline_mode<synchronous>, transform_indices = @transform_7, window_bounds = array<i64: 128, 128>}, {pipeline_mode = #tpu.pipeline_mode<synchronous>, transform_indices = @transform_8, window_bounds = array<i64: 1, 128>}, {pipeline_mode = #tpu.pipeline_mode<synchronous>, transform_indices = @transform_9, window_bounds = array<i64: 128, 128>}, {pipeline_mode = #tpu.pipeline_mode<synchronous>, transform_indices = @transform_10, window_bounds = array<i64: 1, 128>}, {transform_indices = @transform_11, window_bounds = array<i64: 8, 128>}]} {
    %c0 = arith.constant 0 : index
    %c0_0 = arith.constant 0 : index
    %c0_1 = arith.constant 0 : index
    %0 = vector.load %arg1[%c0, %c0_0, %c0_1] : memref<2x96x160xbf16, #tpu.memory_space<vmem>>, vector<2x96x160xbf16>
    %1 = vector.shape_cast %0 : vector<2x96x160xbf16> to vector<192x160xbf16>
    %c0_2 = arith.constant 0 : index
    %c0_3 = arith.constant 0 : index
    %2 = vector.load %arg2[%c0_2, %c0_3] : memref<160x768xbf16, #tpu.memory_space<vmem>>, vector<160x768xbf16>
    %cst = arith.constant dense<0.000000e+00> : vector<192x768xf32>
    %3 = tpu.matmul %1, %2, %cst {dimension_numbers = #tpu.dot_dimension_numbers<[1], [0], [0], [1], [0, 0, 1, 1], [], []>} : vector<192x160xbf16>, vector<160x768xbf16>, vector<192x768xf32> -> vector<192x768xf32>
    %4 = vector.extract_strided_slice %3 {offsets = [0, 0], sizes = [96, 768], strides = [1, 1]} : vector<192x768xf32> to vector<96x768xf32>
    %5 = vector.extract_strided_slice %3 {offsets = [96, 0], sizes = [96, 768], strides = [1, 1]} : vector<192x768xf32> to vector<96x768xf32>
    %6 = arith.maximumf %4, %5 : vector<96x768xf32>
    %c0_4 = arith.constant 0 : index
    %c0_5 = arith.constant 0 : index
    %7 = vector.load %arg3[%c0_4, %c0_5] : memref<1x768xf32, #tpu.memory_space<vmem>>, vector<1x768xf32>
    %8 = vector.broadcast %7 : vector<1x768xf32> to vector<96x768xf32>
    %9 = arith.addf %6, %8 : vector<96x768xf32>
    %cst_6 = arith.constant 0.000000e+00 : f32
    %10 = vector.broadcast %cst_6 : f32 to vector<96x768xf32>
    %11 = arith.maximumf %9, %10 : vector<96x768xf32>
    %12 = vector.extract_strided_slice %11 {offsets = [0, 0], sizes = [96, 384], strides = [1, 1]} : vector<96x768xf32> to vector<96x384xf32>
    %13 = vector.extract_strided_slice %11 {offsets = [0, 384], sizes = [96, 384], strides = [1, 1]} : vector<96x768xf32> to vector<96x384xf32>
    %14 = arith.maximumf %12, %13 : vector<96x384xf32>
    %15 = vector.shape_cast %14 : vector<96x384xf32> to vector<8x12x384xf32>
    %16 = arith.truncf %15 : vector<8x12x384xf32> to vector<8x12x384xbf16>
    %cst_7 = arith.constant 0.000000e+00 : f32
    %17 = vector.broadcast %cst_7 : f32 to vector<64x256xf32>
    %18 = vector.extract_strided_slice %16 {offsets = [0, 0, 0], sizes = [8, 8, 384], strides = [1, 1, 1]} : vector<8x12x384xbf16> to vector<8x8x384xbf16>
    %19 = vector.shape_cast %18 : vector<8x8x384xbf16> to vector<64x384xbf16>
    %c0_8 = arith.constant 0 : index
    %c0_9 = arith.constant 0 : index
    %c0_10 = arith.constant 0 : index
    %20 = vector.load %arg4[%c0_8, %c0_9, %c0_10] : memref<5x384x256xbf16, #tpu.memory_space<vmem>>, vector<1x384x256xbf16>
    %21 = vector.shape_cast %20 : vector<1x384x256xbf16> to vector<384x256xbf16>
    %cst_11 = arith.constant dense<0.000000e+00> : vector<64x256xf32>
    %22 = tpu.matmul %19, %21, %cst_11 {dimension_numbers = #tpu.dot_dimension_numbers<[1], [0], [0], [1], [0, 0, 1, 1], [], []>} : vector<64x384xbf16>, vector<384x256xbf16>, vector<64x256xf32> -> vector<64x256xf32>
    %23 = arith.addf %17, %22 : vector<64x256xf32>
    %24 = vector.extract_strided_slice %16 {offsets = [0, 1, 0], sizes = [8, 8, 384], strides = [1, 1, 1]} : vector<8x12x384xbf16> to vector<8x8x384xbf16>
    %25 = vector.shape_cast %24 : vector<8x8x384xbf16> to vector<64x384xbf16>
    %c1 = arith.constant 1 : index
    %c0_12 = arith.constant 0 : index
    %c0_13 = arith.constant 0 : index
    %26 = vector.load %arg4[%c1, %c0_12, %c0_13] : memref<5x384x256xbf16, #tpu.memory_space<vmem>>, vector<1x384x256xbf16>
    %27 = vector.shape_cast %26 : vector<1x384x256xbf16> to vector<384x256xbf16>
    %cst_14 = arith.constant dense<0.000000e+00> : vector<64x256xf32>
    %28 = tpu.matmul %25, %27, %cst_14 {dimension_numbers = #tpu.dot_dimension_numbers<[1], [0], [0], [1], [0, 0, 1, 1], [], []>} : vector<64x384xbf16>, vector<384x256xbf16>, vector<64x256xf32> -> vector<64x256xf32>
    %29 = arith.addf %23, %28 : vector<64x256xf32>
    %30 = vector.extract_strided_slice %16 {offsets = [0, 2, 0], sizes = [8, 8, 384], strides = [1, 1, 1]} : vector<8x12x384xbf16> to vector<8x8x384xbf16>
    %31 = vector.shape_cast %30 : vector<8x8x384xbf16> to vector<64x384xbf16>
    %c2 = arith.constant 2 : index
    %c0_15 = arith.constant 0 : index
    %c0_16 = arith.constant 0 : index
    %32 = vector.load %arg4[%c2, %c0_15, %c0_16] : memref<5x384x256xbf16, #tpu.memory_space<vmem>>, vector<1x384x256xbf16>
    %33 = vector.shape_cast %32 : vector<1x384x256xbf16> to vector<384x256xbf16>
    %cst_17 = arith.constant dense<0.000000e+00> : vector<64x256xf32>
    %34 = tpu.matmul %31, %33, %cst_17 {dimension_numbers = #tpu.dot_dimension_numbers<[1], [0], [0], [1], [0, 0, 1, 1], [], []>} : vector<64x384xbf16>, vector<384x256xbf16>, vector<64x256xf32> -> vector<64x256xf32>
    %35 = arith.addf %29, %34 : vector<64x256xf32>
    %36 = vector.extract_strided_slice %16 {offsets = [0, 3, 0], sizes = [8, 8, 384], strides = [1, 1, 1]} : vector<8x12x384xbf16> to vector<8x8x384xbf16>
    %37 = vector.shape_cast %36 : vector<8x8x384xbf16> to vector<64x384xbf16>
    %c3 = arith.constant 3 : index
    %c0_18 = arith.constant 0 : index
    %c0_19 = arith.constant 0 : index
    %38 = vector.load %arg4[%c3, %c0_18, %c0_19] : memref<5x384x256xbf16, #tpu.memory_space<vmem>>, vector<1x384x256xbf16>
    %39 = vector.shape_cast %38 : vector<1x384x256xbf16> to vector<384x256xbf16>
    %cst_20 = arith.constant dense<0.000000e+00> : vector<64x256xf32>
    %40 = tpu.matmul %37, %39, %cst_20 {dimension_numbers = #tpu.dot_dimension_numbers<[1], [0], [0], [1], [0, 0, 1, 1], [], []>} : vector<64x384xbf16>, vector<384x256xbf16>, vector<64x256xf32> -> vector<64x256xf32>
    %41 = arith.addf %35, %40 : vector<64x256xf32>
    %42 = vector.extract_strided_slice %16 {offsets = [0, 4, 0], sizes = [8, 8, 384], strides = [1, 1, 1]} : vector<8x12x384xbf16> to vector<8x8x384xbf16>
    %43 = vector.shape_cast %42 : vector<8x8x384xbf16> to vector<64x384xbf16>
    %c4 = arith.constant 4 : index
    %c0_21 = arith.constant 0 : index
    %c0_22 = arith.constant 0 : index
    %44 = vector.load %arg4[%c4, %c0_21, %c0_22] : memref<5x384x256xbf16, #tpu.memory_space<vmem>>, vector<1x384x256xbf16>
    %45 = vector.shape_cast %44 : vector<1x384x256xbf16> to vector<384x256xbf16>
    %cst_23 = arith.constant dense<0.000000e+00> : vector<64x256xf32>
    %46 = tpu.matmul %43, %45, %cst_23 {dimension_numbers = #tpu.dot_dimension_numbers<[1], [0], [0], [1], [0, 0, 1, 1], [], []>} : vector<64x384xbf16>, vector<384x256xbf16>, vector<64x256xf32> -> vector<64x256xf32>
    %47 = arith.addf %41, %46 : vector<64x256xf32>
    %c0_24 = arith.constant 0 : index
    %c0_25 = arith.constant 0 : index
    %48 = vector.load %arg5[%c0_24, %c0_25] : memref<1x256xf32, #tpu.memory_space<vmem>>, vector<1x256xf32>
    %49 = vector.broadcast %48 : vector<1x256xf32> to vector<64x256xf32>
    %50 = arith.addf %47, %49 : vector<64x256xf32>
    %cst_26 = arith.constant 0.000000e+00 : f32
    %51 = vector.broadcast %cst_26 : f32 to vector<64x256xf32>
    %52 = arith.maximumf %50, %51 : vector<64x256xf32>
    %53 = vector.extract_strided_slice %52 {offsets = [0, 0], sizes = [64, 128], strides = [1, 1]} : vector<64x256xf32> to vector<64x128xf32>
    %54 = vector.extract_strided_slice %52 {offsets = [0, 128], sizes = [64, 128], strides = [1, 1]} : vector<64x256xf32> to vector<64x128xf32>
    %55 = arith.maximumf %53, %54 : vector<64x128xf32>
    %56 = vector.shape_cast %55 : vector<64x128xf32> to vector<8x4x2x128xf32>
    %57 = vector.extract_strided_slice %56 {offsets = [0, 0, 0, 0], sizes = [8, 4, 1, 128], strides = [1, 1, 1, 1]} : vector<8x4x2x128xf32> to vector<8x4x1x128xf32>
    %58 = vector.shape_cast %57 : vector<8x4x1x128xf32> to vector<8x4x128xf32>
    %59 = vector.extract_strided_slice %56 {offsets = [0, 0, 1, 0], sizes = [8, 4, 1, 128], strides = [1, 1, 1, 1]} : vector<8x4x2x128xf32> to vector<8x4x1x128xf32>
    %60 = vector.shape_cast %59 : vector<8x4x1x128xf32> to vector<8x4x128xf32>
    %61 = arith.maximumf %58, %60 : vector<8x4x128xf32>
    %62 = vector.shape_cast %61 : vector<8x4x128xf32> to vector<8x512xf32>
    %63 = arith.truncf %62 : vector<8x512xf32> to vector<8x512xbf16>
    %c0_27 = arith.constant 0 : index
    %c0_28 = arith.constant 0 : index
    %64 = vector.load %arg6[%c0_27, %c0_28] : memref<512x128xbf16, #tpu.memory_space<vmem>>, vector<512x128xbf16>
    %cst_29 = arith.constant dense<0.000000e+00> : vector<8x128xf32>
    %65 = tpu.matmul %63, %64, %cst_29 {dimension_numbers = #tpu.dot_dimension_numbers<[1], [0], [0], [1], [0, 0, 1, 1], [], []>} : vector<8x512xbf16>, vector<512x128xbf16>, vector<8x128xf32> -> vector<8x128xf32>
    %c0_30 = arith.constant 0 : index
    %c0_31 = arith.constant 0 : index
    %66 = vector.load %arg7[%c0_30, %c0_31] : memref<1x128xf32, #tpu.memory_space<vmem>>, vector<1x128xf32>
    %67 = vector.broadcast %66 : vector<1x128xf32> to vector<8x128xf32>
    %68 = arith.addf %65, %67 : vector<8x128xf32>
    %cst_32 = arith.constant 0.000000e+00 : f32
    %69 = vector.broadcast %cst_32 : f32 to vector<8x128xf32>
    %70 = arith.maximumf %68, %69 : vector<8x128xf32>
    %71 = arith.truncf %70 : vector<8x128xf32> to vector<8x128xbf16>
    %c0_33 = arith.constant 0 : index
    %c0_34 = arith.constant 0 : index
    %72 = vector.load %arg8[%c0_33, %c0_34] : memref<128x128xbf16, #tpu.memory_space<vmem>>, vector<128x128xbf16>
    %cst_35 = arith.constant dense<0.000000e+00> : vector<8x128xf32>
    %73 = tpu.matmul %71, %72, %cst_35 {dimension_numbers = #tpu.dot_dimension_numbers<[1], [0], [0], [1], [0, 0, 1, 1], [], []>} : vector<8x128xbf16>, vector<128x128xbf16>, vector<8x128xf32> -> vector<8x128xf32>
    %c0_36 = arith.constant 0 : index
    %c0_37 = arith.constant 0 : index
    %74 = vector.load %arg9[%c0_36, %c0_37] : memref<1x128xf32, #tpu.memory_space<vmem>>, vector<1x128xf32>
    %75 = vector.broadcast %74 : vector<1x128xf32> to vector<8x128xf32>
    %76 = arith.addf %73, %75 : vector<8x128xf32>
    %cst_38 = arith.constant 0.000000e+00 : f32
    %77 = vector.broadcast %cst_38 : f32 to vector<8x128xf32>
    %78 = arith.maximumf %76, %77 : vector<8x128xf32>
    %79 = arith.truncf %78 : vector<8x128xf32> to vector<8x128xbf16>
    %c0_39 = arith.constant 0 : index
    %c0_40 = arith.constant 0 : index
    %80 = vector.load %arg10[%c0_39, %c0_40] : memref<128x128xbf16, #tpu.memory_space<vmem>>, vector<128x128xbf16>
    %cst_41 = arith.constant dense<0.000000e+00> : vector<8x128xf32>
    %81 = tpu.matmul %79, %80, %cst_41 {dimension_numbers = #tpu.dot_dimension_numbers<[1], [0], [0], [1], [0, 0, 1, 1], [], []>} : vector<8x128xbf16>, vector<128x128xbf16>, vector<8x128xf32> -> vector<8x128xf32>
    %c0_42 = arith.constant 0 : index
    %c0_43 = arith.constant 0 : index
    %82 = vector.load %arg11[%c0_42, %c0_43] : memref<1x128xf32, #tpu.memory_space<vmem>>, vector<1x128xf32>
    %83 = vector.broadcast %82 : vector<1x128xf32> to vector<8x128xf32>
    %84 = arith.addf %81, %83 : vector<8x128xf32>
    %c0_44 = arith.constant 0 : index
    %c0_45 = arith.constant 0 : index
    %85 = vector.load %arg12[%c0_44, %c0_45] : memref<8x128xf32, #tpu.memory_space<vmem>>, vector<8x128xf32>
    tpu.vector_store %arg12[%c0_44, %c0_45], %84 {strides = array<i32>} : memref<8x128xf32, #tpu.memory_space<vmem>>, vector<8x128xf32>,
    return
  }
  func.func @transform_0(%arg0: i32) -> (i32, i32, i32) {
    %c0_i32 = arith.constant 0 : i32
    %c0_i32_0 = arith.constant 0 : i32
    %c0_i32_1 = arith.constant 0 : i32
    return %c0_i32, %arg0, %c0_i32_0 : i32, i32, i32
  }
  func.func @transform_1(%arg0: i32) -> (i32, i32) {
    %c0_i32 = arith.constant 0 : i32
    %c0_i32_0 = arith.constant 0 : i32
    %c0_i32_1 = arith.constant 0 : i32
    return %c0_i32, %c0_i32_0 : i32, i32
  }
  func.func @transform_2(%arg0: i32) -> (i32, i32) {
    %c0_i32 = arith.constant 0 : i32
    %c0_i32_0 = arith.constant 0 : i32
    %c0_i32_1 = arith.constant 0 : i32
    return %c0_i32, %c0_i32_0 : i32, i32
  }
  func.func @transform_3(%arg0: i32) -> (i32, i32, i32) {
    %c0_i32 = arith.constant 0 : i32
    %c0_i32_0 = arith.constant 0 : i32
    %c0_i32_1 = arith.constant 0 : i32
    %c0_i32_2 = arith.constant 0 : i32
    return %c0_i32, %c0_i32_0, %c0_i32_1 : i32, i32, i32
  }
  func.func @transform_4(%arg0: i32) -> (i32, i32) {
    %c0_i32 = arith.constant 0 : i32
    %c0_i32_0 = arith.constant 0 : i32
    %c0_i32_1 = arith.constant 0 : i32
    return %c0_i32, %c0_i32_0 : i32, i32
  }
  func.func @transform_5(%arg0: i32) -> (i32, i32) {
    %c0_i32 = arith.constant 0 : i32
    %c0_i32_0 = arith.constant 0 : i32
    %c0_i32_1 = arith.constant 0 : i32
    return %c0_i32, %c0_i32_0 : i32, i32
  }
  func.func @transform_6(%arg0: i32) -> (i32, i32) {
    %c0_i32 = arith.constant 0 : i32
    %c0_i32_0 = arith.constant 0 : i32
    %c0_i32_1 = arith.constant 0 : i32
    return %c0_i32, %c0_i32_0 : i32, i32
  }
  func.func @transform_7(%arg0: i32) -> (i32, i32) {
    %c0_i32 = arith.constant 0 : i32
    %c0_i32_0 = arith.constant 0 : i32
    %c0_i32_1 = arith.constant 0 : i32
    return %c0_i32, %c0_i32_0 : i32, i32
  }
  func.func @transform_8(%arg0: i32) -> (i32, i32) {
    %c0_i32 = arith.constant 0 : i32
    %c0_i32_0 = arith.constant 0 : i32
    %c0_i32_1 = arith.constant 0 : i32
    return %c0_i32, %c0_i32_0 : i32, i32
  }
  func.func @transform_9(%arg0: i32) -> (i32, i32) {
    %c0_i32 = arith.constant 0 : i32
    %c0_i32_0 = arith.constant 0 : i32
    %c0_i32_1 = arith.constant 0 : i32
    return %c0_i32, %c0_i32_0 : i32, i32
  }
  func.func @transform_10(%arg0: i32) -> (i32, i32) {
    %c0_i32 = arith.constant 0 : i32
    %c0_i32_0 = arith.constant 0 : i32
    %c0_i32_1 = arith.constant 0 : i32
    return %c0_i32, %c0_i32_0 : i32, i32
  }
  func.func @transform_11(%arg0: i32) -> (i32, i32) {
    %c0_i32 = arith.constant 0 : i32
    %c0_i32_0 = arith.constant 0 : i32
    return %arg0, %c0_i32 : i32, i32
  }
}

</mosaic_0001>

<llo_original>
// kernel: cnn_forward.1
$region0: #{cnn_forward.1}
  #allocation0 [shape = 'u32[]', space=smem, size = 0x4, offset = 0x4, fixed_abs, tag = 'smem constant byte address 0x4 - core index']
  #allocation1 [shape = 'u32[72,128]{1,0:T(1,128)}', space=vmem, size = 0x9000, scoped, tag = 'internal scratch']
  %s0 = inlined_call_operand.vmem [shape: bf16[2,192,160], index: 0, kind: input, shape index: {}]
  %s1 = inlined_call_operand.vmem [shape: bf16[160,768], index: 1, kind: input, shape index: {}]
  %s2 = inlined_call_operand.vmem [shape: f32[1,768], index: 2, kind: input, shape index: {}]
  %s3 = inlined_call_operand.vmem [shape: bf16[5,384,256], index: 3, kind: input, shape index: {}]
  %s4 = inlined_call_operand.vmem [shape: f32[1,256], index: 4, kind: input, shape index: {}]
  %s5 = inlined_call_operand.vmem [shape: bf16[512,128], index: 5, kind: input, shape index: {}]
  %s6 = inlined_call_operand.vmem [shape: f32[1,128], index: 6, kind: input, shape index: {}]
  %s7 = inlined_call_operand.vmem [shape: bf16[128,128], index: 7, kind: input, shape index: {}]
  %s8 = inlined_call_operand.vmem [shape: f32[1,128], index: 8, kind: input, shape index: {}]
  %s9 = inlined_call_operand.vmem [shape: bf16[128,128], index: 9, kind: input, shape index: {}]
  %s10 = inlined_call_operand.vmem [shape: f32[1,128], index: 10, kind: input, shape index: {}]
  %s11 = inlined_call_operand.vmem [shape: f32[16,128], index: 11, kind: output, shape index: {}]
  %s12 = sld [smem:[#allocation0]]
  $region115: #{cnn_forward.1} parent=0
    _
  %s14 = ssub.s32 1, %s12
  %s15 = scalar_select 0, %s14, %s12
  $region1: #{cnn_forward.1} parent=0
    #allocation2 [shape = 'u8[196608]{0}', space=vmem, size = 0x30000, scoped, tag = 'input window, operand 0']
    loop: start=0, step=1, limit=4
    $region2: #{cnn_forward.1} parent=1 // loop_pre_header
      _
    $region3: #{cnn_forward.1} parent=1 // loop_header
      %s17 = sphi 0, %s21
      %p18 = scmp.ge.s32.totalorder %s17, 4
      %s27 = sphi 0, %s29
      %s30 = sphi 0, %s27
      %s31 = sphi 0, %s30
      %s47 = sphi 0, %s31
      %s51 = sphi 0, %s51
      %s53 = sphi 0, %s51
      %s54 = sphi 0, %s53
      %s68 = sphi 0, %s54
      %s72 = sphi 0, %s72
      %s74 = sphi 0, %s72
      %s75 = sphi 0, %s74
      %s89 = sphi 0, %s75
      %s93 = sphi 0, %s93
      %s95 = sphi 0, %s93
      %s96 = sphi 0, %s95
      %s110 = sphi 0, %s96
      %s114 = sphi 0, %s114
      %s116 = sphi 0, %s114
      %s117 = sphi 0, %s116
      %s131 = sphi 0, %s117
      %s135 = sphi 0, %s135
      %s137 = sphi 0, %s135
      %s138 = sphi 0, %s137
      %s152 = sphi 0, %s138
      %s156 = sphi 0, %s156
      %s158 = sphi 0, %s156
      %s159 = sphi 0, %s158
      %s173 = sphi 0, %s159
      %s177 = sphi 0, %s177
      %s179 = sphi 0, %s177
      %s180 = sphi 0, %s179
      %s194 = sphi 0, %s180
      %s198 = sphi 0, %s198
      %s200 = sphi 0, %s198
      %s201 = sphi 0, %s200
      %s215 = sphi 0, %s201
      %s219 = sphi 0, %s219
      %s221 = sphi 0, %s219
      %s222 = sphi 0, %s221
      %s236 = sphi 0, %s222
      %s240 = sphi 0, %s240
      %s242 = sphi 0, %s240
      %s243 = sphi 0, %s242
      %s257 = sphi 0, %s243
      %s263 = sphi 0, %s265
      %s266 = sphi 0, %s263
      %s267 = sphi 0, %s266
      %s283 = sphi 0, %s267
    $region4: #{cnn_forward.1} parent=1 // loop_header_branch
      %20 = sbr.rel (%p18) target = $region8
    $region5: #{cnn_forward.1} parent=1 // loop_body
      %s22 = ssub.s32 %s17, 1
      %s23 = ssub.s32 %s17, 2
      %s24 = sadd.s32 %s17, 1
      %s25 = ssub.s32 %s17, %s24
      %p26 = scmp.eq.s32.totalorder %s25, 0
      %s28 = sadd.s32 %s27, 1
      %s29 = scalar_select %p26, %s27, %s28
      %p32 = pneg %p26
      %p33 = scmp.eq.s32.totalorder %s17, 1
      %p34 = por %p32, %p33
      %p35 = scmp.ne.s32.totalorder %s27, %s30
      %p36 = scmp.eq.s32.totalorder %s17, 0
      %p37 = por %p35, %p36
      %p38 = scmp.ne.s32.totalorder %s27, %s30
      %p39 = scmp.eq.s32.totalorder %s22, 1
      %p40 = por %p38, %p39
      %p41 = scmp.ne.s32.totalorder %s30, %s31
      %p42 = scmp.eq.s32.totalorder %s22, 0
      %p43 = por %p41, %p42
      %p44 = scmp.ne.s32.totalorder %s30, %s31
      %p45 = scmp.eq.s32.totalorder %s23, 1
      %p46 = por %p44, %p45
      %p48 = scmp.ne.s32.totalorder %s31, %s47
      %p49 = scmp.eq.s32.totalorder %s23, 0
      %p50 = por %p48, %p49
      %s52 = sadd.s32 %s51, 1
      %p55 = scmp.eq.s32.totalorder %s17, 1
      %p56 = scmp.ne.s32.totalorder %s51, %s53
      %p57 = scmp.eq.s32.totalorder %s17, 0
      %p58 = por %p56, %p57
      %p59 = scmp.ne.s32.totalorder %s51, %s53
      %p60 = scmp.eq.s32.totalorder %s22, 1
      %p61 = por %p59, %p60
      %p62 = scmp.ne.s32.totalorder %s53, %s54
      %p63 = scmp.eq.s32.totalorder %s22, 0
      %p64 = por %p62, %p63
      %p65 = scmp.ne.s32.totalorder %s53, %s54
      %p66 = scmp.eq.s32.totalorder %s23, 1
      %p67 = por %p65, %p66
      %p69 = scmp.ne.s32.totalorder %s54, %s68
      %p70 = scmp.eq.s32.totalorder %s23, 0
      %p71 = por %p69, %p70
      %s73 = sadd.s32 %s72, 1
      %p76 = scmp.eq.s32.totalorder %s17, 1
      %p77 = scmp.ne.s32.totalorder %s72, %s74
      %p78 = scmp.eq.s32.totalorder %s17, 0
      %p79 = por %p77, %p78
      %p80 = scmp.ne.s32.totalorder %s72, %s74
      %p81 = scmp.eq.s32.totalorder %s22, 1
      %p82 = por %p80, %p81
      %p83 = scmp.ne.s32.totalorder %s74, %s75
      %p84 = scmp.eq.s32.totalorder %s22, 0
      %p85 = por %p83, %p84
      %p86 = scmp.ne.s32.totalorder %s74, %s75
      %p87 = scmp.eq.s32.totalorder %s23, 1
      %p88 = por %p86, %p87
      %p90 = scmp.ne.s32.totalorder %s75, %s89
      %p91 = scmp.eq.s32.totalorder %s23, 0
      %p92 = por %p90, %p91
      %s94 = sadd.s32 %s93, 1
      %p97 = scmp.eq.s32.totalorder %s17, 1
      %p98 = scmp.ne.s32.totalorder %s93, %s95
      %p99 = scmp.eq.s32.totalorder %s17, 0
      %p100 = por %p98, %p99
      %p101 = scmp.ne.s32.totalorder %s93, %s95
      %p102 = scmp.eq.s32.totalorder %s22, 1
      %p103 = por %p101, %p102
      %p104 = scmp.ne.s32.totalorder %s95, %s96
      %p105 = scmp.eq.s32.totalorder %s22, 0
      %p106 = por %p104, %p105
      %p107 = scmp.ne.s32.totalorder %s95, %s96
      %p108 = scmp.eq.s32.totalorder %s23, 1
      %p109 = por %p107, %p108
      %p111 = scmp.ne.s32.totalorder %s96, %s110
      %p112 = scmp.eq.s32.totalorder %s23, 0
      %p113 = por %p111, %p112
      %s115 = sadd.s32 %s114, 1
      %p118 = scmp.eq.s32.totalorder %s17, 1
      %p119 = scmp.ne.s32.totalorder %s114, %s116
      %p120 = scmp.eq.s32.totalorder %s17, 0
      %p121 = por %p119, %p120
      %p122 = scmp.ne.s32.totalorder %s114, %s116
      %p123 = scmp.eq.s32.totalorder %s22, 1
      %p124 = por %p122, %p123
      %p125 = scmp.ne.s32.totalorder %s116, %s117
      %p126 = scmp.eq.s32.totalorder %s22, 0
      %p127 = por %p125, %p126
      %p128 = scmp.ne.s32.totalorder %s116, %s117
      %p129 = scmp.eq.s32.totalorder %s23, 1
      %p130 = por %p128, %p129
      %p132 = scmp.ne.s32.totalorder %s117, %s131
      %p133 = scmp.eq.s32.totalorder %s23, 0
      %p134 = por %p132, %p133
      %s136 = sadd.s32 %s135, 1
      %p139 = scmp.eq.s32.totalorder %s17, 1
      %p140 = scmp.ne.s32.totalorder %s135, %s137
      %p141 = scmp.eq.s32.totalorder %s17, 0
      %p142 = por %p140, %p141
      %p143 = scmp.ne.s32.totalorder %s135, %s137
      %p144 = scmp.eq.s32.totalorder %s22, 1
      %p145 = por %p143, %p144
      %p146 = scmp.ne.s32.totalorder %s137, %s138
      %p147 = scmp.eq.s32.totalorder %s22, 0
      %p148 = por %p146, %p147
      %p149 = scmp.ne.s32.totalorder %s137, %s138
      %p150 = scmp.eq.s32.totalorder %s23, 1
      %p151 = por %p149, %p150
      %p153 = scmp.ne.s32.totalorder %s138, %s152
      %p154 = scmp.eq.s32.totalorder %s23, 0
      %p155 = por %p153, %p154
      %s157 = sadd.s32 %s156, 1
      %p160 = scmp.eq.s32.totalorder %s17, 1
      %p161 = scmp.ne.s32.totalorder %s156, %s158
      %p162 = scmp.eq.s32.totalorder %s17, 0
      %p163 = por %p161, %p162
      %p164 = scmp.ne.s32.totalorder %s156, %s158
      %p165 = scmp.eq.s32.totalorder %s22, 1
      %p166 = por %p164, %p165
      %p167 = scmp.ne.s32.totalorder %s158, %s159
      %p168 = scmp.eq.s32.totalorder %s22, 0
      %p169 = por %p167, %p168
      %p170 = scmp.ne.s32.totalorder %s158, %s159
      %p171 = scmp.eq.s32.totalorder %s23, 1
      %p172 = por %p170, %p171
      %p174 = scmp.ne.s32.totalorder %s159, %s173
      %p175 = scmp.eq.s32.totalorder %s23, 0
      %p176 = por %p174, %p175
      %s178 = sadd.s32 %s177, 1
      %p181 = scmp.eq.s32.totalorder %s17, 1
      %p182 = scmp.ne.s32.totalorder %s177, %s179
      %p183 = scmp.eq.s32.totalorder %s17, 0
      %p184 = por %p182, %p183
      %p185 = scmp.ne.s32.totalorder %s177, %s179
      %p186 = scmp.eq.s32.totalorder %s22, 1
      %p187 = por %p185, %p186
      %p188 = scmp.ne.s32.totalorder %s179, %s180
      %p189 = scmp.eq.s32.totalorder %s22, 0
      %p190 = por %p188, %p189
      %p191 = scmp.ne.s32.totalorder %s179, %s180
      %p192 = scmp.eq.s32.totalorder %s23, 1
      %p193 = por %p191, %p192
      %p195 = scmp.ne.s32.totalorder %s180, %s194
      %p196 = scmp.eq.s32.totalorder %s23, 0
      %p197 = por %p195, %p196
      %s199 = sadd.s32 %s198, 1
      %p202 = scmp.eq.s32.totalorder %s17, 1
      %p203 = scmp.ne.s32.totalorder %s198, %s200
      %p204 = scmp.eq.s32.totalorder %s17, 0
      %p205 = por %p203, %p204
      %p206 = scmp.ne.s32.totalorder %s198, %s200
      %p207 = scmp.eq.s32.totalorder %s22, 1
      %p208 = por %p206, %p207
      %p209 = scmp.ne.s32.totalorder %s200, %s201
      %p210 = scmp.eq.s32.totalorder %s22, 0
      %p211 = por %p209, %p210
      %p212 = scmp.ne.s32.totalorder %s200, %s201
      %p213 = scmp.eq.s32.totalorder %s23, 1
      %p214 = por %p212, %p213
      %p216 = scmp.ne.s32.totalorder %s201, %s215
      %p217 = scmp.eq.s32.totalorder %s23, 0
      %p218 = por %p216, %p217
      %s220 = sadd.s32 %s219, 1
      %p223 = scmp.eq.s32.totalorder %s17, 1
      %p224 = scmp.ne.s32.totalorder %s219, %s221
      %p225 = scmp.eq.s32.totalorder %s17, 0
      %p226 = por %p224, %p225
      %p227 = scmp.ne.s32.totalorder %s219, %s221
      %p228 = scmp.eq.s32.totalorder %s22, 1
      %p229 = por %p227, %p228
      %p230 = scmp.ne.s32.totalorder %s221, %s222
      %p231 = scmp.eq.s32.totalorder %s22, 0
      %p232 = por %p230, %p231
      %p233 = scmp.ne.s32.totalorder %s221, %s222
      %p234 = scmp.eq.s32.totalorder %s23, 1
      %p235 = por %p233, %p234
      %p237 = scmp.ne.s32.totalorder %s222, %s236
      %p238 = scmp.eq.s32.totalorder %s23, 0
      %p239 = por %p237, %p238
      %s241 = sadd.s32 %s240, 1
      %p244 = scmp.eq.s32.totalorder %s17, 1
      %p245 = scmp.ne.s32.totalorder %s240, %s242
      %p246 = scmp.eq.s32.totalorder %s17, 0
      %p247 = por %p245, %p246
      %p248 = scmp.ne.s32.totalorder %s240, %s242
      %p249 = scmp.eq.s32.totalorder %s22, 1
      %p250 = por %p248, %p249
      %p251 = scmp.ne.s32.totalorder %s242, %s243
      %p252 = scmp.eq.s32.totalorder %s22, 0
      %p253 = por %p251, %p252
      %p254 = scmp.ne.s32.totalorder %s242, %s243
      %p255 = scmp.eq.s32.totalorder %s23, 1
      %p256 = por %p254, %p255
      %p258 = scmp.ne.s32.totalorder %s243, %s257
      %p259 = scmp.eq.s32.totalorder %s23, 0
      %p260 = por %p258, %p259
      %s261 = ssub.s32 %s17, %s24
      %p262 = scmp.eq.s32.totalorder %s261, 0
      %s264 = sadd.s32 %s263, 1
      %s265 = scalar_select %p262, %s263, %s264
      %p268 = pneg %p262
      %p269 = scmp.eq.s32.totalorder %s17, 1
      %p270 = por %p268, %p269
      %p271 = scmp.ne.s32.totalorder %s263, %s266
      %p272 = scmp.eq.s32.totalorder %s17, 0
      %p273 = por %p271, %p272
      %p274 = scmp.ne.s32.totalorder %s263, %s266
      %p275 = scmp.eq.s32.totalorder %s22, 1
      %p276 = por %p274, %p275
      %p277 = scmp.ne.s32.totalorder %s266, %s267
      %p278 = scmp.eq.s32.totalorder %s22, 0
      %p279 = por %p277, %p278
      %p280 = scmp.ne.s32.totalorder %s266, %s267
      %p281 = scmp.eq.s32.totalorder %s23, 1
      %p282 = por %p280, %p281
      %p284 = scmp.ne.s32.totalorder %s267, %s283
      %p285 = scmp.eq.s32.totalorder %s23, 0
      %p286 = por %p284, %p285
      %p287 = scmp.le.s32.totalorder 1, %s17
      %p288 = scmp.lt.s32.totalorder %s17, 3
      %p289 = pnand %p287, %p288
      %p290 = pneg %p289
      // Predicated region
      $region9: #{cnn_forward.1} parent=5 // pred_check
        _
      $region10: #{cnn_forward.1} parent=5 // pred_check_branch
        %292 = sbr.rel (%p289) target = $region12
      $region11: #{cnn_forward.1} parent=5 // pred_region
        %s293 = ssub.s32 %s17, 1
        // Predicated region
        $region13: #{cnn_forward.1} parent=11 // pred_check
          %p294 = pneg %p64
        $region14: #{cnn_forward.1} parent=11 // pred_check_branch
          %296 = sbr.rel (%p294) target = $region16
        $region15: #{cnn_forward.1} parent=11 // pred_region
          _
        $region16: #{cnn_forward.1} parent=11 // pred_fallthru
          _
        // Predicated region
        $region17: #{cnn_forward.1} parent=11 // pred_check
          %p297 = pneg %p85
        $region18: #{cnn_forward.1} parent=11 // pred_check_branch
          %299 = sbr.rel (%p297) target = $region20
        $region19: #{cnn_forward.1} parent=11 // pred_region
          _
        $region20: #{cnn_forward.1} parent=11 // pred_fallthru
          _
        // Predicated region
        $region21: #{cnn_forward.1} parent=11 // pred_check
          %p300 = pneg %p106
        $region22: #{cnn_forward.1} parent=11 // pred_check_branch
          %302 = sbr.rel (%p300) target = $region24
        $region23: #{cnn_forward.1} parent=11 // pred_region
          _
        $region24: #{cnn_forward.1} parent=11 // pred_fallthru
          _
        // Predicated region
        $region25: #{cnn_forward.1} parent=11 // pred_check
          %p303 = pneg %p127
        $region26: #{cnn_forward.1} parent=11 // pred_check_branch
          %305 = sbr.rel (%p303) target = $region28
        $region27: #{cnn_forward.1} parent=11 // pred_region
          _
        $region28: #{cnn_forward.1} parent=11 // pred_fallthru
          _
        // Predicated region
        $region29: #{cnn_forward.1} parent=11 // pred_check
          %p306 = pneg %p148
        $region30: #{cnn_forward.1} parent=11 // pred_check_branch
          %308 = sbr.rel (%p306) target = $region32
        $region31: #{cnn_forward.1} parent=11 // pred_region
          _
        $region32: #{cnn_forward.1} parent=11 // pred_fallthru
          _
        // Predicated region
        $region33: #{cnn_forward.1} parent=11 // pred_check
          %p309 = pneg %p169
        $region34: #{cnn_forward.1} parent=11 // pred_check_branch
          %311 = sbr.rel (%p309) target = $region36
        $region35: #{cnn_forward.1} parent=11 // pred_region
          _
        $region36: #{cnn_forward.1} parent=11 // pred_fallthru
          _
        // Predicated region
        $region37: #{cnn_forward.1} parent=11 // pred_check
          %p312 = pneg %p190
        $region38: #{cnn_forward.1} parent=11 // pred_check_branch
          %314 = sbr.rel (%p312) target = $region40
        $region39: #{cnn_forward.1} parent=11 // pred_region
          _
        $region40: #{cnn_forward.1} parent=11 // pred_fallthru
          _
        // Predicated region
        $region41: #{cnn_forward.1} parent=11 // pred_check
          %p315 = pneg %p211
        $region42: #{cnn_forward.1} parent=11 // pred_check_branch
          %317 = sbr.rel (%p315) target = $region44
        $region43: #{cnn_forward.1} parent=11 // pred_region
          _
        $region44: #{cnn_forward.1} parent=11 // pred_fallthru
          _
        // Predicated region
        $region45: #{cnn_forward.1} parent=11 // pred_check
          %p318 = pneg %p232
        $region46: #{cnn_forward.1} parent=11 // pred_check_branch
          %320 = sbr.rel (%p318) target = $region48
        $region47: #{cnn_forward.1} parent=11 // pred_region
          _
        $region48: #{cnn_forward.1} parent=11 // pred_fallthru
          _
        // Predicated region
        $region49: #{cnn_forward.1} parent=11 // pred_check
          %p321 = pneg %p253
        $region50: #{cnn_forward.1} parent=11 // pred_check_branch
          %323 = sbr.rel (%p321) target = $region52
        $region51: #{cnn_forward.1} parent=11 // pred_region
          _
        $region52: #{cnn_forward.1} parent=11 // pred_fallthru
          _
      $region12: #{cnn_forward.1} parent=5 // pred_fallthru
        _
      %p324 = scmp.lt.s32.totalorder %s17, 2
      // Predicated region
      $region53: #{cnn_forward.1} parent=5 // pred_check
        %p325 = pneg %p324
      $region54: #{cnn_forward.1} parent=5 // pred_check_branch
        %327 = sbr.rel (%p325) target = $region56
      $region55: #{cnn_forward.1} parent=5 // pred_region
        // Predicated region
        $region57: #{cnn_forward.1} parent=55 // pred_check
          %p328 = pneg %p37
        $region58: #{cnn_forward.1} parent=55 // pred_check_branch
          %330 = sbr.rel (%p328) target = $region60
        $region59: #{cnn_forward.1} parent=55 // pred_region
          %s331 = sand.u32 %s27, 1
          %s332 = sand.u32 %s27, 1
          %s333 = smul.addr %s332, 192
          %s334 = scalar_lea.vmem [#allocation2], %s333
          %s335 = smul.u32 12, %s17
          %s336 = smul.addr %s335, 2
          %s337 = smul.addr %s336, 4
          %s338 = scalar_lea.vmem %s0, %s337
          // Predicated region
          $region61: #{cnn_forward.1} parent=59 // pred_check
            _
          $region62: #{cnn_forward.1} parent=59 // pred_check_branch
            %340 = sbr.rel (0) target = $region64
          $region63: #{cnn_forward.1} parent=59 // pred_region
            // Predicated region
            $region65: #{cnn_forward.1} parent=63 // pred_check
              _
            $region66: #{cnn_forward.1} parent=63 // pred_check_branch
              %342 = sbr.rel (0) target = $region68
            $region67: #{cnn_forward.1} parent=63 // pred_region
              // Predicated region
              $region80: #{cnn_forward.1} parent=67 // pred_check
                _
              $region81: #{cnn_forward.1} parent=67 // pred_check_branch
                %404 = sbr.rel (0) target = $region83
              $region82: #{cnn_forward.1} parent=67 // pred_region
                loop: start=0, step=1, limit=1
                $region84: #{cnn_forward.1} parent=82 // loop_pre_header
                  _
                $region85: #{cnn_forward.1} parent=82 // loop_header
                  %s406 = sphi 0, %s410
                  %p407 = scmp.ge.s32.totalorder %s406, 1
                  %s411 = sphi %s338, %s338
                  %s412 = sphi %s334, %s334
                $region86: #{cnn_forward.1} parent=82 // loop_header_branch
                  %409 = sbr.rel (%p407) target = $region90
                $region87: #{cnn_forward.1} parent=82 // loop_body
                  %v413 = vld [vmem:[%s411] sm:$0xff]
                  %414 = vst [vmem:[%s412] sm:$0xff] %v413
                  %v415 = vld [vmem:[%s411 + $0x8] sm:$0xff]
                  %416 = vst [vmem:[%s412 + $0x8] sm:$0xff] %v415
                  %v417 = vld [vmem:[%s411 + $0x10] sm:$0xff]
                  %418 = vst [vmem:[%s412 + $0x10] sm:$0xff] %v417
                  %v419 = vld [vmem:[%s411 + $0x18] sm:$0xff]
                  %420 = vst [vmem:[%s412 + $0x18] sm:$0xff] %v419
                  %v421 = vld [vmem:[%s411 + $0x20] sm:$0xff]
                  %422 = vst [vmem:[%s412 + $0x20] sm:$0xff] %v421
                  %v423 = vld [vmem:[%s411 + $0x28] sm:$0xff]
                  %424 = vst [vmem:[%s412 + $0x28] sm:$0xff] %v423
                  %v425 = vld [vmem:[%s411 + $0x30] sm:$0xff]
                  %426 = vst [vmem:[%s412 + $0x30] sm:$0xff] %v425
                  %v427 = vld [vmem:[%s411 + $0x38] sm:$0xff]
                  %428 = vst [vmem:[%s412 + $0x38] sm:$0xff] %v427
                  %v429 = vld [vmem:[%s411 + $0x40] sm:$0xff]
                  %430 = vst [vmem:[%s412 + $0x40] sm:$0xff] %v429
                  %v431 = vld [vmem:[%s411 + $0x48] sm:$0xff]
                  %432 = vst [vmem:[%s412 + $0x48] sm:$0xff] %v431
                  %v433 = vld [vmem:[%s411 + $0x50] sm:$0xff]
                  %434 = vst [vmem:[%s412 + $0x50] sm:$0xff] %v433
                  %v435 = vld [vmem:[%s411 + $0x58] sm:$0xff]
                  %436 = vst [vmem:[%s412 + $0x58] sm:$0xff] %v435
                  %v437 = vld [vmem:[%s411 + $0xc0] sm:$0xff]
                  %438 = vst [vmem:[%s412 + $0x60] sm:$0xff] %v437
                  %v439 = vld [vmem:[%s411 + $0xc8] sm:$0xff]
                  %440 = vst [vmem:[%s412 + $0x68] sm:$0xff] %v439
                  %v441 = vld [vmem:[%s411 + $0xd0] sm:$0xff]
                  %442 = vst [vmem:[%s412 + $0x70] sm:$0xff] %v441
                  %v443 = vld [vmem:[%s411 + $0xd8] sm:$0xff]
                  %444 = vst [vmem:[%s412 + $0x78] sm:$0xff] %v443
                  %v445 = vld [vmem:[%s411 + $0xe0] sm:$0xff]
                  %446 = vst [vmem:[%s412 + $0x80] sm:$0xff] %v445
                  %v447 = vld [vmem:[%s411 + $0xe8] sm:$0xff]
                  %448 = vst [vmem:[%s412 + $0x88] sm:$0xff] %v447
                  %v449 = vld [vmem:[%s411 + $0xf0] sm:$0xff]
                  %450 = vst [vmem:[%s412 + $0x90] sm:$0xff] %v449
                  %v451 = vld [vmem:[%s411 + $0xf8] sm:$0xff]
                  %452 = vst [vmem:[%s412 + $0x98] sm:$0xff] %v451
                  %v453 = vld [vmem:[%s411 + $0x100] sm:$0xff]
                  %454 = vst [vmem:[%s412 + $0xa0] sm:$0xff] %v453
                  %v455 = vld [vmem:[%s411 + $0x108] sm:$0xff]
                  %456 = vst [vmem:[%s412 + $0xa8] sm:$0xff] %v455
                  %v457 = vld [vmem:[%s411 + $0x110] sm:$0xff]
                  %458 = vst [vmem:[%s412 + $0xb0] sm:$0xff] %v457
                  %v459 = vld [vmem:[%s411 + $0x118] sm:$0xff]
                  %460 = vst [vmem:[%s412 + $0xb8] sm:$0xff] %v459
                $region88: #{cnn_forward.1} parent=82 // loop_footer
                  %s410 = sadd.s32 1, %s406
                $region89: #{cnn_forward.1} parent=82 // loop_footer_branch
                  %405 = sbr.rel target = $region85
                $region90: #{cnn_forward.1} parent=82 // loop_exit
                  _
              $region83: #{cnn_forward.1} parent=67 // pred_fallthru
                _
              // Predicated region
              $region91: #{cnn_forward.1} parent=67 // pred_check
                _
              $region92: #{cnn_forward.1} parent=67 // pred_check_branch
                %462 = sbr.rel target = $region94
              $region93: #{cnn_forward.1} parent=67 // pred_region
                _
              $region94: #{cnn_forward.1} parent=67 // pred_fallthru
                _
            $region68: #{cnn_forward.1} parent=63 // pred_fallthru
              _
            // Predicated region
            $region69: #{cnn_forward.1} parent=63 // pred_check
              _
            $region70: #{cnn_forward.1} parent=63 // pred_check_branch
              %344 = sbr.rel target = $region72
            $region71: #{cnn_forward.1} parent=63 // pred_region
              %s346 = ssub.s32 256, 1
              loop: start=0, step=1, limit=1
              $region73: #{cnn_forward.1} parent=71 // loop_pre_header
                _
              $region74: #{cnn_forward.1} parent=71 // loop_header
                %s348 = sphi 0, %s352
                %p349 = scmp.ge.s32.totalorder %s348, 1
                %s353 = sphi %s338, %s338
                %s354 = sphi %s334, %s334
              $region75: #{cnn_forward.1} parent=71 // loop_header_branch
                %351 = sbr.rel (%p349) target = $region79
              $region76: #{cnn_forward.1} parent=71 // loop_body
                %v355 = vld [vmem:[%s353] sm:%s346]
                %356 = vst [vmem:[%s354] sm:%s346] %v355
                %v357 = vld [vmem:[%s353 + $0x8] sm:%s346]
                %358 = vst [vmem:[%s354 + $0x8] sm:%s346] %v357
                %v359 = vld [vmem:[%s353 + $0x10] sm:%s346]
                %360 = vst [vmem:[%s354 + $0x10] sm:%s346] %v359
                %v361 = vld [vmem:[%s353 + $0x18] sm:%s346]
                %362 = vst [vmem:[%s354 + $0x18] sm:%s346] %v361
                %v363 = vld [vmem:[%s353 + $0x20] sm:%s346]
                %364 = vst [vmem:[%s354 + $0x20] sm:%s346] %v363
                %v365 = vld [vmem:[%s353 + $0x28] sm:%s346]
                %366 = vst [vmem:[%s354 + $0x28] sm:%s346] %v365
                %v367 = vld [vmem:[%s353 + $0x30] sm:%s346]
                %368 = vst [vmem:[%s354 + $0x30] sm:%s346] %v367
                %v369 = vld [vmem:[%s353 + $0x38] sm:%s346]
                %370 = vst [vmem:[%s354 + $0x38] sm:%s346] %v369
                %v371 = vld [vmem:[%s353 + $0x40] sm:%s346]
                %372 = vst [vmem:[%s354 + $0x40] sm:%s346] %v371
                %v373 = vld [vmem:[%s353 + $0x48] sm:%s346]
                %374 = vst [vmem:[%s354 + $0x48] sm:%s346] %v373
                %v375 = vld [vmem:[%s353 + $0x50] sm:%s346]
                %376 = vst [vmem:[%s354 + $0x50] sm:%s346] %v375
                %v377 = vld [vmem:[%s353 + $0x58] sm:%s346]
                %378 = vst [vmem:[%s354 + $0x58] sm:%s346] %v377
                %v379 = vld [vmem:[%s353 + $0xc0] sm:%s346]
                %380 = vst [vmem:[%s354 + $0x60] sm:%s346] %v379
                %v381 = vld [vmem:[%s353 + $0xc8] sm:%s346]
                %382 = vst [vmem:[%s354 + $0x68] sm:%s346] %v381
                %v383 = vld [vmem:[%s353 + $0xd0] sm:%s346]
                %384 = vst [vmem:[%s354 + $0x70] sm:%s346] %v383
                %v385 = vld [vmem:[%s353 + $0xd8] sm:%s346]
                %386 = vst [vmem:[%s354 + $0x78] sm:%s346] %v385
                %v387 = vld [vmem:[%s353 + $0xe0] sm:%s346]
                %388 = vst [vmem:[%s354 + $0x80] sm:%s346] %v387
                %v389 = vld [vmem:[%s353 + $0xe8] sm:%s346]
                %390 = vst [vmem:[%s354 + $0x88] sm:%s346] %v389
                %v391 = vld [vmem:[%s353 + $0xf0] sm:%s346]
                %392 = vst [vmem:[%s354 + $0x90] sm:%s346] %v391
                %v393 = vld [vmem:[%s353 + $0xf8] sm:%s346]
                %394 = vst [vmem:[%s354 + $0x98] sm:%s346] %v393
                %v395 = vld [vmem:[%s353 + $0x100] sm:%s346]
                %396 = vst [vmem:[%s354 + $0xa0] sm:%s346] %v395
                %v397 = vld [vmem:[%s353 + $0x108] sm:%s346]
                %398 = vst [vmem:[%s354 + $0xa8] sm:%s346] %v397
                %v399 = vld [vmem:[%s353 + $0x110] sm:%s346]
                %400 = vst [vmem:[%s354 + $0xb0] sm:%s346] %v399
                %v401 = vld [vmem:[%s353 + $0x118] sm:%s346]
                %402 = vst [vmem:[%s354 + $0xb8] sm:%s346] %v401
              $region77: #{cnn_forward.1} parent=71 // loop_footer
                %s352 = sadd.s32 1, %s348
              $region78: #{cnn_forward.1} parent=71 // loop_footer_branch
                %347 = sbr.rel target = $region74
              $region79: #{cnn_forward.1} parent=71 // loop_exit
                _
            $region72: #{cnn_forward.1} parent=63 // pred_fallthru
              _
          $region64: #{cnn_forward.1} parent=59 // pred_fallthru
            _
          %463 = vnop
        $region60: #{cnn_forward.1} parent=55 // pred_fallthru
          _
      $region56: #{cnn_forward.1} parent=5 // pred_fallthru
        _
      %p464 = scmp.le.s32.totalorder 1, %s17
      %p465 = scmp.lt.s32.totalorder %s17, 3
      %p466 = pnand %p464, %p465
      %p467 = pneg %p466
      // Predicated region
      $region95: #{cnn_forward.1} parent=5 // pred_check
        _
      $region96: #{cnn_forward.1} parent=5 // pred_check_branch
        %469 = sbr.rel (%p466) target = $region98
      $region97: #{cnn_forward.1} parent=5 // pred_region
        %s470 = ssub.s32 %s17, 1
        %s471 = sand.u32 %s30, 1
        %s472 = sand.u32 %s30, 1
        %s473 = smul.addr %s472, 192
        %s474 = scalar_lea.vmem [#allocation2], %s473
        // Predicated region
        $region99: #{cnn_forward.1} parent=97 // pred_check
          %p475 = pneg %p43
        $region100: #{cnn_forward.1} parent=97 // pred_check_branch
          %477 = sbr.rel (%p475) target = $region102
        $region101: #{cnn_forward.1} parent=97 // pred_region
          _
        $region102: #{cnn_forward.1} parent=97 // pred_fallthru
          _
        %s478 = sand.u32 %s30, 1
        %s479 = sand.u32 %s30, 1
        %s480 = smul.addr %s479, 192
        %s481 = scalar_lea.vmem [#allocation2], %s480
        %p482 = pneg %p43
        %p483 = pneg %p40
        %p484 = pneg %p64
        %p485 = pneg %p61
        %p486 = pneg %p85
        %p487 = pneg %p82
        %p488 = pneg %p106
        %p489 = pneg %p103
        %p490 = pneg %p127
        %p491 = pneg %p124
        %p492 = pneg %p148
        %p493 = pneg %p145
        %p494 = pneg %p169
        %p495 = pneg %p166
        %p496 = pneg %p190
        %p497 = pneg %p187
        %p498 = pneg %p211
        %p499 = pneg %p208
        %p500 = pneg %p232
        %p501 = pneg %p229
        %p502 = pneg %p253
        %p503 = pneg %p250
        %p504 = pneg %p279
        %p505 = pneg %p276
        %p506 = scmp.lt.s32.totalorder %s22, 1
        %s507 = scalar_select %p506, %s22, 1
        %s508 = smul.addr %s507, 8
        %s509 = scalar_lea.vmem %s11, %s508
        %s510 = smul.u32 12, %s22
        %p511 = scmp.lt.s32.totalorder %s22, 1
        %s512 = scalar_select %p511, %s22, 1
        %s513 = smul.addr %s512, 8
        %s514 = scalar_lea.vmem %s11, %s513
        %v516 = vld [vmem:[%s474] sm:$0xff]
        %v517 = vld [vmem:[%s474 + $0x8] sm:$0xff]
        %v518 = vld [vmem:[%s474 + $0x10] sm:$0xff]
        %v519 = vld [vmem:[%s474 + $0x18] sm:$0xff]
        %v520 = vld [vmem:[%s474 + $0x20] sm:$0xff]
        %v521 = vld [vmem:[%s474 + $0x28] sm:$0xff]
        %v522 = vld [vmem:[%s474 + $0x30] sm:$0xff]
        %v523 = vld [vmem:[%s474 + $0x38] sm:$0xff]
        %v524 = vld [vmem:[%s474 + $0x40] sm:$0xff]
        %v525 = vld [vmem:[%s474 + $0x48] sm:$0xff]
        %v526 = vld [vmem:[%s474 + $0x50] sm:$0xff]
        %v527 = vld [vmem:[%s474 + $0x58] sm:$0xff]
        %v528 = vld [vmem:[%s474 + $0x60] sm:$0xff]
        %v529 = vld [vmem:[%s474 + $0x68] sm:$0xff]
        %v530 = vld [vmem:[%s474 + $0x70] sm:$0xff]
        %v531 = vld [vmem:[%s474 + $0x78] sm:$0xff]
        %v532 = vld [vmem:[%s474 + $0x80] sm:$0xff]
        %v533 = vld [vmem:[%s474 + $0x88] sm:$0xff]
        %v534 = vld [vmem:[%s474 + $0x90] sm:$0xff]
        %v535 = vld [vmem:[%s474 + $0x98] sm:$0xff]
        %v536 = vld [vmem:[%s474 + $0xa0] sm:$0xff]
        %v537 = vld [vmem:[%s474 + $0xa8] sm:$0xff]
        %v538 = vld [vmem:[%s474 + $0xb0] sm:$0xff]
        %v539 = vld [vmem:[%s474 + $0xb8] sm:$0xff]
        %v540 = vld [vmem:[%s1] sm:$0xff]
        %v541 = vld [vmem:[%s1 + $0x8] sm:$0xff]
        %v542 = vld [vmem:[%s1 + $0x10] sm:$0xff]
        %v543 = vld [vmem:[%s1 + $0x18] sm:$0xff]
        %v544 = vld [vmem:[%s1 + $0x20] sm:$0xff]
        %v545 = vld [vmem:[%s1 + $0x28] sm:$0xff]
        %v546 = vld [vmem:[%s1 + $0x30] sm:$0xff]
        %v547 = vld [vmem:[%s1 + $0x38] sm:$0xff]
        %v548 = vld [vmem:[%s1 + $0x40] sm:$0xff]
        %v549 = vld [vmem:[%s1 + $0x48] sm:$0xff]
        %v550 = vld [vmem:[%s1 + $0x50] sm:$0xff]
        %v551 = vld [vmem:[%s1 + $0x58] sm:$0xff]
        %v552 = vld [vmem:[%s1 + $0x60] sm:$0xff]
        %v553 = vld [vmem:[%s1 + $0x68] sm:$0xff]
        %v554 = vld [vmem:[%s1 + $0x70] sm:$0xff]
        %v555 = vld [vmem:[%s1 + $0x78] sm:$0xff]
        %v556 = vld [vmem:[%s1 + $0x80] sm:$0xff]
        %v557 = vld [vmem:[%s1 + $0x88] sm:$0xff]
        %v558 = vld [vmem:[%s1 + $0x90] sm:$0xff]
        %v559 = vld [vmem:[%s1 + $0x98] sm:$0xff]
        %v560 = vld [vmem:[%s1 + $0xa0] sm:$0xff]
        %v561 = vld [vmem:[%s1 + $0xa8] sm:$0xff]
        %v562 = vld [vmem:[%s1 + $0xb0] sm:$0xff]
        %v563 = vld [vmem:[%s1 + $0xb8] sm:$0xff]
        %v564 = vld [vmem:[%s1 + $0xc0] sm:$0xff]
        %v565 = vld [vmem:[%s1 + $0xc8] sm:$0xff]
        %v566 = vld [vmem:[%s1 + $0xd0] sm:$0xff]
        %v567 = vld [vmem:[%s1 + $0xd8] sm:$0xff]
        %v568 = vld [vmem:[%s1 + $0xe0] sm:$0xff]
        %v569 = vld [vmem:[%s1 + $0xe8] sm:$0xff]
        %v570 = vld [vmem:[%s1 + $0xf0] sm:$0xff]
        %v571 = vld [vmem:[%s1 + $0xf8] sm:$0xff]
        %v572 = vld [vmem:[%s1 + $0x100] sm:$0xff]
        %v573 = vld [vmem:[%s1 + $0x108] sm:$0xff]
        %v574 = vld [vmem:[%s1 + $0x110] sm:$0xff]
        %v575 = vld [vmem:[%s1 + $0x118] sm:$0xff]
        %v576 = vld [vmem:[%s1 + $0x120] sm:$0xff]
        %v577 = vld [vmem:[%s1 + $0x128] sm:$0xff]
        %v578 = vld [vmem:[%s1 + $0x130] sm:$0xff]
        %v579 = vld [vmem:[%s1 + $0x138] sm:$0xff]
        %v580 = vld [vmem:[%s1 + $0x140] sm:$0xff]
        %v581 = vld [vmem:[%s1 + $0x148] sm:$0xff]
        %v582 = vld [vmem:[%s1 + $0x150] sm:$0xff]
        %v583 = vld [vmem:[%s1 + $0x158] sm:$0xff]
        %v584 = vld [vmem:[%s1 + $0x160] sm:$0xff]
        %v585 = vld [vmem:[%s1 + $0x168] sm:$0xff]
        %v586 = vld [vmem:[%s1 + $0x170] sm:$0xff]
        %v587 = vld [vmem:[%s1 + $0x178] sm:$0xff]
        %v588 = vld [vmem:[%s1 + $0x180] sm:$0xff]
        %v589 = vld [vmem:[%s1 + $0x188] sm:$0xff]
        %v590 = vld [vmem:[%s1 + $0x190] sm:$0xff]
        %v591 = vld [vmem:[%s1 + $0x198] sm:$0xff]
        %v592 = vld [vmem:[%s1 + $0x1a0] sm:$0xff]
        %v593 = vld [vmem:[%s1 + $0x1a8] sm:$0xff]
        %v594 = vld [vmem:[%s1 + $0x1b0] sm:$0xff]
        %v595 = vld [vmem:[%s1 + $0x1b8] sm:$0xff]
        %v596 = vld [vmem:[%s1 + $0x1c0] sm:$0xff]
        %v597 = vld [vmem:[%s1 + $0x1c8] sm:$0xff]
        %v598 = vld [vmem:[%s1 + $0x1d0] sm:$0xff]
        %v599 = vld [vmem:[%s1 + $0x1d8] sm:$0xff]
        %v624 = vunpack.c.l.b16 %v516
        %v625 = vunpack.c.h.b16 %v516
        %v626 = vunpack.c.l.b16 %v517
        %v627 = vunpack.c.h.b16 %v517
        %v628 = vunpack.c.l.b16 %v518
        %v629 = vunpack.c.h.b16 %v518
        %v630 = vunpack.c.l.b16 %v519
        %v631 = vunpack.c.h.b16 %v519
        %v632 = vunpack.c.l.b16 %v520
        %v633 = vunpack.c.h.b16 %v520
        %v634 = vunpack.c.l.b16 %v521
        %v635 = vunpack.c.h.b16 %v521
        %v636 = vunpack.c.l.b16 %v522
        %v637 = vunpack.c.h.b16 %v522
        %v638 = vunpack.c.l.b16 %v523
        %v639 = vunpack.c.h.b16 %v523
        %v640 = vunpack.c.l.b16 %v524
        %v641 = vunpack.c.h.b16 %v524
        %v642 = vunpack.c.l.b16 %v525
        %v643 = vunpack.c.h.b16 %v525
        %v644 = vunpack.c.l.b16 %v526
        %v645 = vunpack.c.h.b16 %v526
        %v646 = vunpack.c.l.b16 %v527
        %v647 = vunpack.c.h.b16 %v527
        %v648 = vunpack.c.l.b16 %v528
        %v649 = vunpack.c.h.b16 %v528
        %v650 = vunpack.c.l.b16 %v529
        %v651 = vunpack.c.h.b16 %v529
        %v652 = vunpack.c.l.b16 %v530
        %v653 = vunpack.c.h.b16 %v530
        %v654 = vunpack.c.l.b16 %v531
        %v655 = vunpack.c.h.b16 %v531
        %v656 = vunpack.c.l.b16 %v532
        %v657 = vunpack.c.h.b16 %v532
        %v658 = vunpack.c.l.b16 %v533
        %v659 = vunpack.c.h.b16 %v533
        %v660 = vunpack.c.l.b16 %v534
        %v661 = vunpack.c.h.b16 %v534
        %v662 = vunpack.c.l.b16 %v535
        %v663 = vunpack.c.h.b16 %v535
        %v664 = vunpack.c.l.b16 %v536
        %v665 = vunpack.c.h.b16 %v536
        %v666 = vunpack.c.l.b16 %v537
        %v667 = vunpack.c.h.b16 %v537
        %v668 = vunpack.c.l.b16 %v538
        %v669 = vunpack.c.h.b16 %v538
        %v670 = vunpack.c.l.b16 %v539
        %v671 = vunpack.c.h.b16 %v539
        %v672 = vpack.c.b16 %v626, %v624
        %v673 = vpack.c.b16 %v627, %v625
        %v674 = vpack.c.b16 %v630, %v628
        %v675 = vpack.c.b16 %v631, %v629
        %v676 = vpack.c.b16 %v634, %v632
        %v677 = vpack.c.b16 %v635, %v633
        %v678 = vpack.c.b16 %v638, %v636
        %v679 = vpack.c.b16 %v639, %v637
        %v680 = vpack.c.b16 %v642, %v640
        %v681 = vpack.c.b16 %v643, %v641
        %v682 = vpack.c.b16 %v646, %v644
        %v683 = vpack.c.b16 %v647, %v645
        %v684 = vpack.c.b16 %v650, %v648
        %v685 = vpack.c.b16 %v651, %v649
        %v686 = vpack.c.b16 %v654, %v652
        %v687 = vpack.c.b16 %v655, %v653
        %v688 = vpack.c.b16 %v658, %v656
        %v689 = vpack.c.b16 %v659, %v657
        %v690 = vpack.c.b16 %v662, %v660
        %v691 = vpack.c.b16 %v663, %v661
        %v692 = vpack.c.b16 %v666, %v664
        %v693 = vpack.c.b16 %v667, %v665
        %v694 = vpack.c.b16 %v670, %v668
        %v695 = vpack.c.b16 %v671, %v669
        %v768 = vunpack.c.l.b16 %v540
        %v769 = vunpack.c.h.b16 %v540
        %v770 = vunpack.c.l.b16 %v541
        %v771 = vunpack.c.h.b16 %v541
        %v772 = vunpack.c.l.b16 %v542
        %v773 = vunpack.c.h.b16 %v542
        %v774 = vunpack.c.l.b16 %v543
        %v775 = vunpack.c.h.b16 %v543
        %v776 = vunpack.c.l.b16 %v544
        %v777 = vunpack.c.h.b16 %v544
        %v778 = vunpack.c.l.b16 %v545
        %v779 = vunpack.c.h.b16 %v545
        %v780 = vunpack.c.l.b16 %v546
        %v781 = vunpack.c.h.b16 %v546
        %v782 = vunpack.c.l.b16 %v547
        %v783 = vunpack.c.h.b16 %v547
        %v784 = vunpack.c.l.b16 %v548
        %v785 = vunpack.c.h.b16 %v548
        %v786 = vunpack.c.l.b16 %v549
        %v787 = vunpack.c.h.b16 %v549
        %v788 = vunpack.c.l.b16 %v550
        %v789 = vunpack.c.h.b16 %v550
        %v790 = vunpack.c.l.b16 %v551
        %v791 = vunpack.c.h.b16 %v551
        %v792 = vunpack.c.l.b16 %v552
        %v793 = vunpack.c.h.b16 %v552
        %v794 = vunpack.c.l.b16 %v553
        %v795 = vunpack.c.h.b16 %v553
        %v796 = vunpack.c.l.b16 %v554
        %v797 = vunpack.c.h.b16 %v554
        %v798 = vunpack.c.l.b16 %v555
        %v799 = vunpack.c.h.b16 %v555
        %v800 = vunpack.c.l.b16 %v556
        %v801 = vunpack.c.h.b16 %v556
        %v802 = vunpack.c.l.b16 %v557
        %v803 = vunpack.c.h.b16 %v557
        %v804 = vunpack.c.l.b16 %v558
        %v805 = vunpack.c.h.b16 %v558
        %v806 = vunpack.c.l.b16 %v559
        %v807 = vunpack.c.h.b16 %v559
        %v808 = vunpack.c.l.b16 %v560
        %v809 = vunpack.c.h.b16 %v560
        %v810 = vunpack.c.l.b16 %v561
        %v811 = vunpack.c.h.b16 %v561
        %v812 = vunpack.c.l.b16 %v562
        %v813 = vunpack.c.h.b16 %v562
        %v814 = vunpack.c.l.b16 %v563
        %v815 = vunpack.c.h.b16 %v563
        %v816 = vunpack.c.l.b16 %v564
        %v817 = vunpack.c.h.b16 %v564
        %v818 = vunpack.c.l.b16 %v565
        %v819 = vunpack.c.h.b16 %v565
        %v820 = vunpack.c.l.b16 %v566
        %v821 = vunpack.c.h.b16 %v566
        %v822 = vunpack.c.l.b16 %v567
        %v823 = vunpack.c.h.b16 %v567
        %v824 = vunpack.c.l.b16 %v568
        %v825 = vunpack.c.h.b16 %v568
        %v826 = vunpack.c.l.b16 %v569
        %v827 = vunpack.c.h.b16 %v569
        %v828 = vunpack.c.l.b16 %v570
        %v829 = vunpack.c.h.b16 %v570
        %v830 = vunpack.c.l.b16 %v571
        %v831 = vunpack.c.h.b16 %v571
        %v832 = vunpack.c.l.b16 %v572
        %v833 = vunpack.c.h.b16 %v572
        %v834 = vunpack.c.l.b16 %v573
        %v835 = vunpack.c.h.b16 %v573
        %v836 = vunpack.c.l.b16 %v574
        %v837 = vunpack.c.h.b16 %v574
        %v838 = vunpack.c.l.b16 %v575
        %v839 = vunpack.c.h.b16 %v575
        %v840 = vunpack.c.l.b16 %v576
        %v841 = vunpack.c.h.b16 %v576
        %v842 = vunpack.c.l.b16 %v577
        %v843 = vunpack.c.h.b16 %v577
        %v844 = vunpack.c.l.b16 %v578
        %v845 = vunpack.c.h.b16 %v578
        %v846 = vunpack.c.l.b16 %v579
        %v847 = vunpack.c.h.b16 %v579
        %v848 = vunpack.c.l.b16 %v580
        %v849 = vunpack.c.h.b16 %v580
        %v850 = vunpack.c.l.b16 %v581
        %v851 = vunpack.c.h.b16 %v581
        %v852 = vunpack.c.l.b16 %v582
        %v853 = vunpack.c.h.b16 %v582
        %v854 = vunpack.c.l.b16 %v583
        %v855 = vunpack.c.h.b16 %v583
        %v856 = vunpack.c.l.b16 %v584
        %v857 = vunpack.c.h.b16 %v584
        %v858 = vunpack.c.l.b16 %v585
        %v859 = vunpack.c.h.b16 %v585
        %v860 = vunpack.c.l.b16 %v586
        %v861 = vunpack.c.h.b16 %v586
        %v862 = vunpack.c.l.b16 %v587
        %v863 = vunpack.c.h.b16 %v587
        %v864 = vunpack.c.l.b16 %v588
        %v865 = vunpack.c.h.b16 %v588
        %v866 = vunpack.c.l.b16 %v589
        %v867 = vunpack.c.h.b16 %v589
        %v868 = vunpack.c.l.b16 %v590
        %v869 = vunpack.c.h.b16 %v590
        %v870 = vunpack.c.l.b16 %v591
        %v871 = vunpack.c.h.b16 %v591
        %v872 = vunpack.c.l.b16 %v592
        %v873 = vunpack.c.h.b16 %v592
        %v874 = vunpack.c.l.b16 %v593
        %v875 = vunpack.c.h.b16 %v593
        %v876 = vunpack.c.l.b16 %v594
        %v877 = vunpack.c.h.b16 %v594
        %v878 = vunpack.c.l.b16 %v595
        %v879 = vunpack.c.h.b16 %v595
        %v880 = vunpack.c.l.b16 %v596
        %v881 = vunpack.c.h.b16 %v596
        %v882 = vunpack.c.l.b16 %v597
        %v883 = vunpack.c.h.b16 %v597
        %v884 = vunpack.c.l.b16 %v598
        %v885 = vunpack.c.h.b16 %v598
        %v886 = vunpack.c.l.b16 %v599
        %v887 = vunpack.c.h.b16 %v599
        %v888 = vpack.c.b16 %v774, %v768
        %v889 = vpack.c.b16 %v775, %v769
        %v890 = vpack.c.b16 %v776, %v770
        %v891 = vpack.c.b16 %v777, %v771
        %v892 = vpack.c.b16 %v778, %v772
        %v893 = vpack.c.b16 %v779, %v773
        %v894 = vpack.c.b16 %v786, %v780
        %v895 = vpack.c.b16 %v787, %v781
        %v896 = vpack.c.b16 %v788, %v782
        %v897 = vpack.c.b16 %v789, %v783
        %v898 = vpack.c.b16 %v790, %v784
        %v899 = vpack.c.b16 %v791, %v785
        %v900 = vpack.c.b16 %v798, %v792
        %v901 = vpack.c.b16 %v799, %v793
        %v902 = vpack.c.b16 %v800, %v794
        %v903 = vpack.c.b16 %v801, %v795
        %v904 = vpack.c.b16 %v802, %v796
        %v905 = vpack.c.b16 %v803, %v797
        %v906 = vpack.c.b16 %v810, %v804
        %v907 = vpack.c.b16 %v811, %v805
        %v908 = vpack.c.b16 %v812, %v806
        %v909 = vpack.c.b16 %v813, %v807
        %v910 = vpack.c.b16 %v814, %v808
        %v911 = vpack.c.b16 %v815, %v809
        %v912 = vpack.c.b16 %v822, %v816
        %v913 = vpack.c.b16 %v823, %v817
        %v914 = vpack.c.b16 %v824, %v818
        %v915 = vpack.c.b16 %v825, %v819
        %v916 = vpack.c.b16 %v826, %v820
        %v917 = vpack.c.b16 %v827, %v821
        %v918 = vpack.c.b16 %v834, %v828
        %v919 = vpack.c.b16 %v835, %v829
        %v920 = vpack.c.b16 %v836, %v830
        %v921 = vpack.c.b16 %v837, %v831
        %v922 = vpack.c.b16 %v838, %v832
        %v923 = vpack.c.b16 %v839, %v833
        %v924 = vpack.c.b16 %v846, %v840
        %v925 = vpack.c.b16 %v847, %v841
        %v926 = vpack.c.b16 %v848, %v842
        %v927 = vpack.c.b16 %v849, %v843
        %v928 = vpack.c.b16 %v850, %v844
        %v929 = vpack.c.b16 %v851, %v845
        %v930 = vpack.c.b16 %v858, %v852
        %v931 = vpack.c.b16 %v859, %v853
        %v932 = vpack.c.b16 %v860, %v854
        %v933 = vpack.c.b16 %v861, %v855
        %v934 = vpack.c.b16 %v862, %v856
        %v935 = vpack.c.b16 %v863, %v857
        %v936 = vpack.c.b16 %v870, %v864
        %v937 = vpack.c.b16 %v871, %v865
        %v938 = vpack.c.b16 %v872, %v866
        %v939 = vpack.c.b16 %v873, %v867
        %v940 = vpack.c.b16 %v874, %v868
        %v941 = vpack.c.b16 %v875, %v869
        %v942 = vpack.c.b16 %v882, %v876
        %v943 = vpack.c.b16 %v883, %v877
        %v944 = vpack.c.b16 %v884, %v878
        %v945 = vpack.c.b16 %v885, %v879
        %v946 = vpack.c.b16 %v886, %v880
        %v947 = vpack.c.b16 %v887, %v881
        %vm1008 = vcmask 261120
        %v1010 = vsel %vm1008, %v673, 0
        %v1013 = vsel %vm1008, %v675, 0
        %v1016 = vsel %vm1008, %v677, 0
        %v1019 = vsel %vm1008, %v679, 0
        %v1022 = vsel %vm1008, %v681, 0
        %v1025 = vsel %vm1008, %v683, 0
        %v1028 = vsel %vm1008, %v685, 0
        %v1031 = vsel %vm1008, %v687, 0
        %v1034 = vsel %vm1008, %v689, 0
        %v1037 = vsel %vm1008, %v691, 0
        %v1040 = vsel %vm1008, %v693, 0
        %v1043 = vsel %vm1008, %v695, 0
        %1045 = vmatpush.bf16.msra.mxu0 %v930
        %1046 = vmatpush.bf16.msra.mxu0 %v924
        %1047 = vmatpush.bf16.msra.mxu0 %v918
        %1048 = vmatpush.bf16.msra.mxu0 %v912
        %1049 = vmatpush.bf16.msra.mxu0 %v906
        %1050 = vmatpush.bf16.msra.mxu0 %v900
        %1051 = vmatpush.bf16.msra.mxu0 %v894
        %1052 = vmatpush.bf16.msra.mxu0 %v888
        %1053 = vmatmul.bf16.gmra.mxu0 %v672
        %v1054 = vpop.f32.mrf.mxu0
        %v1055 = vadd.f32 0.0, %v1054
        %v1056 = vpop.f32.mrf.mxu0
        %v1057 = vadd.f32 0.0, %v1056
        %1058 = vmatmul.bf16.gmra.mxu0 %v674
        %v1059 = vpop.f32.mrf.mxu0
        %v1060 = vadd.f32 0.0, %v1059
        %v1061 = vpop.f32.mrf.mxu0
        %v1062 = vadd.f32 0.0, %v1061
        %1063 = vmatmul.bf16.gmra.mxu0 %v676
        %v1064 = vpop.f32.mrf.mxu0
        %v1065 = vadd.f32 0.0, %v1064
        %v1066 = vpop.f32.mrf.mxu0
        %v1067 = vadd.f32 0.0, %v1066
        %1068 = vmatmul.bf16.gmra.mxu0 %v678
        %v1069 = vpop.f32.mrf.mxu0
        %v1070 = vadd.f32 0.0, %v1069
        %v1071 = vpop.f32.mrf.mxu0
        %v1072 = vadd.f32 0.0, %v1071
        %1073 = vmatmul.bf16.gmra.mxu0 %v680
        %v1074 = vpop.f32.mrf.mxu0
        %v1075 = vadd.f32 0.0, %v1074
        %v1076 = vpop.f32.mrf.mxu0
        %v1077 = vadd.f32 0.0, %v1076
        %1078 = vmatmul.bf16.gmra.mxu0 %v682
        %v1079 = vpop.f32.mrf.mxu0
        %v1080 = vadd.f32 0.0, %v1079
        %v1081 = vpop.f32.mrf.mxu0
        %v1082 = vadd.f32 0.0, %v1081
        %1083 = vmatmul.bf16.gmra.mxu0 %v684
        %v1084 = vpop.f32.mrf.mxu0
        %v1085 = vadd.f32 0.0, %v1084
        %v1086 = vpop.f32.mrf.mxu0
        %v1087 = vadd.f32 0.0, %v1086
        %1088 = vmatmul.bf16.gmra.mxu0 %v686
        %v1089 = vpop.f32.mrf.mxu0
        %v1090 = vadd.f32 0.0, %v1089
        %v1091 = vpop.f32.mrf.mxu0
        %v1092 = vadd.f32 0.0, %v1091
        %1093 = vmatmul.bf16.gmra.mxu0 %v688
        %v1094 = vpop.f32.mrf.mxu0
        %v1095 = vadd.f32 0.0, %v1094
        %v1096 = vpop.f32.mrf.mxu0
        %v1097 = vadd.f32 0.0, %v1096
        %1098 = vmatmul.bf16.gmra.mxu0 %v690
        %v1099 = vpop.f32.mrf.mxu0
        %v1100 = vadd.f32 0.0, %v1099
        %v1101 = vpop.f32.mrf.mxu0
        %v1102 = vadd.f32 0.0, %v1101
        %1103 = vmatmul.bf16.gmra.mxu0 %v692
        %v1104 = vpop.f32.mrf.mxu0
        %v1105 = vadd.f32 0.0, %v1104
        %v1106 = vpop.f32.mrf.mxu0
        %v1107 = vadd.f32 0.0, %v1106
        %1108 = vmatmul.bf16.gmra.mxu0 %v694
        %v1109 = vpop.f32.mrf.mxu0
        %v1110 = vadd.f32 0.0, %v1109
        %v1111 = vpop.f32.mrf.mxu0
        %v1112 = vadd.f32 0.0, %v1111
        %1113 = vdwg.mxu0
        %1114 = vmatpush.bf16.msra.mxu0 0
        %1115 = vmatpush.bf16.msra.mxu0 0
        %1116 = vmatpush.bf16.msra.mxu0 0
        %1117 = vmatpush.bf16.msra.mxu0 0
        %1118 = vmatpush.bf16.msra.mxu0 0
        %1119 = vmatpush.bf16.msra.mxu0 0
        %1120 = vmatpush.bf16.msra.mxu0 %v942
        %1121 = vmatpush.bf16.msra.mxu0 %v936
        %1122 = vmatmul.bf16.gmra.mxu0 %v1010
        %v1123 = vpop.f32.mrf.mxu0
        %v1124 = vadd.f32 %v1055, %v1123
        %v1125 = vpop.f32.mrf.mxu0
        %v1126 = vadd.f32 %v1057, %v1125
        %1127 = vmatmul.bf16.gmra.mxu0 %v1013
        %v1128 = vpop.f32.mrf.mxu0
        %v1129 = vadd.f32 %v1060, %v1128
        %v1130 = vpop.f32.mrf.mxu0
        %v1131 = vadd.f32 %v1062, %v1130
        %1132 = vmatmul.bf16.gmra.mxu0 %v1016
        %v1133 = vpop.f32.mrf.mxu0
        %v1134 = vadd.f32 %v1065, %v1133
        %v1135 = vpop.f32.mrf.mxu0
        %v1136 = vadd.f32 %v1067, %v1135
        %1137 = vmatmul.bf16.gmra.mxu0 %v1019
        %v1138 = vpop.f32.mrf.mxu0
        %v1139 = vadd.f32 %v1070, %v1138
        %v1140 = vpop.f32.mrf.mxu0
        %v1141 = vadd.f32 %v1072, %v1140
        %1142 = vmatmul.bf16.gmra.mxu0 %v1022
        %v1143 = vpop.f32.mrf.mxu0
        %v1144 = vadd.f32 %v1075, %v1143
        %v1145 = vpop.f32.mrf.mxu0
        %v1146 = vadd.f32 %v1077, %v1145
        %1147 = vmatmul.bf16.gmra.mxu0 %v1025
        %v1148 = vpop.f32.mrf.mxu0
        %v1149 = vadd.f32 %v1080, %v1148
        %v1150 = vpop.f32.mrf.mxu0
        %v1151 = vadd.f32 %v1082, %v1150
        %1152 = vmatmul.bf16.gmra.mxu0 %v1028
        %v1153 = vpop.f32.mrf.mxu0
        %v1154 = vadd.f32 %v1085, %v1153
        %v1155 = vpop.f32.mrf.mxu0
        %v1156 = vadd.f32 %v1087, %v1155
        %1157 = vmatmul.bf16.gmra.mxu0 %v1031
        %v1158 = vpop.f32.mrf.mxu0
        %v1159 = vadd.f32 %v1090, %v1158
        %v1160 = vpop.f32.mrf.mxu0
        %v1161 = vadd.f32 %v1092, %v1160
        %1162 = vmatmul.bf16.gmra.mxu0 %v1034
        %v1163 = vpop.f32.mrf.mxu0
        %v1164 = vadd.f32 %v1095, %v1163
        %v1165 = vpop.f32.mrf.mxu0
        %v1166 = vadd.f32 %v1097, %v1165
        %1167 = vmatmul.bf16.gmra.mxu0 %v1037
        %v1168 = vpop.f32.mrf.mxu0
        %v1169 = vadd.f32 %v1100, %v1168
        %v1170 = vpop.f32.mrf.mxu0
        %v1171 = vadd.f32 %v1102, %v1170
        %1172 = vmatmul.bf16.gmra.mxu0 %v1040
        %v1173 = vpop.f32.mrf.mxu0
        %v1174 = vadd.f32 %v1105, %v1173
        %v1175 = vpop.f32.mrf.mxu0
        %v1176 = vadd.f32 %v1107, %v1175
        %1177 = vmatmul.bf16.gmra.mxu0 %v1043
        %v1178 = vpop.f32.mrf.mxu0
        %v1179 = vadd.f32 %v1110, %v1178
        %v1180 = vpop.f32.mrf.mxu0
        %v1181 = vadd.f32 %v1112, %v1180
        %1182 = vdwg.mxu0
        %1183 = vmatpush.bf16.msra.mxu0 %v931
        %1184 = vmatpush.bf16.msra.mxu0 %v925
        %1185 = vmatpush.bf16.msra.mxu0 %v919
        %1186 = vmatpush.bf16.msra.mxu0 %v913
        %1187 = vmatpush.bf16.msra.mxu0 %v907
        %1188 = vmatpush.bf16.msra.mxu0 %v901
        %1189 = vmatpush.bf16.msra.mxu0 %v895
        %1190 = vmatpush.bf16.msra.mxu0 %v889
        %1191 = vmatmul.bf16.gmra.mxu0 %v672
        %v1192 = vpop.f32.mrf.mxu0
        %v1193 = vadd.f32 0.0, %v1192
        %v1194 = vpop.f32.mrf.mxu0
        %v1195 = vadd.f32 0.0, %v1194
        %1196 = vmatmul.bf16.gmra.mxu0 %v674
        %v1197 = vpop.f32.mrf.mxu0
        %v1198 = vadd.f32 0.0, %v1197
        %v1199 = vpop.f32.mrf.mxu0
        %v1200 = vadd.f32 0.0, %v1199
        %1201 = vmatmul.bf16.gmra.mxu0 %v676
        %v1202 = vpop.f32.mrf.mxu0
        %v1203 = vadd.f32 0.0, %v1202
        %v1204 = vpop.f32.mrf.mxu0
        %v1205 = vadd.f32 0.0, %v1204
        %1206 = vmatmul.bf16.gmra.mxu0 %v678
        %v1207 = vpop.f32.mrf.mxu0
        %v1208 = vadd.f32 0.0, %v1207
        %v1209 = vpop.f32.mrf.mxu0
        %v1210 = vadd.f32 0.0, %v1209
        %1211 = vmatmul.bf16.gmra.mxu0 %v680
        %v1212 = vpop.f32.mrf.mxu0
        %v1213 = vadd.f32 0.0, %v1212
        %v1214 = vpop.f32.mrf.mxu0
        %v1215 = vadd.f32 0.0, %v1214
        %1216 = vmatmul.bf16.gmra.mxu0 %v682
        %v1217 = vpop.f32.mrf.mxu0
        %v1218 = vadd.f32 0.0, %v1217
        %v1219 = vpop.f32.mrf.mxu0
        %v1220 = vadd.f32 0.0, %v1219
        %1221 = vmatmul.bf16.gmra.mxu0 %v684
        %v1222 = vpop.f32.mrf.mxu0
        %v1223 = vadd.f32 0.0, %v1222
        %v1224 = vpop.f32.mrf.mxu0
        %v1225 = vadd.f32 0.0, %v1224
        %1226 = vmatmul.bf16.gmra.mxu0 %v686
        %v1227 = vpop.f32.mrf.mxu0
        %v1228 = vadd.f32 0.0, %v1227
        %v1229 = vpop.f32.mrf.mxu0
        %v1230 = vadd.f32 0.0, %v1229
        %1231 = vmatmul.bf16.gmra.mxu0 %v688
        %v1232 = vpop.f32.mrf.mxu0
        %v1233 = vadd.f32 0.0, %v1232
        %v1234 = vpop.f32.mrf.mxu0
        %v1235 = vadd.f32 0.0, %v1234
        %1236 = vmatmul.bf16.gmra.mxu0 %v690
        %v1237 = vpop.f32.mrf.mxu0
        %v1238 = vadd.f32 0.0, %v1237
        %v1239 = vpop.f32.mrf.mxu0
        %v1240 = vadd.f32 0.0, %v1239
        %1241 = vmatmul.bf16.gmra.mxu0 %v692
        %v1242 = vpop.f32.mrf.mxu0
        %v1243 = vadd.f32 0.0, %v1242
        %v1244 = vpop.f32.mrf.mxu0
        %v1245 = vadd.f32 0.0, %v1244
        %1246 = vmatmul.bf16.gmra.mxu0 %v694
        %v1247 = vpop.f32.mrf.mxu0
        %v1248 = vadd.f32 0.0, %v1247
        %v1249 = vpop.f32.mrf.mxu0
        %v1250 = vadd.f32 0.0, %v1249
        %1251 = vdwg.mxu0
        %1252 = vmatpush.bf16.msra.mxu0 0
        %1253 = vmatpush.bf16.msra.mxu0 0
        %1254 = vmatpush.bf16.msra.mxu0 0
        %1255 = vmatpush.bf16.msra.mxu0 0
        %1256 = vmatpush.bf16.msra.mxu0 0
        %1257 = vmatpush.bf16.msra.mxu0 0
        %1258 = vmatpush.bf16.msra.mxu0 %v943
        %1259 = vmatpush.bf16.msra.mxu0 %v937
        %1260 = vmatmul.bf16.gmra.mxu0 %v1010
        %v1261 = vpop.f32.mrf.mxu0
        %v1262 = vadd.f32 %v1193, %v1261
        %v1263 = vpop.f32.mrf.mxu0
        %v1264 = vadd.f32 %v1195, %v1263
        %1265 = vmatmul.bf16.gmra.mxu0 %v1013
        %v1266 = vpop.f32.mrf.mxu0
        %v1267 = vadd.f32 %v1198, %v1266
        %v1268 = vpop.f32.mrf.mxu0
        %v1269 = vadd.f32 %v1200, %v1268
        %1270 = vmatmul.bf16.gmra.mxu0 %v1016
        %v1271 = vpop.f32.mrf.mxu0
        %v1272 = vadd.f32 %v1203, %v1271
        %v1273 = vpop.f32.mrf.mxu0
        %v1274 = vadd.f32 %v1205, %v1273
        %1275 = vmatmul.bf16.gmra.mxu0 %v1019
        %v1276 = vpop.f32.mrf.mxu0
        %v1277 = vadd.f32 %v1208, %v1276
        %v1278 = vpop.f32.mrf.mxu0
        %v1279 = vadd.f32 %v1210, %v1278
        %1280 = vmatmul.bf16.gmra.mxu0 %v1022
        %v1281 = vpop.f32.mrf.mxu0
        %v1282 = vadd.f32 %v1213, %v1281
        %v1283 = vpop.f32.mrf.mxu0
        %v1284 = vadd.f32 %v1215, %v1283
        %1285 = vmatmul.bf16.gmra.mxu0 %v1025
        %v1286 = vpop.f32.mrf.mxu0
        %v1287 = vadd.f32 %v1218, %v1286
        %v1288 = vpop.f32.mrf.mxu0
        %v1289 = vadd.f32 %v1220, %v1288
        %1290 = vmatmul.bf16.gmra.mxu0 %v1028
        %v1291 = vpop.f32.mrf.mxu0
        %v1292 = vadd.f32 %v1223, %v1291
        %v1293 = vpop.f32.mrf.mxu0
        %v1294 = vadd.f32 %v1225, %v1293
        %1295 = vmatmul.bf16.gmra.mxu0 %v1031
        %v1296 = vpop.f32.mrf.mxu0
        %v1297 = vadd.f32 %v1228, %v1296
        %v1298 = vpop.f32.mrf.mxu0
        %v1299 = vadd.f32 %v1230, %v1298
        %1300 = vmatmul.bf16.gmra.mxu0 %v1034
        %v1301 = vpop.f32.mrf.mxu0
        %v1302 = vadd.f32 %v1233, %v1301
        %v1303 = vpop.f32.mrf.mxu0
        %v1304 = vadd.f32 %v1235, %v1303
        %1305 = vmatmul.bf16.gmra.mxu0 %v1037
        %v1306 = vpop.f32.mrf.mxu0
        %v1307 = vadd.f32 %v1238, %v1306
        %v1308 = vpop.f32.mrf.mxu0
        %v1309 = vadd.f32 %v1240, %v1308
        %1310 = vmatmul.bf16.gmra.mxu0 %v1040
        %v1311 = vpop.f32.mrf.mxu0
        %v1312 = vadd.f32 %v1243, %v1311
        %v1313 = vpop.f32.mrf.mxu0
        %v1314 = vadd.f32 %v1245, %v1313
        %1315 = vmatmul.bf16.gmra.mxu0 %v1043
        %v1316 = vpop.f32.mrf.mxu0
        %v1317 = vadd.f32 %v1248, %v1316
        %v1318 = vpop.f32.mrf.mxu0
        %v1319 = vadd.f32 %v1250, %v1318
        %1320 = vdwg.mxu0
        %1321 = vmatpush.bf16.msra.mxu0 %v932
        %1322 = vmatpush.bf16.msra.mxu0 %v926
        %1323 = vmatpush.bf16.msra.mxu0 %v920
        %1324 = vmatpush.bf16.msra.mxu0 %v914
        %1325 = vmatpush.bf16.msra.mxu0 %v908
        %1326 = vmatpush.bf16.msra.mxu0 %v902
        %1327 = vmatpush.bf16.msra.mxu0 %v896
        %1328 = vmatpush.bf16.msra.mxu0 %v890
        %1329 = vmatmul.bf16.gmra.mxu0 %v672
        %v1330 = vpop.f32.mrf.mxu0
        %v1331 = vadd.f32 0.0, %v1330
        %v1332 = vpop.f32.mrf.mxu0
        %v1333 = vadd.f32 0.0, %v1332
        %1334 = vmatmul.bf16.gmra.mxu0 %v674
        %v1335 = vpop.f32.mrf.mxu0
        %v1336 = vadd.f32 0.0, %v1335
        %v1337 = vpop.f32.mrf.mxu0
        %v1338 = vadd.f32 0.0, %v1337
        %1339 = vmatmul.bf16.gmra.mxu0 %v676
        %v1340 = vpop.f32.mrf.mxu0
        %v1341 = vadd.f32 0.0, %v1340
        %v1342 = vpop.f32.mrf.mxu0
        %v1343 = vadd.f32 0.0, %v1342
        %1344 = vmatmul.bf16.gmra.mxu0 %v678
        %v1345 = vpop.f32.mrf.mxu0
        %v1346 = vadd.f32 0.0, %v1345
        %v1347 = vpop.f32.mrf.mxu0
        %v1348 = vadd.f32 0.0, %v1347
        %1349 = vmatmul.bf16.gmra.mxu0 %v680
        %v1350 = vpop.f32.mrf.mxu0
        %v1351 = vadd.f32 0.0, %v1350
        %v1352 = vpop.f32.mrf.mxu0
        %v1353 = vadd.f32 0.0, %v1352
        %1354 = vmatmul.bf16.gmra.mxu0 %v682
        %v1355 = vpop.f32.mrf.mxu0
        %v1356 = vadd.f32 0.0, %v1355
        %v1357 = vpop.f32.mrf.mxu0
        %v1358 = vadd.f32 0.0, %v1357
        %1359 = vmatmul.bf16.gmra.mxu0 %v684
        %v1360 = vpop.f32.mrf.mxu0
        %v1361 = vadd.f32 0.0, %v1360
        %v1362 = vpop.f32.mrf.mxu0
        %v1363 = vadd.f32 0.0, %v1362
        %1364 = vmatmul.bf16.gmra.mxu0 %v686
        %v1365 = vpop.f32.mrf.mxu0
        %v1366 = vadd.f32 0.0, %v1365
        %v1367 = vpop.f32.mrf.mxu0
        %v1368 = vadd.f32 0.0, %v1367
        %1369 = vmatmul.bf16.gmra.mxu0 %v688
        %v1370 = vpop.f32.mrf.mxu0
        %v1371 = vadd.f32 0.0, %v1370
        %v1372 = vpop.f32.mrf.mxu0
        %v1373 = vadd.f32 0.0, %v1372
        %1374 = vmatmul.bf16.gmra.mxu0 %v690
        %v1375 = vpop.f32.mrf.mxu0
        %v1376 = vadd.f32 0.0, %v1375
        %v1377 = vpop.f32.mrf.mxu0
        %v1378 = vadd.f32 0.0, %v1377
        %1379 = vmatmul.bf16.gmra.mxu0 %v692
        %v1380 = vpop.f32.mrf.mxu0
        %v1381 = vadd.f32 0.0, %v1380
        %v1382 = vpop.f32.mrf.mxu0
        %v1383 = vadd.f32 0.0, %v1382
        %1384 = vmatmul.bf16.gmra.mxu0 %v694
        %v1385 = vpop.f32.mrf.mxu0
        %v1386 = vadd.f32 0.0, %v1385
        %v1387 = vpop.f32.mrf.mxu0
        %v1388 = vadd.f32 0.0, %v1387
        %1389 = vdwg.mxu0
        %1390 = vmatpush.bf16.msra.mxu0 0
        %1391 = vmatpush.bf16.msra.mxu0 0
        %1392 = vmatpush.bf16.msra.mxu0 0
        %1393 = vmatpush.bf16.msra.mxu0 0
        %1394 = vmatpush.bf16.msra.mxu0 0
        %1395 = vmatpush.bf16.msra.mxu0 0
        %1396 = vmatpush.bf16.msra.mxu0 %v944
        %1397 = vmatpush.bf16.msra.mxu0 %v938
        %1398 = vmatmul.bf16.gmra.mxu0 %v1010
        %v1399 = vpop.f32.mrf.mxu0
        %v1400 = vadd.f32 %v1331, %v1399
        %v1401 = vpop.f32.mrf.mxu0
        %v1402 = vadd.f32 %v1333, %v1401
        %1403 = vmatmul.bf16.gmra.mxu0 %v1013
        %v1404 = vpop.f32.mrf.mxu0
        %v1405 = vadd.f32 %v1336, %v1404
        %v1406 = vpop.f32.mrf.mxu0
        %v1407 = vadd.f32 %v1338, %v1406
        %1408 = vmatmul.bf16.gmra.mxu0 %v1016
        %v1409 = vpop.f32.mrf.mxu0
        %v1410 = vadd.f32 %v1341, %v1409
        %v1411 = vpop.f32.mrf.mxu0
        %v1412 = vadd.f32 %v1343, %v1411
        %1413 = vmatmul.bf16.gmra.mxu0 %v1019
        %v1414 = vpop.f32.mrf.mxu0
        %v1415 = vadd.f32 %v1346, %v1414
        %v1416 = vpop.f32.mrf.mxu0
        %v1417 = vadd.f32 %v1348, %v1416
        %1418 = vmatmul.bf16.gmra.mxu0 %v1022
        %v1419 = vpop.f32.mrf.mxu0
        %v1420 = vadd.f32 %v1351, %v1419
        %v1421 = vpop.f32.mrf.mxu0
        %v1422 = vadd.f32 %v1353, %v1421
        %1423 = vmatmul.bf16.gmra.mxu0 %v1025
        %v1424 = vpop.f32.mrf.mxu0
        %v1425 = vadd.f32 %v1356, %v1424
        %v1426 = vpop.f32.mrf.mxu0
        %v1427 = vadd.f32 %v1358, %v1426
        %1428 = vmatmul.bf16.gmra.mxu0 %v1028
        %v1429 = vpop.f32.mrf.mxu0
        %v1430 = vadd.f32 %v1361, %v1429
        %v1431 = vpop.f32.mrf.mxu0
        %v1432 = vadd.f32 %v1363, %v1431
        %1433 = vmatmul.bf16.gmra.mxu0 %v1031
        %v1434 = vpop.f32.mrf.mxu0
        %v1435 = vadd.f32 %v1366, %v1434
        %v1436 = vpop.f32.mrf.mxu0
        %v1437 = vadd.f32 %v1368, %v1436
        %1438 = vmatmul.bf16.gmra.mxu0 %v1034
        %v1439 = vpop.f32.mrf.mxu0
        %v1440 = vadd.f32 %v1371, %v1439
        %v1441 = vpop.f32.mrf.mxu0
        %v1442 = vadd.f32 %v1373, %v1441
        %1443 = vmatmul.bf16.gmra.mxu0 %v1037
        %v1444 = vpop.f32.mrf.mxu0
        %v1445 = vadd.f32 %v1376, %v1444
        %v1446 = vpop.f32.mrf.mxu0
        %v1447 = vadd.f32 %v1378, %v1446
        %1448 = vmatmul.bf16.gmra.mxu0 %v1040
        %v1449 = vpop.f32.mrf.mxu0
        %v1450 = vadd.f32 %v1381, %v1449
        %v1451 = vpop.f32.mrf.mxu0
        %v1452 = vadd.f32 %v1383, %v1451
        %1453 = vmatmul.bf16.gmra.mxu0 %v1043
        %v1454 = vpop.f32.mrf.mxu0
        %v1455 = vadd.f32 %v1386, %v1454
        %v1456 = vpop.f32.mrf.mxu0
        %v1457 = vadd.f32 %v1388, %v1456
        %1458 = vdwg.mxu0
        %1459 = vmatpush.bf16.msra.mxu0 %v933
        %1460 = vmatpush.bf16.msra.mxu0 %v927
        %1461 = vmatpush.bf16.msra.mxu0 %v921
        %1462 = vmatpush.bf16.msra.mxu0 %v915
        %1463 = vmatpush.bf16.msra.mxu0 %v909
        %1464 = vmatpush.bf16.msra.mxu0 %v903
        %1465 = vmatpush.bf16.msra.mxu0 %v897
        %1466 = vmatpush.bf16.msra.mxu0 %v891
        %1467 = vmatmul.bf16.gmra.mxu0 %v672
        %v1468 = vpop.f32.mrf.mxu0
        %v1469 = vadd.f32 0.0, %v1468
        %v1470 = vpop.f32.mrf.mxu0
        %v1471 = vadd.f32 0.0, %v1470
        %1472 = vmatmul.bf16.gmra.mxu0 %v674
        %v1473 = vpop.f32.mrf.mxu0
        %v1474 = vadd.f32 0.0, %v1473
        %v1475 = vpop.f32.mrf.mxu0
        %v1476 = vadd.f32 0.0, %v1475
        %1477 = vmatmul.bf16.gmra.mxu0 %v676
        %v1478 = vpop.f32.mrf.mxu0
        %v1479 = vadd.f32 0.0, %v1478
        %v1480 = vpop.f32.mrf.mxu0
        %v1481 = vadd.f32 0.0, %v1480
        %1482 = vmatmul.bf16.gmra.mxu0 %v678
        %v1483 = vpop.f32.mrf.mxu0
        %v1484 = vadd.f32 0.0, %v1483
        %v1485 = vpop.f32.mrf.mxu0
        %v1486 = vadd.f32 0.0, %v1485
        %1487 = vmatmul.bf16.gmra.mxu0 %v680
        %v1488 = vpop.f32.mrf.mxu0
        %v1489 = vadd.f32 0.0, %v1488
        %v1490 = vpop.f32.mrf.mxu0
        %v1491 = vadd.f32 0.0, %v1490
        %1492 = vmatmul.bf16.gmra.mxu0 %v682
        %v1493 = vpop.f32.mrf.mxu0
        %v1494 = vadd.f32 0.0, %v1493
        %v1495 = vpop.f32.mrf.mxu0
        %v1496 = vadd.f32 0.0, %v1495
        %1497 = vmatmul.bf16.gmra.mxu0 %v684
        %v1498 = vpop.f32.mrf.mxu0
        %v1499 = vadd.f32 0.0, %v1498
        %v1500 = vpop.f32.mrf.mxu0
        %v1501 = vadd.f32 0.0, %v1500
        %1502 = vmatmul.bf16.gmra.mxu0 %v686
        %v1503 = vpop.f32.mrf.mxu0
        %v1504 = vadd.f32 0.0, %v1503
        %v1505 = vpop.f32.mrf.mxu0
        %v1506 = vadd.f32 0.0, %v1505
        %1507 = vmatmul.bf16.gmra.mxu0 %v688
        %v1508 = vpop.f32.mrf.mxu0
        %v1509 = vadd.f32 0.0, %v1508
        %v1510 = vpop.f32.mrf.mxu0
        %v1511 = vadd.f32 0.0, %v1510
        %1512 = vmatmul.bf16.gmra.mxu0 %v690
        %v1513 = vpop.f32.mrf.mxu0
        %v1514 = vadd.f32 0.0, %v1513
        %v1515 = vpop.f32.mrf.mxu0
        %v1516 = vadd.f32 0.0, %v1515
        %1517 = vmatmul.bf16.gmra.mxu0 %v692
        %v1518 = vpop.f32.mrf.mxu0
        %v1519 = vadd.f32 0.0, %v1518
        %v1520 = vpop.f32.mrf.mxu0
        %v1521 = vadd.f32 0.0, %v1520
        %1522 = vmatmul.bf16.gmra.mxu0 %v694
        %v1523 = vpop.f32.mrf.mxu0
        %v1524 = vadd.f32 0.0, %v1523
        %v1525 = vpop.f32.mrf.mxu0
        %v1526 = vadd.f32 0.0, %v1525
        %1527 = vdwg.mxu0
        %1528 = vmatpush.bf16.msra.mxu0 0
        %1529 = vmatpush.bf16.msra.mxu0 0
        %1530 = vmatpush.bf16.msra.mxu0 0
        %1531 = vmatpush.bf16.msra.mxu0 0
        %1532 = vmatpush.bf16.msra.mxu0 0
        %1533 = vmatpush.bf16.msra.mxu0 0
        %1534 = vmatpush.bf16.msra.mxu0 %v945
        %1535 = vmatpush.bf16.msra.mxu0 %v939
        %1536 = vmatmul.bf16.gmra.mxu0 %v1010
        %v1537 = vpop.f32.mrf.mxu0
        %v1538 = vadd.f32 %v1469, %v1537
        %v1539 = vpop.f32.mrf.mxu0
        %v1540 = vadd.f32 %v1471, %v1539
        %1541 = vmatmul.bf16.gmra.mxu0 %v1013
        %v1542 = vpop.f32.mrf.mxu0
        %v1543 = vadd.f32 %v1474, %v1542
        %v1544 = vpop.f32.mrf.mxu0
        %v1545 = vadd.f32 %v1476, %v1544
        %1546 = vmatmul.bf16.gmra.mxu0 %v1016
        %v1547 = vpop.f32.mrf.mxu0
        %v1548 = vadd.f32 %v1479, %v1547
        %v1549 = vpop.f32.mrf.mxu0
        %v1550 = vadd.f32 %v1481, %v1549
        %1551 = vmatmul.bf16.gmra.mxu0 %v1019
        %v1552 = vpop.f32.mrf.mxu0
        %v1553 = vadd.f32 %v1484, %v1552
        %v1554 = vpop.f32.mrf.mxu0
        %v1555 = vadd.f32 %v1486, %v1554
        %1556 = vmatmul.bf16.gmra.mxu0 %v1022
        %v1557 = vpop.f32.mrf.mxu0
        %v1558 = vadd.f32 %v1489, %v1557
        %v1559 = vpop.f32.mrf.mxu0
        %v1560 = vadd.f32 %v1491, %v1559
        %1561 = vmatmul.bf16.gmra.mxu0 %v1025
        %v1562 = vpop.f32.mrf.mxu0
        %v1563 = vadd.f32 %v1494, %v1562
        %v1564 = vpop.f32.mrf.mxu0
        %v1565 = vadd.f32 %v1496, %v1564
        %1566 = vmatmul.bf16.gmra.mxu0 %v1028
        %v1567 = vpop.f32.mrf.mxu0
        %v1568 = vadd.f32 %v1499, %v1567
        %v1569 = vpop.f32.mrf.mxu0
        %v1570 = vadd.f32 %v1501, %v1569
        %1571 = vmatmul.bf16.gmra.mxu0 %v1031
        %v1572 = vpop.f32.mrf.mxu0
        %v1573 = vadd.f32 %v1504, %v1572
        %v1574 = vpop.f32.mrf.mxu0
        %v1575 = vadd.f32 %v1506, %v1574
        %1576 = vmatmul.bf16.gmra.mxu0 %v1034
        %v1577 = vpop.f32.mrf.mxu0
        %v1578 = vadd.f32 %v1509, %v1577
        %v1579 = vpop.f32.mrf.mxu0
        %v1580 = vadd.f32 %v1511, %v1579
        %1581 = vmatmul.bf16.gmra.mxu0 %v1037
        %v1582 = vpop.f32.mrf.mxu0
        %v1583 = vadd.f32 %v1514, %v1582
        %v1584 = vpop.f32.mrf.mxu0
        %v1585 = vadd.f32 %v1516, %v1584
        %1586 = vmatmul.bf16.gmra.mxu0 %v1040
        %v1587 = vpop.f32.mrf.mxu0
        %v1588 = vadd.f32 %v1519, %v1587
        %v1589 = vpop.f32.mrf.mxu0
        %v1590 = vadd.f32 %v1521, %v1589
        %1591 = vmatmul.bf16.gmra.mxu0 %v1043
        %v1592 = vpop.f32.mrf.mxu0
        %v1593 = vadd.f32 %v1524, %v1592
        %v1594 = vpop.f32.mrf.mxu0
        %v1595 = vadd.f32 %v1526, %v1594
        %1596 = vdwg.mxu0
        %1597 = vmatpush.bf16.msra.mxu0 %v934
        %1598 = vmatpush.bf16.msra.mxu0 %v928
        %1599 = vmatpush.bf16.msra.mxu0 %v922
        %1600 = vmatpush.bf16.msra.mxu0 %v916
        %1601 = vmatpush.bf16.msra.mxu0 %v910
        %1602 = vmatpush.bf16.msra.mxu0 %v904
        %1603 = vmatpush.bf16.msra.mxu0 %v898
        %1604 = vmatpush.bf16.msra.mxu0 %v892
        %1605 = vmatmul.bf16.gmra.mxu0 %v672
        %v1606 = vpop.f32.mrf.mxu0
        %v1607 = vadd.f32 0.0, %v1606
        %v1608 = vpop.f32.mrf.mxu0
        %v1609 = vadd.f32 0.0, %v1608
        %1610 = vmatmul.bf16.gmra.mxu0 %v674
        %v1611 = vpop.f32.mrf.mxu0
        %v1612 = vadd.f32 0.0, %v1611
        %v1613 = vpop.f32.mrf.mxu0
        %v1614 = vadd.f32 0.0, %v1613
        %1615 = vmatmul.bf16.gmra.mxu0 %v676
        %v1616 = vpop.f32.mrf.mxu0
        %v1617 = vadd.f32 0.0, %v1616
        %v1618 = vpop.f32.mrf.mxu0
        %v1619 = vadd.f32 0.0, %v1618
        %1620 = vmatmul.bf16.gmra.mxu0 %v678
        %v1621 = vpop.f32.mrf.mxu0
        %v1622 = vadd.f32 0.0, %v1621
        %v1623 = vpop.f32.mrf.mxu0
        %v1624 = vadd.f32 0.0, %v1623
        %1625 = vmatmul.bf16.gmra.mxu0 %v680
        %v1626 = vpop.f32.mrf.mxu0
        %v1627 = vadd.f32 0.0, %v1626
        %v1628 = vpop.f32.mrf.mxu0
        %v1629 = vadd.f32 0.0, %v1628
        %1630 = vmatmul.bf16.gmra.mxu0 %v682
        %v1631 = vpop.f32.mrf.mxu0
        %v1632 = vadd.f32 0.0, %v1631
        %v1633 = vpop.f32.mrf.mxu0
        %v1634 = vadd.f32 0.0, %v1633
        %1635 = vmatmul.bf16.gmra.mxu0 %v684
        %v1636 = vpop.f32.mrf.mxu0
        %v1637 = vadd.f32 0.0, %v1636
        %v1638 = vpop.f32.mrf.mxu0
        %v1639 = vadd.f32 0.0, %v1638
        %1640 = vmatmul.bf16.gmra.mxu0 %v686
        %v1641 = vpop.f32.mrf.mxu0
        %v1642 = vadd.f32 0.0, %v1641
        %v1643 = vpop.f32.mrf.mxu0
        %v1644 = vadd.f32 0.0, %v1643
        %1645 = vmatmul.bf16.gmra.mxu0 %v688
        %v1646 = vpop.f32.mrf.mxu0
        %v1647 = vadd.f32 0.0, %v1646
        %v1648 = vpop.f32.mrf.mxu0
        %v1649 = vadd.f32 0.0, %v1648
        %1650 = vmatmul.bf16.gmra.mxu0 %v690
        %v1651 = vpop.f32.mrf.mxu0
        %v1652 = vadd.f32 0.0, %v1651
        %v1653 = vpop.f32.mrf.mxu0
        %v1654 = vadd.f32 0.0, %v1653
        %1655 = vmatmul.bf16.gmra.mxu0 %v692
        %v1656 = vpop.f32.mrf.mxu0
        %v1657 = vadd.f32 0.0, %v1656
        %v1658 = vpop.f32.mrf.mxu0
        %v1659 = vadd.f32 0.0, %v1658
        %1660 = vmatmul.bf16.gmra.mxu0 %v694
        %v1661 = vpop.f32.mrf.mxu0
        %v1662 = vadd.f32 0.0, %v1661
        %v1663 = vpop.f32.mrf.mxu0
        %v1664 = vadd.f32 0.0, %v1663
        %1665 = vdwg.mxu0
        %1666 = vmatpush.bf16.msra.mxu0 0
        %1667 = vmatpush.bf16.msra.mxu0 0
        %1668 = vmatpush.bf16.msra.mxu0 0
        %1669 = vmatpush.bf16.msra.mxu0 0
        %1670 = vmatpush.bf16.msra.mxu0 0
        %1671 = vmatpush.bf16.msra.mxu0 0
        %1672 = vmatpush.bf16.msra.mxu0 %v946
        %1673 = vmatpush.bf16.msra.mxu0 %v940
        %1674 = vmatmul.bf16.gmra.mxu0 %v1010
        %v1675 = vpop.f32.mrf.mxu0
        %v1676 = vadd.f32 %v1607, %v1675
        %v1677 = vpop.f32.mrf.mxu0
        %v1678 = vadd.f32 %v1609, %v1677
        %1679 = vmatmul.bf16.gmra.mxu0 %v1013
        %v1680 = vpop.f32.mrf.mxu0
        %v1681 = vadd.f32 %v1612, %v1680
        %v1682 = vpop.f32.mrf.mxu0
        %v1683 = vadd.f32 %v1614, %v1682
        %1684 = vmatmul.bf16.gmra.mxu0 %v1016
        %v1685 = vpop.f32.mrf.mxu0
        %v1686 = vadd.f32 %v1617, %v1685
        %v1687 = vpop.f32.mrf.mxu0
        %v1688 = vadd.f32 %v1619, %v1687
        %1689 = vmatmul.bf16.gmra.mxu0 %v1019
        %v1690 = vpop.f32.mrf.mxu0
        %v1691 = vadd.f32 %v1622, %v1690
        %v1692 = vpop.f32.mrf.mxu0
        %v1693 = vadd.f32 %v1624, %v1692
        %1694 = vmatmul.bf16.gmra.mxu0 %v1022
        %v1695 = vpop.f32.mrf.mxu0
        %v1696 = vadd.f32 %v1627, %v1695
        %v1697 = vpop.f32.mrf.mxu0
        %v1698 = vadd.f32 %v1629, %v1697
        %1699 = vmatmul.bf16.gmra.mxu0 %v1025
        %v1700 = vpop.f32.mrf.mxu0
        %v1701 = vadd.f32 %v1632, %v1700
        %v1702 = vpop.f32.mrf.mxu0
        %v1703 = vadd.f32 %v1634, %v1702
        %1704 = vmatmul.bf16.gmra.mxu0 %v1028
        %v1705 = vpop.f32.mrf.mxu0
        %v1706 = vadd.f32 %v1637, %v1705
        %v1707 = vpop.f32.mrf.mxu0
        %v1708 = vadd.f32 %v1639, %v1707
        %1709 = vmatmul.bf16.gmra.mxu0 %v1031
        %v1710 = vpop.f32.mrf.mxu0
        %v1711 = vadd.f32 %v1642, %v1710
        %v1712 = vpop.f32.mrf.mxu0
        %v1713 = vadd.f32 %v1644, %v1712
        %1714 = vmatmul.bf16.gmra.mxu0 %v1034
        %v1715 = vpop.f32.mrf.mxu0
        %v1716 = vadd.f32 %v1647, %v1715
        %v1717 = vpop.f32.mrf.mxu0
        %v1718 = vadd.f32 %v1649, %v1717
        %1719 = vmatmul.bf16.gmra.mxu0 %v1037
        %v1720 = vpop.f32.mrf.mxu0
        %v1721 = vadd.f32 %v1652, %v1720
        %v1722 = vpop.f32.mrf.mxu0
        %v1723 = vadd.f32 %v1654, %v1722
        %1724 = vmatmul.bf16.gmra.mxu0 %v1040
        %v1725 = vpop.f32.mrf.mxu0
        %v1726 = vadd.f32 %v1657, %v1725
        %v1727 = vpop.f32.mrf.mxu0
        %v1728 = vadd.f32 %v1659, %v1727
        %1729 = vmatmul.bf16.gmra.mxu0 %v1043
        %v1730 = vpop.f32.mrf.mxu0
        %v1731 = vadd.f32 %v1662, %v1730
        %v1732 = vpop.f32.mrf.mxu0
        %v1733 = vadd.f32 %v1664, %v1732
        %1734 = vdwg.mxu0
        %1735 = vmatpush.bf16.msra.mxu0 %v935
        %1736 = vmatpush.bf16.msra.mxu0 %v929
        %1737 = vmatpush.bf16.msra.mxu0 %v923
        %1738 = vmatpush.bf16.msra.mxu0 %v917
        %1739 = vmatpush.bf16.msra.mxu0 %v911
        %1740 = vmatpush.bf16.msra.mxu0 %v905
        %1741 = vmatpush.bf16.msra.mxu0 %v899
        %1742 = vmatpush.bf16.msra.mxu0 %v893
        %1743 = vmatmul.bf16.gmra.mxu0 %v672
        %v1744 = vpop.f32.mrf.mxu0
        %v1745 = vadd.f32 0.0, %v1744
        %v1746 = vpop.f32.mrf.mxu0
        %v1747 = vadd.f32 0.0, %v1746
        %1748 = vmatmul.bf16.gmra.mxu0 %v674
        %v1749 = vpop.f32.mrf.mxu0
        %v1750 = vadd.f32 0.0, %v1749
        %v1751 = vpop.f32.mrf.mxu0
        %v1752 = vadd.f32 0.0, %v1751
        %1753 = vmatmul.bf16.gmra.mxu0 %v676
        %v1754 = vpop.f32.mrf.mxu0
        %v1755 = vadd.f32 0.0, %v1754
        %v1756 = vpop.f32.mrf.mxu0
        %v1757 = vadd.f32 0.0, %v1756
        %1758 = vmatmul.bf16.gmra.mxu0 %v678
        %v1759 = vpop.f32.mrf.mxu0
        %v1760 = vadd.f32 0.0, %v1759
        %v1761 = vpop.f32.mrf.mxu0
        %v1762 = vadd.f32 0.0, %v1761
        %1763 = vmatmul.bf16.gmra.mxu0 %v680
        %v1764 = vpop.f32.mrf.mxu0
        %v1765 = vadd.f32 0.0, %v1764
        %v1766 = vpop.f32.mrf.mxu0
        %v1767 = vadd.f32 0.0, %v1766
        %1768 = vmatmul.bf16.gmra.mxu0 %v682
        %v1769 = vpop.f32.mrf.mxu0
        %v1770 = vadd.f32 0.0, %v1769
        %v1771 = vpop.f32.mrf.mxu0
        %v1772 = vadd.f32 0.0, %v1771
        %1773 = vmatmul.bf16.gmra.mxu0 %v684
        %v1774 = vpop.f32.mrf.mxu0
        %v1775 = vadd.f32 0.0, %v1774
        %v1776 = vpop.f32.mrf.mxu0
        %v1777 = vadd.f32 0.0, %v1776
        %1778 = vmatmul.bf16.gmra.mxu0 %v686
        %v1779 = vpop.f32.mrf.mxu0
        %v1780 = vadd.f32 0.0, %v1779
        %v1781 = vpop.f32.mrf.mxu0
        %v1782 = vadd.f32 0.0, %v1781
        %1783 = vmatmul.bf16.gmra.mxu0 %v688
        %v1784 = vpop.f32.mrf.mxu0
        %v1785 = vadd.f32 0.0, %v1784
        %v1786 = vpop.f32.mrf.mxu0
        %v1787 = vadd.f32 0.0, %v1786
        %1788 = vmatmul.bf16.gmra.mxu0 %v690
        %v1789 = vpop.f32.mrf.mxu0
        %v1790 = vadd.f32 0.0, %v1789
        %v1791 = vpop.f32.mrf.mxu0
        %v1792 = vadd.f32 0.0, %v1791
        %1793 = vmatmul.bf16.gmra.mxu0 %v692
        %v1794 = vpop.f32.mrf.mxu0
        %v1795 = vadd.f32 0.0, %v1794
        %v1796 = vpop.f32.mrf.mxu0
        %v1797 = vadd.f32 0.0, %v1796
        %1798 = vmatmul.bf16.gmra.mxu0 %v694
        %v1799 = vpop.f32.mrf.mxu0
        %v1800 = vadd.f32 0.0, %v1799
        %v1801 = vpop.f32.mrf.mxu0
        %v1802 = vadd.f32 0.0, %v1801
        %1803 = vdwg.mxu0
        %1804 = vmatpush.bf16.msra.mxu0 0
        %1805 = vmatpush.bf16.msra.mxu0 0
        %1806 = vmatpush.bf16.msra.mxu0 0
        %1807 = vmatpush.bf16.msra.mxu0 0
        %1808 = vmatpush.bf16.msra.mxu0 0
        %1809 = vmatpush.bf16.msra.mxu0 0
        %1810 = vmatpush.bf16.msra.mxu0 %v947
        %1811 = vmatpush.bf16.msra.mxu0 %v941
        %1812 = vmatmul.bf16.gmra.mxu0 %v1010
        %v1813 = vpop.f32.mrf.mxu0
        %v1814 = vadd.f32 %v1745, %v1813
        %v1815 = vpop.f32.mrf.mxu0
        %v1816 = vadd.f32 %v1747, %v1815
        %1817 = vmatmul.bf16.gmra.mxu0 %v1013
        %v1818 = vpop.f32.mrf.mxu0
        %v1819 = vadd.f32 %v1750, %v1818
        %v1820 = vpop.f32.mrf.mxu0
        %v1821 = vadd.f32 %v1752, %v1820
        %1822 = vmatmul.bf16.gmra.mxu0 %v1016
        %v1823 = vpop.f32.mrf.mxu0
        %v1824 = vadd.f32 %v1755, %v1823
        %v1825 = vpop.f32.mrf.mxu0
        %v1826 = vadd.f32 %v1757, %v1825
        %1827 = vmatmul.bf16.gmra.mxu0 %v1019
        %v1828 = vpop.f32.mrf.mxu0
        %v1829 = vadd.f32 %v1760, %v1828
        %v1830 = vpop.f32.mrf.mxu0
        %v1831 = vadd.f32 %v1762, %v1830
        %1832 = vmatmul.bf16.gmra.mxu0 %v1022
        %v1833 = vpop.f32.mrf.mxu0
        %v1834 = vadd.f32 %v1765, %v1833
        %v1835 = vpop.f32.mrf.mxu0
        %v1836 = vadd.f32 %v1767, %v1835
        %1837 = vmatmul.bf16.gmra.mxu0 %v1025
        %v1838 = vpop.f32.mrf.mxu0
        %v1839 = vadd.f32 %v1770, %v1838
        %v1840 = vpop.f32.mrf.mxu0
        %v1841 = vadd.f32 %v1772, %v1840
        %1842 = vmatmul.bf16.gmra.mxu0 %v1028
        %v1843 = vpop.f32.mrf.mxu0
        %v1844 = vadd.f32 %v1775, %v1843
        %v1845 = vpop.f32.mrf.mxu0
        %v1846 = vadd.f32 %v1777, %v1845
        %1847 = vmatmul.bf16.gmra.mxu0 %v1031
        %v1848 = vpop.f32.mrf.mxu0
        %v1849 = vadd.f32 %v1780, %v1848
        %v1850 = vpop.f32.mrf.mxu0
        %v1851 = vadd.f32 %v1782, %v1850
        %1852 = vmatmul.bf16.gmra.mxu0 %v1034
        %v1853 = vpop.f32.mrf.mxu0
        %v1854 = vadd.f32 %v1785, %v1853
        %v1855 = vpop.f32.mrf.mxu0
        %v1856 = vadd.f32 %v1787, %v1855
        %1857 = vmatmul.bf16.gmra.mxu0 %v1037
        %v1858 = vpop.f32.mrf.mxu0
        %v1859 = vadd.f32 %v1790, %v1858
        %v1860 = vpop.f32.mrf.mxu0
        %v1861 = vadd.f32 %v1792, %v1860
        %1862 = vmatmul.bf16.gmra.mxu0 %v1040
        %v1863 = vpop.f32.mrf.mxu0
        %v1864 = vadd.f32 %v1795, %v1863
        %v1865 = vpop.f32.mrf.mxu0
        %v1866 = vadd.f32 %v1797, %v1865
        %1867 = vmatmul.bf16.gmra.mxu0 %v1043
        %v1868 = vpop.f32.mrf.mxu0
        %v1869 = vadd.f32 %v1800, %v1868
        %v1870 = vpop.f32.mrf.mxu0
        %v1871 = vadd.f32 %v1802, %v1870
        %1872 = vdwg.mxu0
        %v1873 = vmax.f32 %v1124, %v1154
        %v1874 = vmax.f32 %v1262, %v1292
        %v1875 = vmax.f32 %v1400, %v1430
        %v1876 = vmax.f32 %v1538, %v1568
        %v1877 = vmax.f32 %v1676, %v1706
        %v1878 = vmax.f32 %v1814, %v1844
        %v1879 = vmax.f32 %v1126, %v1156
        %v1880 = vmax.f32 %v1264, %v1294
        %v1881 = vmax.f32 %v1402, %v1432
        %v1882 = vmax.f32 %v1540, %v1570
        %v1883 = vmax.f32 %v1678, %v1708
        %v1884 = vmax.f32 %v1816, %v1846
        %v1885 = vmax.f32 %v1129, %v1159
        %v1886 = vmax.f32 %v1267, %v1297
        %v1887 = vmax.f32 %v1405, %v1435
        %v1888 = vmax.f32 %v1543, %v1573
        %v1889 = vmax.f32 %v1681, %v1711
        %v1890 = vmax.f32 %v1819, %v1849
        %v1891 = vmax.f32 %v1131, %v1161
        %v1892 = vmax.f32 %v1269, %v1299
        %v1893 = vmax.f32 %v1407, %v1437
        %v1894 = vmax.f32 %v1545, %v1575
        %v1895 = vmax.f32 %v1683, %v1713
        %v1896 = vmax.f32 %v1821, %v1851
        %v1897 = vmax.f32 %v1134, %v1164
        %v1898 = vmax.f32 %v1272, %v1302
        %v1899 = vmax.f32 %v1410, %v1440
        %v1900 = vmax.f32 %v1548, %v1578
        %v1901 = vmax.f32 %v1686, %v1716
        %v1902 = vmax.f32 %v1824, %v1854
        %v1903 = vmax.f32 %v1136, %v1166
        %v1904 = vmax.f32 %v1274, %v1304
        %v1905 = vmax.f32 %v1412, %v1442
        %v1906 = vmax.f32 %v1550, %v1580
        %v1907 = vmax.f32 %v1688, %v1718
        %v1908 = vmax.f32 %v1826, %v1856
        %v1909 = vmax.f32 %v1139, %v1169
        %v1910 = vmax.f32 %v1277, %v1307
        %v1911 = vmax.f32 %v1415, %v1445
        %v1912 = vmax.f32 %v1553, %v1583
        %v1913 = vmax.f32 %v1691, %v1721
        %v1914 = vmax.f32 %v1829, %v1859
        %v1915 = vmax.f32 %v1141, %v1171
        %v1916 = vmax.f32 %v1279, %v1309
        %v1917 = vmax.f32 %v1417, %v1447
        %v1918 = vmax.f32 %v1555, %v1585
        %v1919 = vmax.f32 %v1693, %v1723
        %v1920 = vmax.f32 %v1831, %v1861
        %v1921 = vmax.f32 %v1144, %v1174
        %v1922 = vmax.f32 %v1282, %v1312
        %v1923 = vmax.f32 %v1420, %v1450
        %v1924 = vmax.f32 %v1558, %v1588
        %v1925 = vmax.f32 %v1696, %v1726
        %v1926 = vmax.f32 %v1834, %v1864
        %v1927 = vmax.f32 %v1146, %v1176
        %v1928 = vmax.f32 %v1284, %v1314
        %v1929 = vmax.f32 %v1422, %v1452
        %v1930 = vmax.f32 %v1560, %v1590
        %v1931 = vmax.f32 %v1698, %v1728
        %v1932 = vmax.f32 %v1836, %v1866
        %v1933 = vmax.f32 %v1149, %v1179
        %v1934 = vmax.f32 %v1287, %v1317
        %v1935 = vmax.f32 %v1425, %v1455
        %v1936 = vmax.f32 %v1563, %v1593
        %v1937 = vmax.f32 %v1701, %v1731
        %v1938 = vmax.f32 %v1839, %v1869
        %v1939 = vmax.f32 %v1151, %v1181
        %v1940 = vmax.f32 %v1289, %v1319
        %v1941 = vmax.f32 %v1427, %v1457
        %v1942 = vmax.f32 %v1565, %v1595
        %v1943 = vmax.f32 %v1703, %v1733
        %v1944 = vmax.f32 %v1841, %v1871
        %v1945 = vld [vmem:[%s2] sm:$0x3f]
        %v1947 = vperm.slane %v1945, 0
        %v1948 = vperm.slane %v1945, 1
        %v1949 = vperm.slane %v1945, 2
        %v1950 = vperm.slane %v1945, 3
        %v1951 = vperm.slane %v1945, 4
        %v1952 = vperm.slane %v1945, 5
        %v1959 = vadd.f32 %v1873, %v1947
        %v1960 = vadd.f32 %v1874, %v1948
        %v1961 = vadd.f32 %v1875, %v1949
        %v1962 = vadd.f32 %v1876, %v1950
        %v1963 = vadd.f32 %v1877, %v1951
        %v1964 = vadd.f32 %v1878, %v1952
        %v1965 = vadd.f32 %v1879, %v1947
        %v1966 = vadd.f32 %v1880, %v1948
        %v1967 = vadd.f32 %v1881, %v1949
        %v1968 = vadd.f32 %v1882, %v1950
        %v1969 = vadd.f32 %v1883, %v1951
        %v1970 = vadd.f32 %v1884, %v1952
        %v1971 = vadd.f32 %v1885, %v1947
        %v1972 = vadd.f32 %v1886, %v1948
        %v1973 = vadd.f32 %v1887, %v1949
        %v1974 = vadd.f32 %v1888, %v1950
        %v1975 = vadd.f32 %v1889, %v1951
        %v1976 = vadd.f32 %v1890, %v1952
        %v1977 = vadd.f32 %v1891, %v1947
        %v1978 = vadd.f32 %v1892, %v1948
        %v1979 = vadd.f32 %v1893, %v1949
        %v1980 = vadd.f32 %v1894, %v1950
        %v1981 = vadd.f32 %v1895, %v1951
        %v1982 = vadd.f32 %v1896, %v1952
        %v1983 = vadd.f32 %v1897, %v1947
        %v1984 = vadd.f32 %v1898, %v1948
        %v1985 = vadd.f32 %v1899, %v1949
        %v1986 = vadd.f32 %v1900, %v1950
        %v1987 = vadd.f32 %v1901, %v1951
        %v1988 = vadd.f32 %v1902, %v1952
        %v1989 = vadd.f32 %v1903, %v1947
        %v1990 = vadd.f32 %v1904, %v1948
        %v1991 = vadd.f32 %v1905, %v1949
        %v1992 = vadd.f32 %v1906, %v1950
        %v1993 = vadd.f32 %v1907, %v1951
        %v1994 = vadd.f32 %v1908, %v1952
        %v1995 = vadd.f32 %v1909, %v1947
        %v1996 = vadd.f32 %v1910, %v1948
        %v1997 = vadd.f32 %v1911, %v1949
        %v1998 = vadd.f32 %v1912, %v1950
        %v1999 = vadd.f32 %v1913, %v1951
        %v2000 = vadd.f32 %v1914, %v1952
        %v2001 = vadd.f32 %v1915, %v1947
        %v2002 = vadd.f32 %v1916, %v1948
        %v2003 = vadd.f32 %v1917, %v1949
        %v2004 = vadd.f32 %v1918, %v1950
        %v2005 = vadd.f32 %v1919, %v1951
        %v2006 = vadd.f32 %v1920, %v1952
        %v2007 = vadd.f32 %v1921, %v1947
        %v2008 = vadd.f32 %v1922, %v1948
        %v2009 = vadd.f32 %v1923, %v1949
        %v2010 = vadd.f32 %v1924, %v1950
        %v2011 = vadd.f32 %v1925, %v1951
        %v2012 = vadd.f32 %v1926, %v1952
        %v2013 = vadd.f32 %v1927, %v1947
        %v2014 = vadd.f32 %v1928, %v1948
        %v2015 = vadd.f32 %v1929, %v1949
        %v2016 = vadd.f32 %v1930, %v1950
        %v2017 = vadd.f32 %v1931, %v1951
        %v2018 = vadd.f32 %v1932, %v1952
        %v2019 = vadd.f32 %v1933, %v1947
        %v2020 = vadd.f32 %v1934, %v1948
        %v2021 = vadd.f32 %v1935, %v1949
        %v2022 = vadd.f32 %v1936, %v1950
        %v2023 = vadd.f32 %v1937, %v1951
        %v2024 = vadd.f32 %v1938, %v1952
        %v2025 = vadd.f32 %v1939, %v1947
        %v2026 = vadd.f32 %v1940, %v1948
        %v2027 = vadd.f32 %v1941, %v1949
        %v2028 = vadd.f32 %v1942, %v1950
        %v2029 = vadd.f32 %v1943, %v1951
        %v2030 = vadd.f32 %v1944, %v1952
        %v2031 = vmax.f32 %v1959, 0.0
        %v2032 = vmax.f32 %v1960, 0.0
        %v2033 = vmax.f32 %v1961, 0.0
        %v2034 = vmax.f32 %v1962, 0.0
        %v2035 = vmax.f32 %v1963, 0.0
        %v2036 = vmax.f32 %v1964, 0.0
        %v2037 = vmax.f32 %v1965, 0.0
        %v2038 = vmax.f32 %v1966, 0.0
        %v2039 = vmax.f32 %v1967, 0.0
        %v2040 = vmax.f32 %v1968, 0.0
        %v2041 = vmax.f32 %v1969, 0.0
        %v2042 = vmax.f32 %v1970, 0.0
        %v2043 = vmax.f32 %v1971, 0.0
        %v2044 = vmax.f32 %v1972, 0.0
        %v2045 = vmax.f32 %v1973, 0.0
        %v2046 = vmax.f32 %v1974, 0.0
        %v2047 = vmax.f32 %v1975, 0.0
        %v2048 = vmax.f32 %v1976, 0.0
        %v2049 = vmax.f32 %v1977, 0.0
        %v2050 = vmax.f32 %v1978, 0.0
        %v2051 = vmax.f32 %v1979, 0.0
        %v2052 = vmax.f32 %v1980, 0.0
        %v2053 = vmax.f32 %v1981, 0.0
        %v2054 = vmax.f32 %v1982, 0.0
        %v2055 = vmax.f32 %v1983, 0.0
        %v2056 = vmax.f32 %v1984, 0.0
        %v2057 = vmax.f32 %v1985, 0.0
        %v2058 = vmax.f32 %v1986, 0.0
        %v2059 = vmax.f32 %v1987, 0.0
        %v2060 = vmax.f32 %v1988, 0.0
        %v2061 = vmax.f32 %v1989, 0.0
        %v2062 = vmax.f32 %v1990, 0.0
        %v2063 = vmax.f32 %v1991, 0.0
        %v2064 = vmax.f32 %v1992, 0.0
        %v2065 = vmax.f32 %v1993, 0.0
        %v2066 = vmax.f32 %v1994, 0.0
        %v2067 = vmax.f32 %v1995, 0.0
        %v2068 = vmax.f32 %v1996, 0.0
        %v2069 = vmax.f32 %v1997, 0.0
        %v2070 = vmax.f32 %v1998, 0.0
        %v2071 = vmax.f32 %v1999, 0.0
        %v2072 = vmax.f32 %v2000, 0.0
        %v2073 = vmax.f32 %v2001, 0.0
        %v2074 = vmax.f32 %v2002, 0.0
        %v2075 = vmax.f32 %v2003, 0.0
        %v2076 = vmax.f32 %v2004, 0.0
        %v2077 = vmax.f32 %v2005, 0.0
        %v2078 = vmax.f32 %v2006, 0.0
        %v2079 = vmax.f32 %v2007, 0.0
        %v2080 = vmax.f32 %v2008, 0.0
        %v2081 = vmax.f32 %v2009, 0.0
        %v2082 = vmax.f32 %v2010, 0.0
        %v2083 = vmax.f32 %v2011, 0.0
        %v2084 = vmax.f32 %v2012, 0.0
        %v2085 = vmax.f32 %v2013, 0.0
        %v2086 = vmax.f32 %v2014, 0.0
        %v2087 = vmax.f32 %v2015, 0.0
        %v2088 = vmax.f32 %v2016, 0.0
        %v2089 = vmax.f32 %v2017, 0.0
        %v2090 = vmax.f32 %v2018, 0.0
        %v2091 = vmax.f32 %v2019, 0.0
        %v2092 = vmax.f32 %v2020, 0.0
        %v2093 = vmax.f32 %v2021, 0.0
        %v2094 = vmax.f32 %v2022, 0.0
        %v2095 = vmax.f32 %v2023, 0.0
        %v2096 = vmax.f32 %v2024, 0.0
        %v2097 = vmax.f32 %v2025, 0.0
        %v2098 = vmax.f32 %v2026, 0.0
        %v2099 = vmax.f32 %v2027, 0.0
        %v2100 = vmax.f32 %v2028, 0.0
        %v2101 = vmax.f32 %v2029, 0.0
        %v2102 = vmax.f32 %v2030, 0.0
        %v2103 = vmax.f32 %v2031, %v2034
        %v2104 = vmax.f32 %v2032, %v2035
        %v2105 = vmax.f32 %v2033, %v2036
        %v2106 = vmax.f32 %v2037, %v2040
        %v2107 = vmax.f32 %v2038, %v2041
        %v2108 = vmax.f32 %v2039, %v2042
        %v2109 = vmax.f32 %v2043, %v2046
        %v2110 = vmax.f32 %v2044, %v2047
        %v2111 = vmax.f32 %v2045, %v2048
        %v2112 = vmax.f32 %v2049, %v2052
        %v2113 = vmax.f32 %v2050, %v2053
        %v2114 = vmax.f32 %v2051, %v2054
        %v2115 = vmax.f32 %v2055, %v2058
        %v2116 = vmax.f32 %v2056, %v2059
        %v2117 = vmax.f32 %v2057, %v2060
        %v2118 = vmax.f32 %v2061, %v2064
        %v2119 = vmax.f32 %v2062, %v2065
        %v2120 = vmax.f32 %v2063, %v2066
        %v2121 = vmax.f32 %v2067, %v2070
        %v2122 = vmax.f32 %v2068, %v2071
        %v2123 = vmax.f32 %v2069, %v2072
        %v2124 = vmax.f32 %v2073, %v2076
        %v2125 = vmax.f32 %v2074, %v2077
        %v2126 = vmax.f32 %v2075, %v2078
        %v2127 = vmax.f32 %v2079, %v2082
        %v2128 = vmax.f32 %v2080, %v2083
        %v2129 = vmax.f32 %v2081, %v2084
        %v2130 = vmax.f32 %v2085, %v2088
        %v2131 = vmax.f32 %v2086, %v2089
        %v2132 = vmax.f32 %v2087, %v2090
        %v2133 = vmax.f32 %v2091, %v2094
        %v2134 = vmax.f32 %v2092, %v2095
        %v2135 = vmax.f32 %v2093, %v2096
        %v2136 = vmax.f32 %v2097, %v2100
        %v2137 = vmax.f32 %v2098, %v2101
        %v2138 = vmax.f32 %v2099, %v2102
        %v2175 = vrot.slane %v2104, 4
        %v2176 = vrot.slane %v2107, 4
        %v2177 = vrot.slane %v2110, 4
        %v2178 = vrot.slane %v2113, 4
        %v2179 = vrot.slane %v2116, 4
        %v2180 = vrot.slane %v2119, 4
        %v2181 = vrot.slane %v2122, 4
        %v2182 = vrot.slane %v2125, 4
        %v2183 = vrot.slane %v2128, 4
        %v2184 = vrot.slane %v2131, 4
        %v2185 = vrot.slane %v2134, 4
        %v2186 = vrot.slane %v2137, 4
        %vm2187 = vcmask 1043456
        %v2188 = vsel %vm2187, %v2103, %v2175
        %v2189 = vsel %vm2187, %v2175, %v2103
        %v2190 = vrot.slane %v2189, 4
        %v2191 = vrot.slane %v2105, 4
        %v2192 = vsel %vm2187, %v2106, %v2176
        %v2193 = vsel %vm2187, %v2176, %v2106
        %v2194 = vrot.slane %v2193, 4
        %v2195 = vrot.slane %v2108, 4
        %v2196 = vsel %vm2187, %v2109, %v2177
        %v2197 = vsel %vm2187, %v2177, %v2109
        %v2198 = vrot.slane %v2197, 4
        %v2199 = vrot.slane %v2111, 4
        %v2200 = vsel %vm2187, %v2112, %v2178
        %v2201 = vsel %vm2187, %v2178, %v2112
        %v2202 = vrot.slane %v2201, 4
        %v2203 = vrot.slane %v2114, 4
        %v2204 = vsel %vm2187, %v2115, %v2179
        %v2205 = vsel %vm2187, %v2179, %v2115
        %v2206 = vrot.slane %v2205, 4
        %v2207 = vrot.slane %v2117, 4
        %v2208 = vsel %vm2187, %v2118, %v2180
        %v2209 = vsel %vm2187, %v2180, %v2118
        %v2210 = vrot.slane %v2209, 4
        %v2211 = vrot.slane %v2120, 4
        %v2212 = vsel %vm2187, %v2121, %v2181
        %v2213 = vsel %vm2187, %v2181, %v2121
        %v2214 = vrot.slane %v2213, 4
        %v2215 = vrot.slane %v2123, 4
        %v2216 = vsel %vm2187, %v2124, %v2182
        %v2217 = vsel %vm2187, %v2182, %v2124
        %v2218 = vrot.slane %v2217, 4
        %v2219 = vrot.slane %v2126, 4
        %v2220 = vsel %vm2187, %v2127, %v2183
        %v2221 = vsel %vm2187, %v2183, %v2127
        %v2222 = vrot.slane %v2221, 4
        %v2223 = vrot.slane %v2129, 4
        %v2224 = vsel %vm2187, %v2130, %v2184
        %v2225 = vsel %vm2187, %v2184, %v2130
        %v2226 = vrot.slane %v2225, 4
        %v2227 = vrot.slane %v2132, 4
        %v2228 = vsel %vm2187, %v2133, %v2185
        %v2229 = vsel %vm2187, %v2185, %v2133
        %v2230 = vrot.slane %v2229, 4
        %v2231 = vrot.slane %v2135, 4
        %v2232 = vsel %vm2187, %v2136, %v2186
        %v2233 = vsel %vm2187, %v2186, %v2136
        %v2234 = vrot.slane %v2233, 4
        %v2235 = vrot.slane %v2138, 4
        %2236 = vst [vmem:[#allocation1] ss:$2 sm:$0xff] %v2188
        %s2237 = scalar_lea.vmem [#allocation1], 1
        %2238 = vst [vmem:[%s2237] ss:$2 sm:$0xff] %v2190
        %s2239 = scalar_lea.vmem [#allocation1], 16
        %2240 = vst [vmem:[%s2239] ss:$2 sm:$0xff] %v2105
        %s2241 = scalar_lea.vmem [#allocation1], 17
        %2242 = vst [vmem:[%s2241] ss:$2 sm:$0xff] %v2191
        %s2243 = scalar_lea.vmem [#allocation1], 32
        %2244 = vst [vmem:[%s2243] ss:$2 sm:$0xff] %v2192
        %s2245 = scalar_lea.vmem [#allocation1], 48
        %2246 = vst [vmem:[%s2245] ss:$2 sm:$0xff] %v2108
        %v2247 = vld.sshfl [vmem:[#allocation1] sm:$0xff pattern:$0x75316420]
        %v2248 = vld.sshfl [vmem:[#allocation1 + $0x8] sm:$0xff pattern:$0x75316420]
        %v2249 = vld.sshfl [vmem:[#allocation1 + $0x10] sm:$0xff pattern:$0x75316420]
        %v2250 = vld.sshfl [vmem:[#allocation1 + $0x20] sm:$0xff pattern:$0x75316420]
        %v2251 = vld.sshfl [vmem:[#allocation1 + $0x28] sm:$0xff pattern:$0x75316420]
        %v2252 = vld.sshfl [vmem:[#allocation1 + $0x30] sm:$0xff pattern:$0x75316420]
        %2253 = vst [vmem:[#allocation1] ss:$2 sm:$0xff] %v2194
        %2254 = vst [vmem:[%s2237] ss:$2 sm:$0xff] %v2196
        %2255 = vst [vmem:[%s2239] ss:$2 sm:$0xff] %v2195
        %2256 = vst [vmem:[%s2241] ss:$2 sm:$0xff] %v2111
        %2257 = vst [vmem:[%s2243] ss:$2 sm:$0xff] %v2198
        %2258 = vst [vmem:[%s2245] ss:$2 sm:$0xff] %v2199
        %v2259 = vld.sshfl [vmem:[#allocation1] sm:$0xff pattern:$0x75316420]
        %v2260 = vld.sshfl [vmem:[#allocation1 + $0x8] sm:$0xff pattern:$0x75316420]
        %v2261 = vld.sshfl [vmem:[#allocation1 + $0x10] sm:$0xff pattern:$0x75316420]
        %v2262 = vld.sshfl [vmem:[#allocation1 + $0x20] sm:$0xff pattern:$0x75316420]
        %v2263 = vld.sshfl [vmem:[#allocation1 + $0x28] sm:$0xff pattern:$0x75316420]
        %v2264 = vld.sshfl [vmem:[#allocation1 + $0x30] sm:$0xff pattern:$0x75316420]
        %2265 = vst [vmem:[#allocation1] ss:$2 sm:$0xff] %v2200
        %2266 = vst [vmem:[%s2237] ss:$2 sm:$0xff] %v2202
        %2267 = vst [vmem:[%s2239] ss:$2 sm:$0xff] %v2114
        %2268 = vst [vmem:[%s2241] ss:$2 sm:$0xff] %v2203
        %2269 = vst [vmem:[%s2243] ss:$2 sm:$0xff] %v2204
        %2270 = vst [vmem:[%s2245] ss:$2 sm:$0xff] %v2117
        %v2271 = vld.sshfl [vmem:[#allocation1] sm:$0xff pattern:$0x75316420]
        %v2272 = vld.sshfl [vmem:[#allocation1 + $0x8] sm:$0xff pattern:$0x75316420]
        %v2273 = vld.sshfl [vmem:[#allocation1 + $0x10] sm:$0xff pattern:$0x75316420]
        %v2274 = vld.sshfl [vmem:[#allocation1 + $0x20] sm:$0xff pattern:$0x75316420]
        %v2275 = vld.sshfl [vmem:[#allocation1 + $0x28] sm:$0xff pattern:$0x75316420]
        %v2276 = vld.sshfl [vmem:[#allocation1 + $0x30] sm:$0xff pattern:$0x75316420]
        %2277 = vst [vmem:[#allocation1] ss:$2 sm:$0xff] %v2206
        %2278 = vst [vmem:[%s2237] ss:$2 sm:$0xff] %v2208
        %2279 = vst [vmem:[%s2239] ss:$2 sm:$0xff] %v2207
        %2280 = vst [vmem:[%s2241] ss:$2 sm:$0xff] %v2120
        %2281 = vst [vmem:[%s2243] ss:$2 sm:$0xff] %v2210
        %2282 = vst [vmem:[%s2245] ss:$2 sm:$0xff] %v2211
        %v2283 = vld.sshfl [vmem:[#allocation1] sm:$0xff pattern:$0x75316420]
        %v2284 = vld.sshfl [vmem:[#allocation1 + $0x8] sm:$0xff pattern:$0x75316420]
        %v2285 = vld.sshfl [vmem:[#allocation1 + $0x10] sm:$0xff pattern:$0x75316420]
        %v2286 = vld.sshfl [vmem:[#allocation1 + $0x20] sm:$0xff pattern:$0x75316420]
        %v2287 = vld.sshfl [vmem:[#allocation1 + $0x28] sm:$0xff pattern:$0x75316420]
        %v2288 = vld.sshfl [vmem:[#allocation1 + $0x30] sm:$0xff pattern:$0x75316420]
        %2289 = vst [vmem:[#allocation1] ss:$2 sm:$0xff] %v2212
        %2290 = vst [vmem:[%s2237] ss:$2 sm:$0xff] %v2214
        %2291 = vst [vmem:[%s2239] ss:$2 sm:$0xff] %v2123
        %2292 = vst [vmem:[%s2241] ss:$2 sm:$0xff] %v2215
        %2293 = vst [vmem:[%s2243] ss:$2 sm:$0xff] %v2216
        %2294 = vst [vmem:[%s2245] ss:$2 sm:$0xff] %v2126
        %v2295 = vld.sshfl [vmem:[#allocation1] sm:$0xff pattern:$0x75316420]
        %v2296 = vld.sshfl [vmem:[#allocation1 + $0x8] sm:$0xff pattern:$0x75316420]
        %v2297 = vld.sshfl [vmem:[#allocation1 + $0x10] sm:$0xff pattern:$0x75316420]
        %v2298 = vld.sshfl [vmem:[#allocation1 + $0x20] sm:$0xff pattern:$0x75316420]
        %v2299 = vld.sshfl [vmem:[#allocation1 + $0x28] sm:$0xff pattern:$0x75316420]
        %v2300 = vld.sshfl [vmem:[#allocation1 + $0x30] sm:$0xff pattern:$0x75316420]
        %2301 = vst [vmem:[#allocation1] ss:$2 sm:$0xff] %v2218
        %2302 = vst [vmem:[%s2237] ss:$2 sm:$0xff] %v2220
        %2303 = vst [vmem:[%s2239] ss:$2 sm:$0xff] %v2219
        %2304 = vst [vmem:[%s2241] ss:$2 sm:$0xff] %v2129
        %2305 = vst [vmem:[%s2243] ss:$2 sm:$0xff] %v2222
        %2306 = vst [vmem:[%s2245] ss:$2 sm:$0xff] %v2223
        %v2307 = vld.sshfl [vmem:[#allocation1] sm:$0xff pattern:$0x75316420]
        %v2308 = vld.sshfl [vmem:[#allocation1 + $0x8] sm:$0xff pattern:$0x75316420]
        %v2309 = vld.sshfl [vmem:[#allocation1 + $0x10] sm:$0xff pattern:$0x75316420]
        %v2310 = vld.sshfl [vmem:[#allocation1 + $0x20] sm:$0xff pattern:$0x75316420]
        %v2311 = vld.sshfl [vmem:[#allocation1 + $0x28] sm:$0xff pattern:$0x75316420]
        %v2312 = vld.sshfl [vmem:[#allocation1 + $0x30] sm:$0xff pattern:$0x75316420]
        %2313 = vst [vmem:[#allocation1] ss:$2 sm:$0xff] %v2224
        %2314 = vst [vmem:[%s2237] ss:$2 sm:$0xff] %v2226
        %2315 = vst [vmem:[%s2239] ss:$2 sm:$0xff] %v2132
        %2316 = vst [vmem:[%s2241] ss:$2 sm:$0xff] %v2227
        %2317 = vst [vmem:[%s2243] ss:$2 sm:$0xff] %v2228
        %2318 = vst [vmem:[%s2245] ss:$2 sm:$0xff] %v2135
        %v2319 = vld.sshfl [vmem:[#allocation1] sm:$0xff pattern:$0x75316420]
        %v2320 = vld.sshfl [vmem:[#allocation1 + $0x8] sm:$0xff pattern:$0x75316420]
        %v2321 = vld.sshfl [vmem:[#allocation1 + $0x10] sm:$0xff pattern:$0x75316420]
        %v2322 = vld.sshfl [vmem:[#allocation1 + $0x20] sm:$0xff pattern:$0x75316420]
        %v2323 = vld.sshfl [vmem:[#allocation1 + $0x28] sm:$0xff pattern:$0x75316420]
        %v2324 = vld.sshfl [vmem:[#allocation1 + $0x30] sm:$0xff pattern:$0x75316420]
        %2325 = vst [vmem:[#allocation1] ss:$2 sm:$0xff] %v2230
        %2326 = vst [vmem:[%s2237] ss:$2 sm:$0xff] %v2232
        %2327 = vst [vmem:[%s2239] ss:$2 sm:$0xff] %v2231
        %2328 = vst [vmem:[%s2241] ss:$2 sm:$0xff] %v2138
        %2329 = vst [vmem:[%s2243] ss:$2 sm:$0xff] %v2234
        %2330 = vst [vmem:[%s2245] ss:$2 sm:$0xff] %v2235
        %v2331 = vld.sshfl [vmem:[#allocation1] sm:$0xff pattern:$0x75316420]
        %v2332 = vld.sshfl [vmem:[#allocation1 + $0x8] sm:$0xff pattern:$0x75316420]
        %v2333 = vld.sshfl [vmem:[#allocation1 + $0x10] sm:$0xff pattern:$0x75316420]
        %v2334 = vld.sshfl [vmem:[#allocation1 + $0x20] sm:$0xff pattern:$0x75316420]
        %v2335 = vld.sshfl [vmem:[#allocation1 + $0x28] sm:$0xff pattern:$0x75316420]
        %v2336 = vld.sshfl [vmem:[#allocation1 + $0x30] sm:$0xff pattern:$0x75316420]
        %v2385 = vpack.c.bf16 %v2248, %v2247
        %v2386 = vpack.c.bf16 %v2249, %v2249
        %v2387 = vpack.c.bf16 %v2251, %v2250
        %v2388 = vpack.c.bf16 %v2252, %v2252
        %v2389 = vpack.c.bf16 %v2260, %v2259
        %v2390 = vpack.c.bf16 %v2261, %v2261
        %v2391 = vpack.c.bf16 %v2263, %v2262
        %v2392 = vpack.c.bf16 %v2264, %v2264
        %v2393 = vpack.c.bf16 %v2272, %v2271
        %v2394 = vpack.c.bf16 %v2273, %v2273
        %v2395 = vpack.c.bf16 %v2275, %v2274
        %v2396 = vpack.c.bf16 %v2276, %v2276
        %v2397 = vpack.c.bf16 %v2284, %v2283
        %v2398 = vpack.c.bf16 %v2285, %v2285
        %v2399 = vpack.c.bf16 %v2287, %v2286
        %v2400 = vpack.c.bf16 %v2288, %v2288
        %v2401 = vpack.c.bf16 %v2296, %v2295
        %v2402 = vpack.c.bf16 %v2297, %v2297
        %v2403 = vpack.c.bf16 %v2299, %v2298
        %v2404 = vpack.c.bf16 %v2300, %v2300
        %v2405 = vpack.c.bf16 %v2308, %v2307
        %v2406 = vpack.c.bf16 %v2309, %v2309
        %v2407 = vpack.c.bf16 %v2311, %v2310
        %v2408 = vpack.c.bf16 %v2312, %v2312
        %v2409 = vpack.c.bf16 %v2320, %v2319
        %v2410 = vpack.c.bf16 %v2321, %v2321
        %v2411 = vpack.c.bf16 %v2323, %v2322
        %v2412 = vpack.c.bf16 %v2324, %v2324
        %v2413 = vpack.c.bf16 %v2332, %v2331
        %v2414 = vpack.c.bf16 %v2333, %v2333
        %v2415 = vpack.c.bf16 %v2335, %v2334
        %v2416 = vpack.c.bf16 %v2336, %v2336
        %v2417 = vld [vmem:[%s3] sm:$0xff]
        %v2418 = vld [vmem:[%s3 + $0x8] sm:$0xff]
        %v2419 = vld [vmem:[%s3 + $0x10] sm:$0xff]
        %v2420 = vld [vmem:[%s3 + $0x18] sm:$0xff]
        %v2421 = vld [vmem:[%s3 + $0x20] sm:$0xff]
        %v2422 = vld [vmem:[%s3 + $0x28] sm:$0xff]
        %v2423 = vld [vmem:[%s3 + $0x30] sm:$0xff]
        %v2424 = vld [vmem:[%s3 + $0x38] sm:$0xff]
        %v2425 = vld [vmem:[%s3 + $0x40] sm:$0xff]
        %v2426 = vld [vmem:[%s3 + $0x48] sm:$0xff]
        %v2427 = vld [vmem:[%s3 + $0x50] sm:$0xff]
        %v2428 = vld [vmem:[%s3 + $0x58] sm:$0xff]
        %v2429 = vld [vmem:[%s3 + $0x60] sm:$0xff]
        %v2430 = vld [vmem:[%s3 + $0x68] sm:$0xff]
        %v2431 = vld [vmem:[%s3 + $0x70] sm:$0xff]
        %v2432 = vld [vmem:[%s3 + $0x78] sm:$0xff]
        %v2433 = vld [vmem:[%s3 + $0x80] sm:$0xff]
        %v2434 = vld [vmem:[%s3 + $0x88] sm:$0xff]
        %v2435 = vld [vmem:[%s3 + $0x90] sm:$0xff]
        %v2436 = vld [vmem:[%s3 + $0x98] sm:$0xff]
        %v2437 = vld [vmem:[%s3 + $0xa0] sm:$0xff]
        %v2438 = vld [vmem:[%s3 + $0xa8] sm:$0xff]
        %v2439 = vld [vmem:[%s3 + $0xb0] sm:$0xff]
        %v2440 = vld [vmem:[%s3 + $0xb8] sm:$0xff]
        %v2441 = vld [vmem:[%s3 + $0xc0] sm:$0xff]
        %v2442 = vld [vmem:[%s3 + $0xc8] sm:$0xff]
        %v2443 = vld [vmem:[%s3 + $0xd0] sm:$0xff]
        %v2444 = vld [vmem:[%s3 + $0xd8] sm:$0xff]
        %v2445 = vld [vmem:[%s3 + $0xe0] sm:$0xff]
        %v2446 = vld [vmem:[%s3 + $0xe8] sm:$0xff]
        %v2447 = vld [vmem:[%s3 + $0xf0] sm:$0xff]
        %v2448 = vld [vmem:[%s3 + $0xf8] sm:$0xff]
        %v2449 = vld [vmem:[%s3 + $0x100] sm:$0xff]
        %v2450 = vld [vmem:[%s3 + $0x108] sm:$0xff]
        %v2451 = vld [vmem:[%s3 + $0x110] sm:$0xff]
        %v2452 = vld [vmem:[%s3 + $0x118] sm:$0xff]
        %v2453 = vld [vmem:[%s3 + $0x120] sm:$0xff]
        %v2454 = vld [vmem:[%s3 + $0x128] sm:$0xff]
        %v2455 = vld [vmem:[%s3 + $0x130] sm:$0xff]
        %v2456 = vld [vmem:[%s3 + $0x138] sm:$0xff]
        %v2457 = vld [vmem:[%s3 + $0x140] sm:$0xff]
        %v2458 = vld [vmem:[%s3 + $0x148] sm:$0xff]
        %v2459 = vld [vmem:[%s3 + $0x150] sm:$0xff]
        %v2460 = vld [vmem:[%s3 + $0x158] sm:$0xff]
        %v2461 = vld [vmem:[%s3 + $0x160] sm:$0xff]
        %v2462 = vld [vmem:[%s3 + $0x168] sm:$0xff]
        %v2463 = vld [vmem:[%s3 + $0x170] sm:$0xff]
        %v2464 = vld [vmem:[%s3 + $0x178] sm:$0xff]
        %vm2465 = vsmask.f32 3328
        %vm2466 = vsmask.f32 7440
        %vm2467 = vmor %vm2465, %vm2466
        %v2469 = vshrl.u32 %v2385, 16
        %v2471 = vrot.slane %v2469, 4
        %v2472 = vshll.u32 %v2385, 16
        %v2474 = vrot.slane %v2472, 5
        %v2475 = vor.u32 %v2471, %v2474
        %v2476 = vrot.slane %v2475, 4
        %v2478 = vshll.u32 %v2387, 16
        %v2480 = vrot.slane %v2478, 5
        %v2481 = vsel %vm2467, %v2476, %v2480
        %v2483 = vshrl.u32 %v2386, 16
        %v2485 = vrot.slane %v2483, 4
        %v2486 = vshll.u32 %v2386, 16
        %v2488 = vrot.slane %v2486, 5
        %v2489 = vor.u32 %v2485, %v2488
        %v2490 = vrot.slane %v2489, 4
        %v2492 = vshll.u32 %v2388, 16
        %v2494 = vrot.slane %v2492, 5
        %v2495 = vsel %vm2467, %v2490, %v2494
        %v2497 = vshrl.u32 %v2389, 16
        %v2499 = vrot.slane %v2497, 4
        %v2500 = vshll.u32 %v2389, 16
        %v2502 = vrot.slane %v2500, 5
        %v2503 = vor.u32 %v2499, %v2502
        %v2504 = vrot.slane %v2503, 4
        %v2506 = vshll.u32 %v2391, 16
        %v2508 = vrot.slane %v2506, 5
        %v2509 = vsel %vm2467, %v2504, %v2508
        %v2511 = vshrl.u32 %v2390, 16
        %v2513 = vrot.slane %v2511, 4
        %v2514 = vshll.u32 %v2390, 16
        %v2516 = vrot.slane %v2514, 5
        %v2517 = vor.u32 %v2513, %v2516
        %v2518 = vrot.slane %v2517, 4
        %v2520 = vshll.u32 %v2392, 16
        %v2522 = vrot.slane %v2520, 5
        %v2523 = vsel %vm2467, %v2518, %v2522
        %v2525 = vshrl.u32 %v2393, 16
        %v2527 = vrot.slane %v2525, 4
        %v2528 = vshll.u32 %v2393, 16
        %v2530 = vrot.slane %v2528, 5
        %v2531 = vor.u32 %v2527, %v2530
        %v2532 = vrot.slane %v2531, 4
        %v2534 = vshll.u32 %v2395, 16
        %v2536 = vrot.slane %v2534, 5
        %v2537 = vsel %vm2467, %v2532, %v2536
        %v2539 = vshrl.u32 %v2394, 16
        %v2541 = vrot.slane %v2539, 4
        %v2542 = vshll.u32 %v2394, 16
        %v2544 = vrot.slane %v2542, 5
        %v2545 = vor.u32 %v2541, %v2544
        %v2546 = vrot.slane %v2545, 4
        %v2548 = vshll.u32 %v2396, 16
        %v2550 = vrot.slane %v2548, 5
        %v2551 = vsel %vm2467, %v2546, %v2550
        %v2553 = vshrl.u32 %v2397, 16
        %v2555 = vrot.slane %v2553, 4
        %v2556 = vshll.u32 %v2397, 16
        %v2558 = vrot.slane %v2556, 5
        %v2559 = vor.u32 %v2555, %v2558
        %v2560 = vrot.slane %v2559, 4
        %v2562 = vshll.u32 %v2399, 16
        %v2564 = vrot.slane %v2562, 5
        %v2565 = vsel %vm2467, %v2560, %v2564
        %v2567 = vshrl.u32 %v2398, 16
        %v2569 = vrot.slane %v2567, 4
        %v2570 = vshll.u32 %v2398, 16
        %v2572 = vrot.slane %v2570, 5
        %v2573 = vor.u32 %v2569, %v2572
        %v2574 = vrot.slane %v2573, 4
        %v2576 = vshll.u32 %v2400, 16
        %v2578 = vrot.slane %v2576, 5
        %v2579 = vsel %vm2467, %v2574, %v2578
        %v2581 = vshrl.u32 %v2401, 16
        %v2583 = vrot.slane %v2581, 4
        %v2584 = vshll.u32 %v2401, 16
        %v2586 = vrot.slane %v2584, 5
        %v2587 = vor.u32 %v2583, %v2586
        %v2588 = vrot.slane %v2587, 4
        %v2590 = vshll.u32 %v2403, 16
        %v2592 = vrot.slane %v2590, 5
        %v2593 = vsel %vm2467, %v2588, %v2592
        %v2595 = vshrl.u32 %v2402, 16
        %v2597 = vrot.slane %v2595, 4
        %v2598 = vshll.u32 %v2402, 16
        %v2600 = vrot.slane %v2598, 5
        %v2601 = vor.u32 %v2597, %v2600
        %v2602 = vrot.slane %v2601, 4
        %v2604 = vshll.u32 %v2404, 16
        %v2606 = vrot.slane %v2604, 5
        %v2607 = vsel %vm2467, %v2602, %v2606
        %v2609 = vshrl.u32 %v2405, 16
        %v2611 = vrot.slane %v2609, 4
        %v2612 = vshll.u32 %v2405, 16
        %v2614 = vrot.slane %v2612, 5
        %v2615 = vor.u32 %v2611, %v2614
        %v2616 = vrot.slane %v2615, 4
        %v2618 = vshll.u32 %v2407, 16
        %v2620 = vrot.slane %v2618, 5
        %v2621 = vsel %vm2467, %v2616, %v2620
        %v2623 = vshrl.u32 %v2406, 16
        %v2625 = vrot.slane %v2623, 4
        %v2626 = vshll.u32 %v2406, 16
        %v2628 = vrot.slane %v2626, 5
        %v2629 = vor.u32 %v2625, %v2628
        %v2630 = vrot.slane %v2629, 4
        %v2632 = vshll.u32 %v2408, 16
        %v2634 = vrot.slane %v2632, 5
        %v2635 = vsel %vm2467, %v2630, %v2634
        %v2637 = vshrl.u32 %v2409, 16
        %v2639 = vrot.slane %v2637, 4
        %v2640 = vshll.u32 %v2409, 16
        %v2642 = vrot.slane %v2640, 5
        %v2643 = vor.u32 %v2639, %v2642
        %v2644 = vrot.slane %v2643, 4
        %v2646 = vshll.u32 %v2411, 16
        %v2648 = vrot.slane %v2646, 5
        %v2649 = vsel %vm2467, %v2644, %v2648
        %v2651 = vshrl.u32 %v2410, 16
        %v2653 = vrot.slane %v2651, 4
        %v2654 = vshll.u32 %v2410, 16
        %v2656 = vrot.slane %v2654, 5
        %v2657 = vor.u32 %v2653, %v2656
        %v2658 = vrot.slane %v2657, 4
        %v2660 = vshll.u32 %v2412, 16
        %v2662 = vrot.slane %v2660, 5
        %v2663 = vsel %vm2467, %v2658, %v2662
        %v2665 = vshrl.u32 %v2413, 16
        %v2667 = vrot.slane %v2665, 4
        %v2668 = vshll.u32 %v2413, 16
        %v2670 = vrot.slane %v2668, 5
        %v2671 = vor.u32 %v2667, %v2670
        %v2672 = vrot.slane %v2671, 4
        %v2674 = vshll.u32 %v2415, 16
        %v2676 = vrot.slane %v2674, 5
        %v2677 = vsel %vm2467, %v2672, %v2676
        %v2679 = vshrl.u32 %v2414, 16
        %v2681 = vrot.slane %v2679, 4
        %v2682 = vshll.u32 %v2414, 16
        %v2684 = vrot.slane %v2682, 5
        %v2685 = vor.u32 %v2681, %v2684
        %v2686 = vrot.slane %v2685, 4
        %v2688 = vshll.u32 %v2416, 16
        %v2690 = vrot.slane %v2688, 5
        %v2691 = vsel %vm2467, %v2686, %v2690
        %s2692 = scalar_lea.vmem %s3, 384
        %v2693 = vld [vmem:[%s2692] sm:$0xff]
        %v2694 = vld [vmem:[%s2692 + $0x8] sm:$0xff]
        %v2695 = vld [vmem:[%s2692 + $0x10] sm:$0xff]
        %v2696 = vld [vmem:[%s2692 + $0x18] sm:$0xff]
        %v2697 = vld [vmem:[%s2692 + $0x20] sm:$0xff]
        %v2698 = vld [vmem:[%s2692 + $0x28] sm:$0xff]
        %v2699 = vld [vmem:[%s2692 + $0x30] sm:$0xff]
        %v2700 = vld [vmem:[%s2692 + $0x38] sm:$0xff]
        %v2701 = vld [vmem:[%s2692 + $0x40] sm:$0xff]
        %v2702 = vld [vmem:[%s2692 + $0x48] sm:$0xff]
        %v2703 = vld [vmem:[%s2692 + $0x50] sm:$0xff]
        %v2704 = vld [vmem:[%s2692 + $0x58] sm:$0xff]
        %v2705 = vld [vmem:[%s2692 + $0x60] sm:$0xff]
        %v2706 = vld [vmem:[%s2692 + $0x68] sm:$0xff]
        %v2707 = vld [vmem:[%s2692 + $0x70] sm:$0xff]
        %v2708 = vld [vmem:[%s2692 + $0x78] sm:$0xff]
        %v2709 = vld [vmem:[%s2692 + $0x80] sm:$0xff]
        %v2710 = vld [vmem:[%s2692 + $0x88] sm:$0xff]
        %v2711 = vld [vmem:[%s2692 + $0x90] sm:$0xff]
        %v2712 = vld [vmem:[%s2692 + $0x98] sm:$0xff]
        %v2713 = vld [vmem:[%s2692 + $0xa0] sm:$0xff]
        %v2714 = vld [vmem:[%s2692 + $0xa8] sm:$0xff]
        %v2715 = vld [vmem:[%s2692 + $0xb0] sm:$0xff]
        %v2716 = vld [vmem:[%s2692 + $0xb8] sm:$0xff]
        %v2717 = vld [vmem:[%s2692 + $0xc0] sm:$0xff]
        %v2718 = vld [vmem:[%s2692 + $0xc8] sm:$0xff]
        %v2719 = vld [vmem:[%s2692 + $0xd0] sm:$0xff]
        %v2720 = vld [vmem:[%s2692 + $0xd8] sm:$0xff]
        %v2721 = vld [vmem:[%s2692 + $0xe0] sm:$0xff]
        %v2722 = vld [vmem:[%s2692 + $0xe8] sm:$0xff]
        %v2723 = vld [vmem:[%s2692 + $0xf0] sm:$0xff]
        %v2724 = vld [vmem:[%s2692 + $0xf8] sm:$0xff]
        %v2725 = vld [vmem:[%s2692 + $0x100] sm:$0xff]
        %v2726 = vld [vmem:[%s2692 + $0x108] sm:$0xff]
        %v2727 = vld [vmem:[%s2692 + $0x110] sm:$0xff]
        %v2728 = vld [vmem:[%s2692 + $0x118] sm:$0xff]
        %v2729 = vld [vmem:[%s2692 + $0x120] sm:$0xff]
        %v2730 = vld [vmem:[%s2692 + $0x128] sm:$0xff]
        %v2731 = vld [vmem:[%s2692 + $0x130] sm:$0xff]
        %v2732 = vld [vmem:[%s2692 + $0x138] sm:$0xff]
        %v2733 = vld [vmem:[%s2692 + $0x140] sm:$0xff]
        %v2734 = vld [vmem:[%s2692 + $0x148] sm:$0xff]
        %v2735 = vld [vmem:[%s2692 + $0x150] sm:$0xff]
        %v2736 = vld [vmem:[%s2692 + $0x158] sm:$0xff]
        %v2737 = vld [vmem:[%s2692 + $0x160] sm:$0xff]
        %v2738 = vld [vmem:[%s2692 + $0x168] sm:$0xff]
        %v2739 = vld [vmem:[%s2692 + $0x170] sm:$0xff]
        %v2740 = vld [vmem:[%s2692 + $0x178] sm:$0xff]
        %v2741 = vunpack.c.l.b16 %v2481
        %v2742 = vunpack.c.h.b16 %v2481
        %v2743 = vunpack.c.l.b16 %v2495
        %v2744 = vunpack.c.l.b16 %v2509
        %v2745 = vunpack.c.h.b16 %v2509
        %v2746 = vunpack.c.l.b16 %v2523
        %v2747 = vunpack.c.l.b16 %v2537
        %v2748 = vunpack.c.h.b16 %v2537
        %v2749 = vunpack.c.l.b16 %v2551
        %v2750 = vunpack.c.l.b16 %v2565
        %v2751 = vunpack.c.h.b16 %v2565
        %v2752 = vunpack.c.l.b16 %v2579
        %v2753 = vunpack.c.l.b16 %v2593
        %v2754 = vunpack.c.h.b16 %v2593
        %v2755 = vunpack.c.l.b16 %v2607
        %v2756 = vunpack.c.l.b16 %v2621
        %v2757 = vunpack.c.h.b16 %v2621
        %v2758 = vunpack.c.l.b16 %v2635
        %v2759 = vunpack.c.l.b16 %v2649
        %v2760 = vunpack.c.h.b16 %v2649
        %v2761 = vunpack.c.l.b16 %v2663
        %v2762 = vunpack.c.l.b16 %v2677
        %v2763 = vunpack.c.h.b16 %v2677
        %v2764 = vunpack.c.l.b16 %v2691
        %v2765 = vpack.c.b16 %v2744, %v2741
        %v2766 = vpack.c.b16 %v2745, %v2742
        %v2767 = vpack.c.b16 %v2746, %v2743
        %v2768 = vpack.c.b16 %v2750, %v2747
        %v2769 = vpack.c.b16 %v2751, %v2748
        %v2770 = vpack.c.b16 %v2752, %v2749
        %v2771 = vpack.c.b16 %v2756, %v2753
        %v2772 = vpack.c.b16 %v2757, %v2754
        %v2773 = vpack.c.b16 %v2758, %v2755
        %v2774 = vpack.c.b16 %v2762, %v2759
        %v2775 = vpack.c.b16 %v2763, %v2760
        %v2776 = vpack.c.b16 %v2764, %v2761
        %v2837 = vunpack.c.l.b16 %v2693
        %v2838 = vunpack.c.h.b16 %v2693
        %v2839 = vunpack.c.l.b16 %v2694
        %v2840 = vunpack.c.h.b16 %v2694
        %v2841 = vunpack.c.l.b16 %v2695
        %v2842 = vunpack.c.h.b16 %v2695
        %v2843 = vunpack.c.l.b16 %v2696
        %v2844 = vunpack.c.h.b16 %v2696
        %v2845 = vunpack.c.l.b16 %v2697
        %v2846 = vunpack.c.h.b16 %v2697
        %v2847 = vunpack.c.l.b16 %v2698
        %v2848 = vunpack.c.h.b16 %v2698
        %v2849 = vunpack.c.l.b16 %v2699
        %v2850 = vunpack.c.h.b16 %v2699
        %v2851 = vunpack.c.l.b16 %v2700
        %v2852 = vunpack.c.h.b16 %v2700
        %v2853 = vunpack.c.l.b16 %v2701
        %v2854 = vunpack.c.h.b16 %v2701
        %v2855 = vunpack.c.l.b16 %v2702
        %v2856 = vunpack.c.h.b16 %v2702
        %v2857 = vunpack.c.l.b16 %v2703
        %v2858 = vunpack.c.h.b16 %v2703
        %v2859 = vunpack.c.l.b16 %v2704
        %v2860 = vunpack.c.h.b16 %v2704
        %v2861 = vunpack.c.l.b16 %v2705
        %v2862 = vunpack.c.h.b16 %v2705
        %v2863 = vunpack.c.l.b16 %v2706
        %v2864 = vunpack.c.h.b16 %v2706
        %v2865 = vunpack.c.l.b16 %v2707
        %v2866 = vunpack.c.h.b16 %v2707
        %v2867 = vunpack.c.l.b16 %v2708
        %v2868 = vunpack.c.h.b16 %v2708
        %v2869 = vunpack.c.l.b16 %v2709
        %v2870 = vunpack.c.h.b16 %v2709
        %v2871 = vunpack.c.l.b16 %v2710
        %v2872 = vunpack.c.h.b16 %v2710
        %v2873 = vunpack.c.l.b16 %v2711
        %v2874 = vunpack.c.h.b16 %v2711
        %v2875 = vunpack.c.l.b16 %v2712
        %v2876 = vunpack.c.h.b16 %v2712
        %v2877 = vunpack.c.l.b16 %v2713
        %v2878 = vunpack.c.h.b16 %v2713
        %v2879 = vunpack.c.l.b16 %v2714
        %v2880 = vunpack.c.h.b16 %v2714
        %v2881 = vunpack.c.l.b16 %v2715
        %v2882 = vunpack.c.h.b16 %v2715
        %v2883 = vunpack.c.l.b16 %v2716
        %v2884 = vunpack.c.h.b16 %v2716
        %v2885 = vunpack.c.l.b16 %v2717
        %v2886 = vunpack.c.h.b16 %v2717
        %v2887 = vunpack.c.l.b16 %v2718
        %v2888 = vunpack.c.h.b16 %v2718
        %v2889 = vunpack.c.l.b16 %v2719
        %v2890 = vunpack.c.h.b16 %v2719
        %v2891 = vunpack.c.l.b16 %v2720
        %v2892 = vunpack.c.h.b16 %v2720
        %v2893 = vunpack.c.l.b16 %v2721
        %v2894 = vunpack.c.h.b16 %v2721
        %v2895 = vunpack.c.l.b16 %v2722
        %v2896 = vunpack.c.h.b16 %v2722
        %v2897 = vunpack.c.l.b16 %v2723
        %v2898 = vunpack.c.h.b16 %v2723
        %v2899 = vunpack.c.l.b16 %v2724
        %v2900 = vunpack.c.h.b16 %v2724
        %v2901 = vunpack.c.l.b16 %v2725
        %v2902 = vunpack.c.h.b16 %v2725
        %v2903 = vunpack.c.l.b16 %v2726
        %v2904 = vunpack.c.h.b16 %v2726
        %v2905 = vunpack.c.l.b16 %v2727
        %v2906 = vunpack.c.h.b16 %v2727
        %v2907 = vunpack.c.l.b16 %v2728
        %v2908 = vunpack.c.h.b16 %v2728
        %v2909 = vunpack.c.l.b16 %v2729
        %v2910 = vunpack.c.h.b16 %v2729
        %v2911 = vunpack.c.l.b16 %v2730
        %v2912 = vunpack.c.h.b16 %v2730
        %v2913 = vunpack.c.l.b16 %v2731
        %v2914 = vunpack.c.h.b16 %v2731
        %v2915 = vunpack.c.l.b16 %v2732
        %v2916 = vunpack.c.h.b16 %v2732
        %v2917 = vunpack.c.l.b16 %v2733
        %v2918 = vunpack.c.h.b16 %v2733
        %v2919 = vunpack.c.l.b16 %v2734
        %v2920 = vunpack.c.h.b16 %v2734
        %v2921 = vunpack.c.l.b16 %v2735
        %v2922 = vunpack.c.h.b16 %v2735
        %v2923 = vunpack.c.l.b16 %v2736
        %v2924 = vunpack.c.h.b16 %v2736
        %v2925 = vunpack.c.l.b16 %v2737
        %v2926 = vunpack.c.h.b16 %v2737
        %v2927 = vunpack.c.l.b16 %v2738
        %v2928 = vunpack.c.h.b16 %v2738
        %v2929 = vunpack.c.l.b16 %v2739
        %v2930 = vunpack.c.h.b16 %v2739
        %v2931 = vunpack.c.l.b16 %v2740
        %v2932 = vunpack.c.h.b16 %v2740
        %v2933 = vpack.c.b16 %v2839, %v2837
        %v2934 = vpack.c.b16 %v2840, %v2838
        %v2935 = vpack.c.b16 %v2843, %v2841
        %v2936 = vpack.c.b16 %v2844, %v2842
        %v2937 = vpack.c.b16 %v2847, %v2845
        %v2938 = vpack.c.b16 %v2848, %v2846
        %v2939 = vpack.c.b16 %v2851, %v2849
        %v2940 = vpack.c.b16 %v2852, %v2850
        %v2941 = vpack.c.b16 %v2855, %v2853
        %v2942 = vpack.c.b16 %v2856, %v2854
        %v2943 = vpack.c.b16 %v2859, %v2857
        %v2944 = vpack.c.b16 %v2860, %v2858
        %v2945 = vpack.c.b16 %v2863, %v2861
        %v2946 = vpack.c.b16 %v2864, %v2862
        %v2947 = vpack.c.b16 %v2867, %v2865
        %v2948 = vpack.c.b16 %v2868, %v2866
        %v2949 = vpack.c.b16 %v2871, %v2869
        %v2950 = vpack.c.b16 %v2872, %v2870
        %v2951 = vpack.c.b16 %v2875, %v2873
        %v2952 = vpack.c.b16 %v2876, %v2874
        %v2953 = vpack.c.b16 %v2879, %v2877
        %v2954 = vpack.c.b16 %v2880, %v2878
        %v2955 = vpack.c.b16 %v2883, %v2881
        %v2956 = vpack.c.b16 %v2884, %v2882
        %v2957 = vpack.c.b16 %v2887, %v2885
        %v2958 = vpack.c.b16 %v2888, %v2886
        %v2959 = vpack.c.b16 %v2891, %v2889
        %v2960 = vpack.c.b16 %v2892, %v2890
        %v2961 = vpack.c.b16 %v2895, %v2893
        %v2962 = vpack.c.b16 %v2896, %v2894
        %v2963 = vpack.c.b16 %v2899, %v2897
        %v2964 = vpack.c.b16 %v2900, %v2898
        %v2965 = vpack.c.b16 %v2903, %v2901
        %v2966 = vpack.c.b16 %v2904, %v2902
        %v2967 = vpack.c.b16 %v2907, %v2905
        %v2968 = vpack.c.b16 %v2908, %v2906
        %v2969 = vpack.c.b16 %v2911, %v2909
        %v2970 = vpack.c.b16 %v2912, %v2910
        %v2971 = vpack.c.b16 %v2915, %v2913
        %v2972 = vpack.c.b16 %v2916, %v2914
        %v2973 = vpack.c.b16 %v2919, %v2917
        %v2974 = vpack.c.b16 %v2920, %v2918
        %v2975 = vpack.c.b16 %v2923, %v2921
        %v2976 = vpack.c.b16 %v2924, %v2922
        %v2977 = vpack.c.b16 %v2927, %v2925
        %v2978 = vpack.c.b16 %v2928, %v2926
        %v2979 = vpack.c.b16 %v2931, %v2929
        %v2980 = vpack.c.b16 %v2932, %v2930
        %3029 = vmatpush.bf16.msra.mxu0 %v2947
        %3030 = vmatpush.bf16.msra.mxu0 %v2945
        %3031 = vmatpush.bf16.msra.mxu0 %v2943
        %3032 = vmatpush.bf16.msra.mxu0 %v2941
        %3033 = vmatpush.bf16.msra.mxu0 %v2939
        %3034 = vmatpush.bf16.msra.mxu0 %v2937
        %3035 = vmatpush.bf16.msra.mxu0 %v2935
        %3036 = vmatpush.bf16.msra.mxu0 %v2933
        %3037 = vmatmul.bf16.gmra.mxu0 %v2765
        %v3038 = vpop.f32.mrf.mxu0
        %v3039 = vadd.f32 0.0, %v3038
        %v3040 = vpop.f32.mrf.mxu0
        %v3041 = vadd.f32 0.0, %v3040
        %3042 = vmatmul.bf16.gmra.mxu0 %v2768
        %v3043 = vpop.f32.mrf.mxu0
        %v3044 = vadd.f32 0.0, %v3043
        %v3045 = vpop.f32.mrf.mxu0
        %v3046 = vadd.f32 0.0, %v3045
        %3047 = vmatmul.bf16.gmra.mxu0 %v2771
        %v3048 = vpop.f32.mrf.mxu0
        %v3049 = vadd.f32 0.0, %v3048
        %v3050 = vpop.f32.mrf.mxu0
        %v3051 = vadd.f32 0.0, %v3050
        %3052 = vmatmul.bf16.gmra.mxu0 %v2774
        %v3053 = vpop.f32.mrf.mxu0
        %v3054 = vadd.f32 0.0, %v3053
        %v3055 = vpop.f32.mrf.mxu0
        %v3056 = vadd.f32 0.0, %v3055
        %3057 = vdwg.mxu0
        %3058 = vmatpush.bf16.msra.mxu0 %v2963
        %3059 = vmatpush.bf16.msra.mxu0 %v2961
        %3060 = vmatpush.bf16.msra.mxu0 %v2959
        %3061 = vmatpush.bf16.msra.mxu0 %v2957
        %3062 = vmatpush.bf16.msra.mxu0 %v2955
        %3063 = vmatpush.bf16.msra.mxu0 %v2953
        %3064 = vmatpush.bf16.msra.mxu0 %v2951
        %3065 = vmatpush.bf16.msra.mxu0 %v2949
        %3066 = vmatmul.bf16.gmra.mxu0 %v2766
        %v3067 = vpop.f32.mrf.mxu0
        %v3068 = vadd.f32 %v3039, %v3067
        %v3069 = vpop.f32.mrf.mxu0
        %v3070 = vadd.f32 %v3041, %v3069
        %3071 = vmatmul.bf16.gmra.mxu0 %v2769
        %v3072 = vpop.f32.mrf.mxu0
        %v3073 = vadd.f32 %v3044, %v3072
        %v3074 = vpop.f32.mrf.mxu0
        %v3075 = vadd.f32 %v3046, %v3074
        %3076 = vmatmul.bf16.gmra.mxu0 %v2772
        %v3077 = vpop.f32.mrf.mxu0
        %v3078 = vadd.f32 %v3049, %v3077
        %v3079 = vpop.f32.mrf.mxu0
        %v3080 = vadd.f32 %v3051, %v3079
        %3081 = vmatmul.bf16.gmra.mxu0 %v2775
        %v3082 = vpop.f32.mrf.mxu0
        %v3083 = vadd.f32 %v3054, %v3082
        %v3084 = vpop.f32.mrf.mxu0
        %v3085 = vadd.f32 %v3056, %v3084
        %3086 = vdwg.mxu0
        %3087 = vmatpush.bf16.msra.mxu0 %v2979
        %3088 = vmatpush.bf16.msra.mxu0 %v2977
        %3089 = vmatpush.bf16.msra.mxu0 %v2975
        %3090 = vmatpush.bf16.msra.mxu0 %v2973
        %3091 = vmatpush.bf16.msra.mxu0 %v2971
        %3092 = vmatpush.bf16.msra.mxu0 %v2969
        %3093 = vmatpush.bf16.msra.mxu0 %v2967
        %3094 = vmatpush.bf16.msra.mxu0 %v2965
        %3095 = vmatmul.bf16.gmra.mxu0 %v2767
        %v3096 = vpop.f32.mrf.mxu0
        %v3097 = vadd.f32 %v3068, %v3096
        %v3098 = vpop.f32.mrf.mxu0
        %v3099 = vadd.f32 %v3070, %v3098
        %3100 = vmatmul.bf16.gmra.mxu0 %v2770
        %v3101 = vpop.f32.mrf.mxu0
        %v3102 = vadd.f32 %v3073, %v3101
        %v3103 = vpop.f32.mrf.mxu0
        %v3104 = vadd.f32 %v3075, %v3103
        %3105 = vmatmul.bf16.gmra.mxu0 %v2773
        %v3106 = vpop.f32.mrf.mxu0
        %v3107 = vadd.f32 %v3078, %v3106
        %v3108 = vpop.f32.mrf.mxu0
        %v3109 = vadd.f32 %v3080, %v3108
        %3110 = vmatmul.bf16.gmra.mxu0 %v2776
        %v3111 = vpop.f32.mrf.mxu0
        %v3112 = vadd.f32 %v3083, %v3111
        %v3113 = vpop.f32.mrf.mxu0
        %v3114 = vadd.f32 %v3085, %v3113
        %3115 = vdwg.mxu0
        %3116 = vmatpush.bf16.msra.mxu0 %v2948
        %3117 = vmatpush.bf16.msra.mxu0 %v2946
        %3118 = vmatpush.bf16.msra.mxu0 %v2944
        %3119 = vmatpush.bf16.msra.mxu0 %v2942
        %3120 = vmatpush.bf16.msra.mxu0 %v2940
        %3121 = vmatpush.bf16.msra.mxu0 %v2938
        %3122 = vmatpush.bf16.msra.mxu0 %v2936
        %3123 = vmatpush.bf16.msra.mxu0 %v2934
        %3124 = vmatmul.bf16.gmra.mxu0 %v2765
        %v3125 = vpop.f32.mrf.mxu0
        %v3126 = vadd.f32 0.0, %v3125
        %v3127 = vpop.f32.mrf.mxu0
        %v3128 = vadd.f32 0.0, %v3127
        %3129 = vmatmul.bf16.gmra.mxu0 %v2768
        %v3130 = vpop.f32.mrf.mxu0
        %v3131 = vadd.f32 0.0, %v3130
        %v3132 = vpop.f32.mrf.mxu0
        %v3133 = vadd.f32 0.0, %v3132
        %3134 = vmatmul.bf16.gmra.mxu0 %v2771
        %v3135 = vpop.f32.mrf.mxu0
        %v3136 = vadd.f32 0.0, %v3135
        %v3137 = vpop.f32.mrf.mxu0
        %v3138 = vadd.f32 0.0, %v3137
        %3139 = vmatmul.bf16.gmra.mxu0 %v2774
        %v3140 = vpop.f32.mrf.mxu0
        %v3141 = vadd.f32 0.0, %v3140
        %v3142 = vpop.f32.mrf.mxu0
        %v3143 = vadd.f32 0.0, %v3142
        %3144 = vdwg.mxu0
        %3145 = vmatpush.bf16.msra.mxu0 %v2964
        %3146 = vmatpush.bf16.msra.mxu0 %v2962
        %3147 = vmatpush.bf16.msra.mxu0 %v2960
        %3148 = vmatpush.bf16.msra.mxu0 %v2958
        %3149 = vmatpush.bf16.msra.mxu0 %v2956
        %3150 = vmatpush.bf16.msra.mxu0 %v2954
        %3151 = vmatpush.bf16.msra.mxu0 %v2952
        %3152 = vmatpush.bf16.msra.mxu0 %v2950
        %3153 = vmatmul.bf16.gmra.mxu0 %v2766
        %v3154 = vpop.f32.mrf.mxu0
        %v3155 = vadd.f32 %v3126, %v3154
        %v3156 = vpop.f32.mrf.mxu0
        %v3157 = vadd.f32 %v3128, %v3156
        %3158 = vmatmul.bf16.gmra.mxu0 %v2769
        %v3159 = vpop.f32.mrf.mxu0
        %v3160 = vadd.f32 %v3131, %v3159
        %v3161 = vpop.f32.mrf.mxu0
        %v3162 = vadd.f32 %v3133, %v3161
        %3163 = vmatmul.bf16.gmra.mxu0 %v2772
        %v3164 = vpop.f32.mrf.mxu0
        %v3165 = vadd.f32 %v3136, %v3164
        %v3166 = vpop.f32.mrf.mxu0
        %v3167 = vadd.f32 %v3138, %v3166
        %3168 = vmatmul.bf16.gmra.mxu0 %v2775
        %v3169 = vpop.f32.mrf.mxu0
        %v3170 = vadd.f32 %v3141, %v3169
        %v3171 = vpop.f32.mrf.mxu0
        %v3172 = vadd.f32 %v3143, %v3171
        %3173 = vdwg.mxu0
        %3174 = vmatpush.bf16.msra.mxu0 %v2980
        %3175 = vmatpush.bf16.msra.mxu0 %v2978
        %3176 = vmatpush.bf16.msra.mxu0 %v2976
        %3177 = vmatpush.bf16.msra.mxu0 %v2974
        %3178 = vmatpush.bf16.msra.mxu0 %v2972
        %3179 = vmatpush.bf16.msra.mxu0 %v2970
        %3180 = vmatpush.bf16.msra.mxu0 %v2968
        %3181 = vmatpush.bf16.msra.mxu0 %v2966
        %3182 = vmatmul.bf16.gmra.mxu0 %v2767
        %v3183 = vpop.f32.mrf.mxu0
        %v3184 = vadd.f32 %v3155, %v3183
        %v3185 = vpop.f32.mrf.mxu0
        %v3186 = vadd.f32 %v3157, %v3185
        %3187 = vmatmul.bf16.gmra.mxu0 %v2770
        %v3188 = vpop.f32.mrf.mxu0
        %v3189 = vadd.f32 %v3160, %v3188
        %v3190 = vpop.f32.mrf.mxu0
        %v3191 = vadd.f32 %v3162, %v3190
        %3192 = vmatmul.bf16.gmra.mxu0 %v2773
        %v3193 = vpop.f32.mrf.mxu0
        %v3194 = vadd.f32 %v3165, %v3193
        %v3195 = vpop.f32.mrf.mxu0
        %v3196 = vadd.f32 %v3167, %v3195
        %3197 = vmatmul.bf16.gmra.mxu0 %v2776
        %v3198 = vpop.f32.mrf.mxu0
        %v3199 = vadd.f32 %v3170, %v3198
        %v3200 = vpop.f32.mrf.mxu0
        %v3201 = vadd.f32 %v3172, %v3200
        %3202 = vdwg.mxu0
        %v3219 = vunpack.c.l.b16 %v2385
        %v3220 = vunpack.c.h.b16 %v2385
        %v3221 = vunpack.c.l.b16 %v2386
        %v3222 = vunpack.c.l.b16 %v2389
        %v3223 = vunpack.c.h.b16 %v2389
        %v3224 = vunpack.c.l.b16 %v2390
        %v3225 = vunpack.c.l.b16 %v2393
        %v3226 = vunpack.c.h.b16 %v2393
        %v3227 = vunpack.c.l.b16 %v2394
        %v3228 = vunpack.c.l.b16 %v2397
        %v3229 = vunpack.c.h.b16 %v2397
        %v3230 = vunpack.c.l.b16 %v2398
        %v3231 = vunpack.c.l.b16 %v2401
        %v3232 = vunpack.c.h.b16 %v2401
        %v3233 = vunpack.c.l.b16 %v2402
        %v3234 = vunpack.c.l.b16 %v2405
        %v3235 = vunpack.c.h.b16 %v2405
        %v3236 = vunpack.c.l.b16 %v2406
        %v3237 = vunpack.c.l.b16 %v2409
        %v3238 = vunpack.c.h.b16 %v2409
        %v3239 = vunpack.c.l.b16 %v2410
        %v3240 = vunpack.c.l.b16 %v2413
        %v3241 = vunpack.c.h.b16 %v2413
        %v3242 = vunpack.c.l.b16 %v2414
        %v3243 = vpack.c.b16 %v3222, %v3219
        %v3244 = vpack.c.b16 %v3223, %v3220
        %v3245 = vpack.c.b16 %v3224, %v3221
        %v3246 = vpack.c.b16 %v3228, %v3225
        %v3247 = vpack.c.b16 %v3229, %v3226
        %v3248 = vpack.c.b16 %v3230, %v3227
        %v3249 = vpack.c.b16 %v3234, %v3231
        %v3250 = vpack.c.b16 %v3235, %v3232
        %v3251 = vpack.c.b16 %v3236, %v3233
        %v3252 = vpack.c.b16 %v3240, %v3237
        %v3253 = vpack.c.b16 %v3241, %v3238
        %v3254 = vpack.c.b16 %v3242, %v3239
        %v3315 = vunpack.c.l.b16 %v2417
        %v3316 = vunpack.c.h.b16 %v2417
        %v3317 = vunpack.c.l.b16 %v2418
        %v3318 = vunpack.c.h.b16 %v2418
        %v3319 = vunpack.c.l.b16 %v2419
        %v3320 = vunpack.c.h.b16 %v2419
        %v3321 = vunpack.c.l.b16 %v2420
        %v3322 = vunpack.c.h.b16 %v2420
        %v3323 = vunpack.c.l.b16 %v2421
        %v3324 = vunpack.c.h.b16 %v2421
        %v3325 = vunpack.c.l.b16 %v2422
        %v3326 = vunpack.c.h.b16 %v2422
        %v3327 = vunpack.c.l.b16 %v2423
        %v3328 = vunpack.c.h.b16 %v2423
        %v3329 = vunpack.c.l.b16 %v2424
        %v3330 = vunpack.c.h.b16 %v2424
        %v3331 = vunpack.c.l.b16 %v2425
        %v3332 = vunpack.c.h.b16 %v2425
        %v3333 = vunpack.c.l.b16 %v2426
        %v3334 = vunpack.c.h.b16 %v2426
        %v3335 = vunpack.c.l.b16 %v2427
        %v3336 = vunpack.c.h.b16 %v2427
        %v3337 = vunpack.c.l.b16 %v2428
        %v3338 = vunpack.c.h.b16 %v2428
        %v3339 = vunpack.c.l.b16 %v2429
        %v3340 = vunpack.c.h.b16 %v2429
        %v3341 = vunpack.c.l.b16 %v2430
        %v3342 = vunpack.c.h.b16 %v2430
        %v3343 = vunpack.c.l.b16 %v2431
        %v3344 = vunpack.c.h.b16 %v2431
        %v3345 = vunpack.c.l.b16 %v2432
        %v3346 = vunpack.c.h.b16 %v2432
        %v3347 = vunpack.c.l.b16 %v2433
        %v3348 = vunpack.c.h.b16 %v2433
        %v3349 = vunpack.c.l.b16 %v2434
        %v3350 = vunpack.c.h.b16 %v2434
        %v3351 = vunpack.c.l.b16 %v2435
        %v3352 = vunpack.c.h.b16 %v2435
        %v3353 = vunpack.c.l.b16 %v2436
        %v3354 = vunpack.c.h.b16 %v2436
        %v3355 = vunpack.c.l.b16 %v2437
        %v3356 = vunpack.c.h.b16 %v2437
        %v3357 = vunpack.c.l.b16 %v2438
        %v3358 = vunpack.c.h.b16 %v2438
        %v3359 = vunpack.c.l.b16 %v2439
        %v3360 = vunpack.c.h.b16 %v2439
        %v3361 = vunpack.c.l.b16 %v2440
        %v3362 = vunpack.c.h.b16 %v2440
        %v3363 = vunpack.c.l.b16 %v2441
        %v3364 = vunpack.c.h.b16 %v2441
        %v3365 = vunpack.c.l.b16 %v2442
        %v3366 = vunpack.c.h.b16 %v2442
        %v3367 = vunpack.c.l.b16 %v2443
        %v3368 = vunpack.c.h.b16 %v2443
        %v3369 = vunpack.c.l.b16 %v2444
        %v3370 = vunpack.c.h.b16 %v2444
        %v3371 = vunpack.c.l.b16 %v2445
        %v3372 = vunpack.c.h.b16 %v2445
        %v3373 = vunpack.c.l.b16 %v2446
        %v3374 = vunpack.c.h.b16 %v2446
        %v3375 = vunpack.c.l.b16 %v2447
        %v3376 = vunpack.c.h.b16 %v2447
        %v3377 = vunpack.c.l.b16 %v2448
        %v3378 = vunpack.c.h.b16 %v2448
        %v3379 = vunpack.c.l.b16 %v2449
        %v3380 = vunpack.c.h.b16 %v2449
        %v3381 = vunpack.c.l.b16 %v2450
        %v3382 = vunpack.c.h.b16 %v2450
        %v3383 = vunpack.c.l.b16 %v2451
        %v3384 = vunpack.c.h.b16 %v2451
        %v3385 = vunpack.c.l.b16 %v2452
        %v3386 = vunpack.c.h.b16 %v2452
        %v3387 = vunpack.c.l.b16 %v2453
        %v3388 = vunpack.c.h.b16 %v2453
        %v3389 = vunpack.c.l.b16 %v2454
        %v3390 = vunpack.c.h.b16 %v2454
        %v3391 = vunpack.c.l.b16 %v2455
        %v3392 = vunpack.c.h.b16 %v2455
        %v3393 = vunpack.c.l.b16 %v2456
        %v3394 = vunpack.c.h.b16 %v2456
        %v3395 = vunpack.c.l.b16 %v2457
        %v3396 = vunpack.c.h.b16 %v2457
        %v3397 = vunpack.c.l.b16 %v2458
        %v3398 = vunpack.c.h.b16 %v2458
        %v3399 = vunpack.c.l.b16 %v2459
        %v3400 = vunpack.c.h.b16 %v2459
        %v3401 = vunpack.c.l.b16 %v2460
        %v3402 = vunpack.c.h.b16 %v2460
        %v3403 = vunpack.c.l.b16 %v2461
        %v3404 = vunpack.c.h.b16 %v2461
        %v3405 = vunpack.c.l.b16 %v2462
        %v3406 = vunpack.c.h.b16 %v2462
        %v3407 = vunpack.c.l.b16 %v2463
        %v3408 = vunpack.c.h.b16 %v2463
        %v3409 = vunpack.c.l.b16 %v2464
        %v3410 = vunpack.c.h.b16 %v2464
        %v3411 = vpack.c.b16 %v3317, %v3315
        %v3412 = vpack.c.b16 %v3318, %v3316
        %v3413 = vpack.c.b16 %v3321, %v3319
        %v3414 = vpack.c.b16 %v3322, %v3320
        %v3415 = vpack.c.b16 %v3325, %v3323
        %v3416 = vpack.c.b16 %v3326, %v3324
        %v3417 = vpack.c.b16 %v3329, %v3327
        %v3418 = vpack.c.b16 %v3330, %v3328
        %v3419 = vpack.c.b16 %v3333, %v3331
        %v3420 = vpack.c.b16 %v3334, %v3332
        %v3421 = vpack.c.b16 %v3337, %v3335
        %v3422 = vpack.c.b16 %v3338, %v3336
        %v3423 = vpack.c.b16 %v3341, %v3339
        %v3424 = vpack.c.b16 %v3342, %v3340
        %v3425 = vpack.c.b16 %v3345, %v3343
        %v3426 = vpack.c.b16 %v3346, %v3344
        %v3427 = vpack.c.b16 %v3349, %v3347
        %v3428 = vpack.c.b16 %v3350, %v3348
        %v3429 = vpack.c.b16 %v3353, %v3351
        %v3430 = vpack.c.b16 %v3354, %v3352
        %v3431 = vpack.c.b16 %v3357, %v3355
        %v3432 = vpack.c.b16 %v3358, %v3356
        %v3433 = vpack.c.b16 %v3361, %v3359
        %v3434 = vpack.c.b16 %v3362, %v3360
        %v3435 = vpack.c.b16 %v3365, %v3363
        %v3436 = vpack.c.b16 %v3366, %v3364
        %v3437 = vpack.c.b16 %v3369, %v3367
        %v3438 = vpack.c.b16 %v3370, %v3368
        %v3439 = vpack.c.b16 %v3373, %v3371
        %v3440 = vpack.c.b16 %v3374, %v3372
        %v3441 = vpack.c.b16 %v3377, %v3375
        %v3442 = vpack.c.b16 %v3378, %v3376
        %v3443 = vpack.c.b16 %v3381, %v3379
        %v3444 = vpack.c.b16 %v3382, %v3380
        %v3445 = vpack.c.b16 %v3385, %v3383
        %v3446 = vpack.c.b16 %v3386, %v3384
        %v3447 = vpack.c.b16 %v3389, %v3387
        %v3448 = vpack.c.b16 %v3390, %v3388
        %v3449 = vpack.c.b16 %v3393, %v3391
        %v3450 = vpack.c.b16 %v3394, %v3392
        %v3451 = vpack.c.b16 %v3397, %v3395
        %v3452 = vpack.c.b16 %v3398, %v3396
        %v3453 = vpack.c.b16 %v3401, %v3399
        %v3454 = vpack.c.b16 %v3402, %v3400
        %v3455 = vpack.c.b16 %v3405, %v3403
        %v3456 = vpack.c.b16 %v3406, %v3404
        %v3457 = vpack.c.b16 %v3409, %v3407
        %v3458 = vpack.c.b16 %v3410, %v3408
        %3507 = vmatpush.bf16.msra.mxu0 %v3425
        %3508 = vmatpush.bf16.msra.mxu0 %v3423
        %3509 = vmatpush.bf16.msra.mxu0 %v3421
        %3510 = vmatpush.bf16.msra.mxu0 %v3419
        %3511 = vmatpush.bf16.msra.mxu0 %v3417
        %3512 = vmatpush.bf16.msra.mxu0 %v3415
        %3513 = vmatpush.bf16.msra.mxu0 %v3413
        %3514 = vmatpush.bf16.msra.mxu0 %v3411
        %3515 = vmatmul.bf16.gmra.mxu0 %v3243
        %v3516 = vpop.f32.mrf.mxu0
        %v3517 = vadd.f32 %v3097, %v3516
        %v3518 = vpop.f32.mrf.mxu0
        %v3519 = vadd.f32 %v3099, %v3518
        %3520 = vmatmul.bf16.gmra.mxu0 %v3246
        %v3521 = vpop.f32.mrf.mxu0
        %v3522 = vadd.f32 %v3102, %v3521
        %v3523 = vpop.f32.mrf.mxu0
        %v3524 = vadd.f32 %v3104, %v3523
        %3525 = vmatmul.bf16.gmra.mxu0 %v3249
        %v3526 = vpop.f32.mrf.mxu0
        %v3527 = vadd.f32 %v3107, %v3526
        %v3528 = vpop.f32.mrf.mxu0
        %v3529 = vadd.f32 %v3109, %v3528
        %3530 = vmatmul.bf16.gmra.mxu0 %v3252
        %v3531 = vpop.f32.mrf.mxu0
        %v3532 = vadd.f32 %v3112, %v3531
        %v3533 = vpop.f32.mrf.mxu0
        %v3534 = vadd.f32 %v3114, %v3533
        %3535 = vdwg.mxu0
        %3536 = vmatpush.bf16.msra.mxu0 %v3441
        %3537 = vmatpush.bf16.msra.mxu0 %v3439
        %3538 = vmatpush.bf16.msra.mxu0 %v3437
        %3539 = vmatpush.bf16.msra.mxu0 %v3435
        %3540 = vmatpush.bf16.msra.mxu0 %v3433
        %3541 = vmatpush.bf16.msra.mxu0 %v3431
        %3542 = vmatpush.bf16.msra.mxu0 %v3429
        %3543 = vmatpush.bf16.msra.mxu0 %v3427
        %3544 = vmatmul.bf16.gmra.mxu0 %v3244
        %v3545 = vpop.f32.mrf.mxu0
        %v3546 = vadd.f32 %v3517, %v3545
        %v3547 = vpop.f32.mrf.mxu0
        %v3548 = vadd.f32 %v3519, %v3547
        %3549 = vmatmul.bf16.gmra.mxu0 %v3247
        %v3550 = vpop.f32.mrf.mxu0
        %v3551 = vadd.f32 %v3522, %v3550
        %v3552 = vpop.f32.mrf.mxu0
        %v3553 = vadd.f32 %v3524, %v3552
        %3554 = vmatmul.bf16.gmra.mxu0 %v3250
        %v3555 = vpop.f32.mrf.mxu0
        %v3556 = vadd.f32 %v3527, %v3555
        %v3557 = vpop.f32.mrf.mxu0
        %v3558 = vadd.f32 %v3529, %v3557
        %3559 = vmatmul.bf16.gmra.mxu0 %v3253
        %v3560 = vpop.f32.mrf.mxu0
        %v3561 = vadd.f32 %v3532, %v3560
        %v3562 = vpop.f32.mrf.mxu0
        %v3563 = vadd.f32 %v3534, %v3562
        %3564 = vdwg.mxu0
        %3565 = vmatpush.bf16.msra.mxu0 %v3457
        %3566 = vmatpush.bf16.msra.mxu0 %v3455
        %3567 = vmatpush.bf16.msra.mxu0 %v3453
        %3568 = vmatpush.bf16.msra.mxu0 %v3451
        %3569 = vmatpush.bf16.msra.mxu0 %v3449
        %3570 = vmatpush.bf16.msra.mxu0 %v3447
        %3571 = vmatpush.bf16.msra.mxu0 %v3445
        %3572 = vmatpush.bf16.msra.mxu0 %v3443
        %3573 = vmatmul.bf16.gmra.mxu0 %v3245
        %v3574 = vpop.f32.mrf.mxu0
        %v3575 = vadd.f32 %v3546, %v3574
        %v3576 = vpop.f32.mrf.mxu0
        %v3577 = vadd.f32 %v3548, %v3576
        %3578 = vmatmul.bf16.gmra.mxu0 %v3248
        %v3579 = vpop.f32.mrf.mxu0
        %v3580 = vadd.f32 %v3551, %v3579
        %v3581 = vpop.f32.mrf.mxu0
        %v3582 = vadd.f32 %v3553, %v3581
        %3583 = vmatmul.bf16.gmra.mxu0 %v3251
        %v3584 = vpop.f32.mrf.mxu0
        %v3585 = vadd.f32 %v3556, %v3584
        %v3586 = vpop.f32.mrf.mxu0
        %v3587 = vadd.f32 %v3558, %v3586
        %3588 = vmatmul.bf16.gmra.mxu0 %v3254
        %v3589 = vpop.f32.mrf.mxu0
        %v3590 = vadd.f32 %v3561, %v3589
        %v3591 = vpop.f32.mrf.mxu0
        %v3592 = vadd.f32 %v3563, %v3591
        %3593 = vdwg.mxu0
        %3594 = vmatpush.bf16.msra.mxu0 %v3426
        %3595 = vmatpush.bf16.msra.mxu0 %v3424
        %3596 = vmatpush.bf16.msra.mxu0 %v3422
        %3597 = vmatpush.bf16.msra.mxu0 %v3420
        %3598 = vmatpush.bf16.msra.mxu0 %v3418
        %3599 = vmatpush.bf16.msra.mxu0 %v3416
        %3600 = vmatpush.bf16.msra.mxu0 %v3414
        %3601 = vmatpush.bf16.msra.mxu0 %v3412
        %3602 = vmatmul.bf16.gmra.mxu0 %v3243
        %v3603 = vpop.f32.mrf.mxu0
        %v3604 = vadd.f32 %v3184, %v3603
        %v3605 = vpop.f32.mrf.mxu0
        %v3606 = vadd.f32 %v3186, %v3605
        %3607 = vmatmul.bf16.gmra.mxu0 %v3246
        %v3608 = vpop.f32.mrf.mxu0
        %v3609 = vadd.f32 %v3189, %v3608
        %v3610 = vpop.f32.mrf.mxu0
        %v3611 = vadd.f32 %v3191, %v3610
        %3612 = vmatmul.bf16.gmra.mxu0 %v3249
        %v3613 = vpop.f32.mrf.mxu0
        %v3614 = vadd.f32 %v3194, %v3613
        %v3615 = vpop.f32.mrf.mxu0
        %v3616 = vadd.f32 %v3196, %v3615
        %3617 = vmatmul.bf16.gmra.mxu0 %v3252
        %v3618 = vpop.f32.mrf.mxu0
        %v3619 = vadd.f32 %v3199, %v3618
        %v3620 = vpop.f32.mrf.mxu0
        %v3621 = vadd.f32 %v3201, %v3620
        %3622 = vdwg.mxu0
        %3623 = vmatpush.bf16.msra.mxu0 %v3442
        %3624 = vmatpush.bf16.msra.mxu0 %v3440
        %3625 = vmatpush.bf16.msra.mxu0 %v3438
        %3626 = vmatpush.bf16.msra.mxu0 %v3436
        %3627 = vmatpush.bf16.msra.mxu0 %v3434
        %3628 = vmatpush.bf16.msra.mxu0 %v3432
        %3629 = vmatpush.bf16.msra.mxu0 %v3430
        %3630 = vmatpush.bf16.msra.mxu0 %v3428
        %3631 = vmatmul.bf16.gmra.mxu0 %v3244
        %v3632 = vpop.f32.mrf.mxu0
        %v3633 = vadd.f32 %v3604, %v3632
        %v3634 = vpop.f32.mrf.mxu0
        %v3635 = vadd.f32 %v3606, %v3634
        %3636 = vmatmul.bf16.gmra.mxu0 %v3247
        %v3637 = vpop.f32.mrf.mxu0
        %v3638 = vadd.f32 %v3609, %v3637
        %v3639 = vpop.f32.mrf.mxu0
        %v3640 = vadd.f32 %v3611, %v3639
        %3641 = vmatmul.bf16.gmra.mxu0 %v3250
        %v3642 = vpop.f32.mrf.mxu0
        %v3643 = vadd.f32 %v3614, %v3642
        %v3644 = vpop.f32.mrf.mxu0
        %v3645 = vadd.f32 %v3616, %v3644
        %3646 = vmatmul.bf16.gmra.mxu0 %v3253
        %v3647 = vpop.f32.mrf.mxu0
        %v3648 = vadd.f32 %v3619, %v3647
        %v3649 = vpop.f32.mrf.mxu0
        %v3650 = vadd.f32 %v3621, %v3649
        %3651 = vdwg.mxu0
        %3652 = vmatpush.bf16.msra.mxu0 %v3458
        %3653 = vmatpush.bf16.msra.mxu0 %v3456
        %3654 = vmatpush.bf16.msra.mxu0 %v3454
        %3655 = vmatpush.bf16.msra.mxu0 %v3452
        %3656 = vmatpush.bf16.msra.mxu0 %v3450
        %3657 = vmatpush.bf16.msra.mxu0 %v3448
        %3658 = vmatpush.bf16.msra.mxu0 %v3446
        %3659 = vmatpush.bf16.msra.mxu0 %v3444
        %3660 = vmatmul.bf16.gmra.mxu0 %v3245
        %v3661 = vpop.f32.mrf.mxu0
        %v3662 = vadd.f32 %v3633, %v3661
        %v3663 = vpop.f32.mrf.mxu0
        %v3664 = vadd.f32 %v3635, %v3663
        %3665 = vmatmul.bf16.gmra.mxu0 %v3248
        %v3666 = vpop.f32.mrf.mxu0
        %v3667 = vadd.f32 %v3638, %v3666
        %v3668 = vpop.f32.mrf.mxu0
        %v3669 = vadd.f32 %v3640, %v3668
        %3670 = vmatmul.bf16.gmra.mxu0 %v3251
        %v3671 = vpop.f32.mrf.mxu0
        %v3672 = vadd.f32 %v3643, %v3671
        %v3673 = vpop.f32.mrf.mxu0
        %v3674 = vadd.f32 %v3645, %v3673
        %3675 = vmatmul.bf16.gmra.mxu0 %v3254
        %v3676 = vpop.f32.mrf.mxu0
        %v3677 = vadd.f32 %v3648, %v3676
        %v3678 = vpop.f32.mrf.mxu0
        %v3679 = vadd.f32 %v3650, %v3678
        %3680 = vdwg.mxu0
        %vm3697 = vcmask 1042432
        %vm3698 = vcmask 1046532
        %vm3699 = vmor %vm3697, %vm3698
        %v3700 = vrot.slane %v2385, 5
        %v3701 = vrot.slane %v3700, 4
        %v3702 = vrot.slane %v2387, 5
        %v3703 = vsel %vm3699, %v3701, %v3702
        %v3704 = vrot.slane %v2386, 5
        %v3705 = vrot.slane %v3704, 4
        %v3706 = vrot.slane %v2388, 5
        %v3707 = vsel %vm3699, %v3705, %v3706
        %v3708 = vrot.slane %v2389, 5
        %v3709 = vrot.slane %v3708, 4
        %v3710 = vrot.slane %v2391, 5
        %v3711 = vsel %vm3699, %v3709, %v3710
        %v3712 = vrot.slane %v2390, 5
        %v3713 = vrot.slane %v3712, 4
        %v3714 = vrot.slane %v2392, 5
        %v3715 = vsel %vm3699, %v3713, %v3714
        %v3716 = vrot.slane %v2393, 5
        %v3717 = vrot.slane %v3716, 4
        %v3718 = vrot.slane %v2395, 5
        %v3719 = vsel %vm3699, %v3717, %v3718
        %v3720 = vrot.slane %v2394, 5
        %v3721 = vrot.slane %v3720, 4
        %v3722 = vrot.slane %v2396, 5
        %v3723 = vsel %vm3699, %v3721, %v3722
        %v3724 = vrot.slane %v2397, 5
        %v3725 = vrot.slane %v3724, 4
        %v3726 = vrot.slane %v2399, 5
        %v3727 = vsel %vm3699, %v3725, %v3726
        %v3728 = vrot.slane %v2398, 5
        %v3729 = vrot.slane %v3728, 4
        %v3730 = vrot.slane %v2400, 5
        %v3731 = vsel %vm3699, %v3729, %v3730
        %v3732 = vrot.slane %v2401, 5
        %v3733 = vrot.slane %v3732, 4
        %v3734 = vrot.slane %v2403, 5
        %v3735 = vsel %vm3699, %v3733, %v3734
        %v3736 = vrot.slane %v2402, 5
        %v3737 = vrot.slane %v3736, 4
        %v3738 = vrot.slane %v2404, 5
        %v3739 = vsel %vm3699, %v3737, %v3738
        %v3740 = vrot.slane %v2405, 5
        %v3741 = vrot.slane %v3740, 4
        %v3742 = vrot.slane %v2407, 5
        %v3743 = vsel %vm3699, %v3741, %v3742
        %v3744 = vrot.slane %v2406, 5
        %v3745 = vrot.slane %v3744, 4
        %v3746 = vrot.slane %v2408, 5
        %v3747 = vsel %vm3699, %v3745, %v3746
        %v3748 = vrot.slane %v2409, 5
        %v3749 = vrot.slane %v3748, 4
        %v3750 = vrot.slane %v2411, 5
        %v3751 = vsel %vm3699, %v3749, %v3750
        %v3752 = vrot.slane %v2410, 5
        %v3753 = vrot.slane %v3752, 4
        %v3754 = vrot.slane %v2412, 5
        %v3755 = vsel %vm3699, %v3753, %v3754
        %v3756 = vrot.slane %v2413, 5
        %v3757 = vrot.slane %v3756, 4
        %v3758 = vrot.slane %v2415, 5
        %v3759 = vsel %vm3699, %v3757, %v3758
        %v3760 = vrot.slane %v2414, 5
        %v3761 = vrot.slane %v3760, 4
        %v3762 = vrot.slane %v2416, 5
        %v3763 = vsel %vm3699, %v3761, %v3762
        %s3764 = scalar_lea.vmem %s3, 768
        %v3765 = vld [vmem:[%s3764] sm:$0xff]
        %v3766 = vld [vmem:[%s3764 + $0x8] sm:$0xff]
        %v3767 = vld [vmem:[%s3764 + $0x10] sm:$0xff]
        %v3768 = vld [vmem:[%s3764 + $0x18] sm:$0xff]
        %v3769 = vld [vmem:[%s3764 + $0x20] sm:$0xff]
        %v3770 = vld [vmem:[%s3764 + $0x28] sm:$0xff]
        %v3771 = vld [vmem:[%s3764 + $0x30] sm:$0xff]
        %v3772 = vld [vmem:[%s3764 + $0x38] sm:$0xff]
        %v3773 = vld [vmem:[%s3764 + $0x40] sm:$0xff]
        %v3774 = vld [vmem:[%s3764 + $0x48] sm:$0xff]
        %v3775 = vld [vmem:[%s3764 + $0x50] sm:$0xff]
        %v3776 = vld [vmem:[%s3764 + $0x58] sm:$0xff]
        %v3777 = vld [vmem:[%s3764 + $0x60] sm:$0xff]
        %v3778 = vld [vmem:[%s3764 + $0x68] sm:$0xff]
        %v3779 = vld [vmem:[%s3764 + $0x70] sm:$0xff]
        %v3780 = vld [vmem:[%s3764 + $0x78] sm:$0xff]
        %v3781 = vld [vmem:[%s3764 + $0x80] sm:$0xff]
        %v3782 = vld [vmem:[%s3764 + $0x88] sm:$0xff]
        %v3783 = vld [vmem:[%s3764 + $0x90] sm:$0xff]
        %v3784 = vld [vmem:[%s3764 + $0x98] sm:$0xff]
        %v3785 = vld [vmem:[%s3764 + $0xa0] sm:$0xff]
        %v3786 = vld [vmem:[%s3764 + $0xa8] sm:$0xff]
        %v3787 = vld [vmem:[%s3764 + $0xb0] sm:$0xff]
        %v3788 = vld [vmem:[%s3764 + $0xb8] sm:$0xff]
        %v3789 = vld [vmem:[%s3764 + $0xc0] sm:$0xff]
        %v3790 = vld [vmem:[%s3764 + $0xc8] sm:$0xff]
        %v3791 = vld [vmem:[%s3764 + $0xd0] sm:$0xff]
        %v3792 = vld [vmem:[%s3764 + $0xd8] sm:$0xff]
        %v3793 = vld [vmem:[%s3764 + $0xe0] sm:$0xff]
        %v3794 = vld [vmem:[%s3764 + $0xe8] sm:$0xff]
        %v3795 = vld [vmem:[%s3764 + $0xf0] sm:$0xff]
        %v3796 = vld [vmem:[%s3764 + $0xf8] sm:$0xff]
        %v3797 = vld [vmem:[%s3764 + $0x100] sm:$0xff]
        %v3798 = vld [vmem:[%s3764 + $0x108] sm:$0xff]
        %v3799 = vld [vmem:[%s3764 + $0x110] sm:$0xff]
        %v3800 = vld [vmem:[%s3764 + $0x118] sm:$0xff]
        %v3801 = vld [vmem:[%s3764 + $0x120] sm:$0xff]
        %v3802 = vld [vmem:[%s3764 + $0x128] sm:$0xff]
        %v3803 = vld [vmem:[%s3764 + $0x130] sm:$0xff]
        %v3804 = vld [vmem:[%s3764 + $0x138] sm:$0xff]
        %v3805 = vld [vmem:[%s3764 + $0x140] sm:$0xff]
        %v3806 = vld [vmem:[%s3764 + $0x148] sm:$0xff]
        %v3807 = vld [vmem:[%s3764 + $0x150] sm:$0xff]
        %v3808 = vld [vmem:[%s3764 + $0x158] sm:$0xff]
        %v3809 = vld [vmem:[%s3764 + $0x160] sm:$0xff]
        %v3810 = vld [vmem:[%s3764 + $0x168] sm:$0xff]
        %v3811 = vld [vmem:[%s3764 + $0x170] sm:$0xff]
        %v3812 = vld [vmem:[%s3764 + $0x178] sm:$0xff]
        %v3813 = vunpack.c.l.b16 %v3703
        %v3814 = vunpack.c.h.b16 %v3703
        %v3815 = vunpack.c.l.b16 %v3707
        %v3816 = vunpack.c.l.b16 %v3711
        %v3817 = vunpack.c.h.b16 %v3711
        %v3818 = vunpack.c.l.b16 %v3715
        %v3819 = vunpack.c.l.b16 %v3719
        %v3820 = vunpack.c.h.b16 %v3719
        %v3821 = vunpack.c.l.b16 %v3723
        %v3822 = vunpack.c.l.b16 %v3727
        %v3823 = vunpack.c.h.b16 %v3727
        %v3824 = vunpack.c.l.b16 %v3731
        %v3825 = vunpack.c.l.b16 %v3735
        %v3826 = vunpack.c.h.b16 %v3735
        %v3827 = vunpack.c.l.b16 %v3739
        %v3828 = vunpack.c.l.b16 %v3743
        %v3829 = vunpack.c.h.b16 %v3743
        %v3830 = vunpack.c.l.b16 %v3747
        %v3831 = vunpack.c.l.b16 %v3751
        %v3832 = vunpack.c.h.b16 %v3751
        %v3833 = vunpack.c.l.b16 %v3755
        %v3834 = vunpack.c.l.b16 %v3759
        %v3835 = vunpack.c.h.b16 %v3759
        %v3836 = vunpack.c.l.b16 %v3763
        %v3837 = vpack.c.b16 %v3816, %v3813
        %v3838 = vpack.c.b16 %v3817, %v3814
        %v3839 = vpack.c.b16 %v3818, %v3815
        %v3840 = vpack.c.b16 %v3822, %v3819
        %v3841 = vpack.c.b16 %v3823, %v3820
        %v3842 = vpack.c.b16 %v3824, %v3821
        %v3843 = vpack.c.b16 %v3828, %v3825
        %v3844 = vpack.c.b16 %v3829, %v3826
        %v3845 = vpack.c.b16 %v3830, %v3827
        %v3846 = vpack.c.b16 %v3834, %v3831
        %v3847 = vpack.c.b16 %v3835, %v3832
        %v3848 = vpack.c.b16 %v3836, %v3833
        %v3909 = vunpack.c.l.b16 %v3765
        %v3910 = vunpack.c.h.b16 %v3765
        %v3911 = vunpack.c.l.b16 %v3766
        %v3912 = vunpack.c.h.b16 %v3766
        %v3913 = vunpack.c.l.b16 %v3767
        %v3914 = vunpack.c.h.b16 %v3767
        %v3915 = vunpack.c.l.b16 %v3768
        %v3916 = vunpack.c.h.b16 %v3768
        %v3917 = vunpack.c.l.b16 %v3769
        %v3918 = vunpack.c.h.b16 %v3769
        %v3919 = vunpack.c.l.b16 %v3770
        %v3920 = vunpack.c.h.b16 %v3770
        %v3921 = vunpack.c.l.b16 %v3771
        %v3922 = vunpack.c.h.b16 %v3771
        %v3923 = vunpack.c.l.b16 %v3772
        %v3924 = vunpack.c.h.b16 %v3772
        %v3925 = vunpack.c.l.b16 %v3773
        %v3926 = vunpack.c.h.b16 %v3773
        %v3927 = vunpack.c.l.b16 %v3774
        %v3928 = vunpack.c.h.b16 %v3774
        %v3929 = vunpack.c.l.b16 %v3775
        %v3930 = vunpack.c.h.b16 %v3775
        %v3931 = vunpack.c.l.b16 %v3776
        %v3932 = vunpack.c.h.b16 %v3776
        %v3933 = vunpack.c.l.b16 %v3777
        %v3934 = vunpack.c.h.b16 %v3777
        %v3935 = vunpack.c.l.b16 %v3778
        %v3936 = vunpack.c.h.b16 %v3778
        %v3937 = vunpack.c.l.b16 %v3779
        %v3938 = vunpack.c.h.b16 %v3779
        %v3939 = vunpack.c.l.b16 %v3780
        %v3940 = vunpack.c.h.b16 %v3780
        %v3941 = vunpack.c.l.b16 %v3781
        %v3942 = vunpack.c.h.b16 %v3781
        %v3943 = vunpack.c.l.b16 %v3782
        %v3944 = vunpack.c.h.b16 %v3782
        %v3945 = vunpack.c.l.b16 %v3783
        %v3946 = vunpack.c.h.b16 %v3783
        %v3947 = vunpack.c.l.b16 %v3784
        %v3948 = vunpack.c.h.b16 %v3784
        %v3949 = vunpack.c.l.b16 %v3785
        %v3950 = vunpack.c.h.b16 %v3785
        %v3951 = vunpack.c.l.b16 %v3786
        %v3952 = vunpack.c.h.b16 %v3786
        %v3953 = vunpack.c.l.b16 %v3787
        %v3954 = vunpack.c.h.b16 %v3787
        %v3955 = vunpack.c.l.b16 %v3788
        %v3956 = vunpack.c.h.b16 %v3788
        %v3957 = vunpack.c.l.b16 %v3789
        %v3958 = vunpack.c.h.b16 %v3789
        %v3959 = vunpack.c.l.b16 %v3790
        %v3960 = vunpack.c.h.b16 %v3790
        %v3961 = vunpack.c.l.b16 %v3791
        %v3962 = vunpack.c.h.b16 %v3791
        %v3963 = vunpack.c.l.b16 %v3792
        %v3964 = vunpack.c.h.b16 %v3792
        %v3965 = vunpack.c.l.b16 %v3793
        %v3966 = vunpack.c.h.b16 %v3793
        %v3967 = vunpack.c.l.b16 %v3794
        %v3968 = vunpack.c.h.b16 %v3794
        %v3969 = vunpack.c.l.b16 %v3795
        %v3970 = vunpack.c.h.b16 %v3795
        %v3971 = vunpack.c.l.b16 %v3796
        %v3972 = vunpack.c.h.b16 %v3796
        %v3973 = vunpack.c.l.b16 %v3797
        %v3974 = vunpack.c.h.b16 %v3797
        %v3975 = vunpack.c.l.b16 %v3798
        %v3976 = vunpack.c.h.b16 %v3798
        %v3977 = vunpack.c.l.b16 %v3799
        %v3978 = vunpack.c.h.b16 %v3799
        %v3979 = vunpack.c.l.b16 %v3800
        %v3980 = vunpack.c.h.b16 %v3800
        %v3981 = vunpack.c.l.b16 %v3801
        %v3982 = vunpack.c.h.b16 %v3801
        %v3983 = vunpack.c.l.b16 %v3802
        %v3984 = vunpack.c.h.b16 %v3802
        %v3985 = vunpack.c.l.b16 %v3803
        %v3986 = vunpack.c.h.b16 %v3803
        %v3987 = vunpack.c.l.b16 %v3804
        %v3988 = vunpack.c.h.b16 %v3804
        %v3989 = vunpack.c.l.b16 %v3805
        %v3990 = vunpack.c.h.b16 %v3805
        %v3991 = vunpack.c.l.b16 %v3806
        %v3992 = vunpack.c.h.b16 %v3806
        %v3993 = vunpack.c.l.b16 %v3807
        %v3994 = vunpack.c.h.b16 %v3807
        %v3995 = vunpack.c.l.b16 %v3808
        %v3996 = vunpack.c.h.b16 %v3808
        %v3997 = vunpack.c.l.b16 %v3809
        %v3998 = vunpack.c.h.b16 %v3809
        %v3999 = vunpack.c.l.b16 %v3810
        %v4000 = vunpack.c.h.b16 %v3810
        %v4001 = vunpack.c.l.b16 %v3811
        %v4002 = vunpack.c.h.b16 %v3811
        %v4003 = vunpack.c.l.b16 %v3812
        %v4004 = vunpack.c.h.b16 %v3812
        %v4005 = vpack.c.b16 %v3911, %v3909
        %v4006 = vpack.c.b16 %v3912, %v3910
        %v4007 = vpack.c.b16 %v3915, %v3913
        %v4008 = vpack.c.b16 %v3916, %v3914
        %v4009 = vpack.c.b16 %v3919, %v3917
        %v4010 = vpack.c.b16 %v3920, %v3918
        %v4011 = vpack.c.b16 %v3923, %v3921
        %v4012 = vpack.c.b16 %v3924, %v3922
        %v4013 = vpack.c.b16 %v3927, %v3925
        %v4014 = vpack.c.b16 %v3928, %v3926
        %v4015 = vpack.c.b16 %v3931, %v3929
        %v4016 = vpack.c.b16 %v3932, %v3930
        %v4017 = vpack.c.b16 %v3935, %v3933
        %v4018 = vpack.c.b16 %v3936, %v3934
        %v4019 = vpack.c.b16 %v3939, %v3937
        %v4020 = vpack.c.b16 %v3940, %v3938
        %v4021 = vpack.c.b16 %v3943, %v3941
        %v4022 = vpack.c.b16 %v3944, %v3942
        %v4023 = vpack.c.b16 %v3947, %v3945
        %v4024 = vpack.c.b16 %v3948, %v3946
        %v4025 = vpack.c.b16 %v3951, %v3949
        %v4026 = vpack.c.b16 %v3952, %v3950
        %v4027 = vpack.c.b16 %v3955, %v3953
        %v4028 = vpack.c.b16 %v3956, %v3954
        %v4029 = vpack.c.b16 %v3959, %v3957
        %v4030 = vpack.c.b16 %v3960, %v3958
        %v4031 = vpack.c.b16 %v3963, %v3961
        %v4032 = vpack.c.b16 %v3964, %v3962
        %v4033 = vpack.c.b16 %v3967, %v3965
        %v4034 = vpack.c.b16 %v3968, %v3966
        %v4035 = vpack.c.b16 %v3971, %v3969
        %v4036 = vpack.c.b16 %v3972, %v3970
        %v4037 = vpack.c.b16 %v3975, %v3973
        %v4038 = vpack.c.b16 %v3976, %v3974
        %v4039 = vpack.c.b16 %v3979, %v3977
        %v4040 = vpack.c.b16 %v3980, %v3978
        %v4041 = vpack.c.b16 %v3983, %v3981
        %v4042 = vpack.c.b16 %v3984, %v3982
        %v4043 = vpack.c.b16 %v3987, %v3985
        %v4044 = vpack.c.b16 %v3988, %v3986
        %v4045 = vpack.c.b16 %v3991, %v3989
        %v4046 = vpack.c.b16 %v3992, %v3990
        %v4047 = vpack.c.b16 %v3995, %v3993
        %v4048 = vpack.c.b16 %v3996, %v3994
        %v4049 = vpack.c.b16 %v3999, %v3997
        %v4050 = vpack.c.b16 %v4000, %v3998
        %v4051 = vpack.c.b16 %v4003, %v4001
        %v4052 = vpack.c.b16 %v4004, %v4002
        %4101 = vmatpush.bf16.msra.mxu0 %v4019
        %4102 = vmatpush.bf16.msra.mxu0 %v4017
        %4103 = vmatpush.bf16.msra.mxu0 %v4015
        %4104 = vmatpush.bf16.msra.mxu0 %v4013
        %4105 = vmatpush.bf16.msra.mxu0 %v4011
        %4106 = vmatpush.bf16.msra.mxu0 %v4009
        %4107 = vmatpush.bf16.msra.mxu0 %v4007
        %4108 = vmatpush.bf16.msra.mxu0 %v4005
        %4109 = vmatmul.bf16.gmra.mxu0 %v3837
        %v4110 = vpop.f32.mrf.mxu0
        %v4111 = vadd.f32 0.0, %v4110
        %v4112 = vpop.f32.mrf.mxu0
        %v4113 = vadd.f32 0.0, %v4112
        %4114 = vmatmul.bf16.gmra.mxu0 %v3840
        %v4115 = vpop.f32.mrf.mxu0
        %v4116 = vadd.f32 0.0, %v4115
        %v4117 = vpop.f32.mrf.mxu0
        %v4118 = vadd.f32 0.0, %v4117
        %4119 = vmatmul.bf16.gmra.mxu0 %v3843
        %v4120 = vpop.f32.mrf.mxu0
        %v4121 = vadd.f32 0.0, %v4120
        %v4122 = vpop.f32.mrf.mxu0
        %v4123 = vadd.f32 0.0, %v4122
        %4124 = vmatmul.bf16.gmra.mxu0 %v3846
        %v4125 = vpop.f32.mrf.mxu0
        %v4126 = vadd.f32 0.0, %v4125
        %v4127 = vpop.f32.mrf.mxu0
        %v4128 = vadd.f32 0.0, %v4127
        %4129 = vdwg.mxu0
        %4130 = vmatpush.bf16.msra.mxu0 %v4035
        %4131 = vmatpush.bf16.msra.mxu0 %v4033
        %4132 = vmatpush.bf16.msra.mxu0 %v4031
        %4133 = vmatpush.bf16.msra.mxu0 %v4029
        %4134 = vmatpush.bf16.msra.mxu0 %v4027
        %4135 = vmatpush.bf16.msra.mxu0 %v4025
        %4136 = vmatpush.bf16.msra.mxu0 %v4023
        %4137 = vmatpush.bf16.msra.mxu0 %v4021
        %4138 = vmatmul.bf16.gmra.mxu0 %v3838
        %v4139 = vpop.f32.mrf.mxu0
        %v4140 = vadd.f32 %v4111, %v4139
        %v4141 = vpop.f32.mrf.mxu0
        %v4142 = vadd.f32 %v4113, %v4141
        %4143 = vmatmul.bf16.gmra.mxu0 %v3841
        %v4144 = vpop.f32.mrf.mxu0
        %v4145 = vadd.f32 %v4116, %v4144
        %v4146 = vpop.f32.mrf.mxu0
        %v4147 = vadd.f32 %v4118, %v4146
        %4148 = vmatmul.bf16.gmra.mxu0 %v3844
        %v4149 = vpop.f32.mrf.mxu0
        %v4150 = vadd.f32 %v4121, %v4149
        %v4151 = vpop.f32.mrf.mxu0
        %v4152 = vadd.f32 %v4123, %v4151
        %4153 = vmatmul.bf16.gmra.mxu0 %v3847
        %v4154 = vpop.f32.mrf.mxu0
        %v4155 = vadd.f32 %v4126, %v4154
        %v4156 = vpop.f32.mrf.mxu0
        %v4157 = vadd.f32 %v4128, %v4156
        %4158 = vdwg.mxu0
        %4159 = vmatpush.bf16.msra.mxu0 %v4051
        %4160 = vmatpush.bf16.msra.mxu0 %v4049
        %4161 = vmatpush.bf16.msra.mxu0 %v4047
        %4162 = vmatpush.bf16.msra.mxu0 %v4045
        %4163 = vmatpush.bf16.msra.mxu0 %v4043
        %4164 = vmatpush.bf16.msra.mxu0 %v4041
        %4165 = vmatpush.bf16.msra.mxu0 %v4039
        %4166 = vmatpush.bf16.msra.mxu0 %v4037
        %4167 = vmatmul.bf16.gmra.mxu0 %v3839
        %v4168 = vpop.f32.mrf.mxu0
        %v4169 = vadd.f32 %v4140, %v4168
        %v4170 = vpop.f32.mrf.mxu0
        %v4171 = vadd.f32 %v4142, %v4170
        %4172 = vmatmul.bf16.gmra.mxu0 %v3842
        %v4173 = vpop.f32.mrf.mxu0
        %v4174 = vadd.f32 %v4145, %v4173
        %v4175 = vpop.f32.mrf.mxu0
        %v4176 = vadd.f32 %v4147, %v4175
        %4177 = vmatmul.bf16.gmra.mxu0 %v3845
        %v4178 = vpop.f32.mrf.mxu0
        %v4179 = vadd.f32 %v4150, %v4178
        %v4180 = vpop.f32.mrf.mxu0
        %v4181 = vadd.f32 %v4152, %v4180
        %4182 = vmatmul.bf16.gmra.mxu0 %v3848
        %v4183 = vpop.f32.mrf.mxu0
        %v4184 = vadd.f32 %v4155, %v4183
        %v4185 = vpop.f32.mrf.mxu0
        %v4186 = vadd.f32 %v4157, %v4185
        %4187 = vdwg.mxu0
        %4188 = vmatpush.bf16.msra.mxu0 %v4020
        %4189 = vmatpush.bf16.msra.mxu0 %v4018
        %4190 = vmatpush.bf16.msra.mxu0 %v4016
        %4191 = vmatpush.bf16.msra.mxu0 %v4014
        %4192 = vmatpush.bf16.msra.mxu0 %v4012
        %4193 = vmatpush.bf16.msra.mxu0 %v4010
        %4194 = vmatpush.bf16.msra.mxu0 %v4008
        %4195 = vmatpush.bf16.msra.mxu0 %v4006
        %4196 = vmatmul.bf16.gmra.mxu0 %v3837
        %v4197 = vpop.f32.mrf.mxu0
        %v4198 = vadd.f32 0.0, %v4197
        %v4199 = vpop.f32.mrf.mxu0
        %v4200 = vadd.f32 0.0, %v4199
        %4201 = vmatmul.bf16.gmra.mxu0 %v3840
        %v4202 = vpop.f32.mrf.mxu0
        %v4203 = vadd.f32 0.0, %v4202
        %v4204 = vpop.f32.mrf.mxu0
        %v4205 = vadd.f32 0.0, %v4204
        %4206 = vmatmul.bf16.gmra.mxu0 %v3843
        %v4207 = vpop.f32.mrf.mxu0
        %v4208 = vadd.f32 0.0, %v4207
        %v4209 = vpop.f32.mrf.mxu0
        %v4210 = vadd.f32 0.0, %v4209
        %4211 = vmatmul.bf16.gmra.mxu0 %v3846
        %v4212 = vpop.f32.mrf.mxu0
        %v4213 = vadd.f32 0.0, %v4212
        %v4214 = vpop.f32.mrf.mxu0
        %v4215 = vadd.f32 0.0, %v4214
        %4216 = vdwg.mxu0
        %4217 = vmatpush.bf16.msra.mxu0 %v4036
        %4218 = vmatpush.bf16.msra.mxu0 %v4034
        %4219 = vmatpush.bf16.msra.mxu0 %v4032
        %4220 = vmatpush.bf16.msra.mxu0 %v4030
        %4221 = vmatpush.bf16.msra.mxu0 %v4028
        %4222 = vmatpush.bf16.msra.mxu0 %v4026
        %4223 = vmatpush.bf16.msra.mxu0 %v4024
        %4224 = vmatpush.bf16.msra.mxu0 %v4022
        %4225 = vmatmul.bf16.gmra.mxu0 %v3838
        %v4226 = vpop.f32.mrf.mxu0
        %v4227 = vadd.f32 %v4198, %v4226
        %v4228 = vpop.f32.mrf.mxu0
        %v4229 = vadd.f32 %v4200, %v4228
        %4230 = vmatmul.bf16.gmra.mxu0 %v3841
        %v4231 = vpop.f32.mrf.mxu0
        %v4232 = vadd.f32 %v4203, %v4231
        %v4233 = vpop.f32.mrf.mxu0
        %v4234 = vadd.f32 %v4205, %v4233
        %4235 = vmatmul.bf16.gmra.mxu0 %v3844
        %v4236 = vpop.f32.mrf.mxu0
        %v4237 = vadd.f32 %v4208, %v4236
        %v4238 = vpop.f32.mrf.mxu0
        %v4239 = vadd.f32 %v4210, %v4238
        %4240 = vmatmul.bf16.gmra.mxu0 %v3847
        %v4241 = vpop.f32.mrf.mxu0
        %v4242 = vadd.f32 %v4213, %v4241
        %v4243 = vpop.f32.mrf.mxu0
        %v4244 = vadd.f32 %v4215, %v4243
        %4245 = vdwg.mxu0
        %4246 = vmatpush.bf16.msra.mxu0 %v4052
        %4247 = vmatpush.bf16.msra.mxu0 %v4050
        %4248 = vmatpush.bf16.msra.mxu0 %v4048
        %4249 = vmatpush.bf16.msra.mxu0 %v4046
        %4250 = vmatpush.bf16.msra.mxu0 %v4044
        %4251 = vmatpush.bf16.msra.mxu0 %v4042
        %4252 = vmatpush.bf16.msra.mxu0 %v4040
        %4253 = vmatpush.bf16.msra.mxu0 %v4038
        %4254 = vmatmul.bf16.gmra.mxu0 %v3839
        %v4255 = vpop.f32.mrf.mxu0
        %v4256 = vadd.f32 %v4227, %v4255
        %v4257 = vpop.f32.mrf.mxu0
        %v4258 = vadd.f32 %v4229, %v4257
        %4259 = vmatmul.bf16.gmra.mxu0 %v3842
        %v4260 = vpop.f32.mrf.mxu0
        %v4261 = vadd.f32 %v4232, %v4260
        %v4262 = vpop.f32.mrf.mxu0
        %v4263 = vadd.f32 %v4234, %v4262
        %4264 = vmatmul.bf16.gmra.mxu0 %v3845
        %v4265 = vpop.f32.mrf.mxu0
        %v4266 = vadd.f32 %v4237, %v4265
        %v4267 = vpop.f32.mrf.mxu0
        %v4268 = vadd.f32 %v4239, %v4267
        %4269 = vmatmul.bf16.gmra.mxu0 %v3848
        %v4270 = vpop.f32.mrf.mxu0
        %v4271 = vadd.f32 %v4242, %v4270
        %v4272 = vpop.f32.mrf.mxu0
        %v4273 = vadd.f32 %v4244, %v4272
        %4274 = vdwg.mxu0
        %v4275 = vadd.f32 %v3575, %v4169
        %v4276 = vadd.f32 %v3662, %v4256
        %v4277 = vadd.f32 %v3577, %v4171
        %v4278 = vadd.f32 %v3664, %v4258
        %v4279 = vadd.f32 %v3580, %v4174
        %v4280 = vadd.f32 %v3667, %v4261
        %v4281 = vadd.f32 %v3582, %v4176
        %v4282 = vadd.f32 %v3669, %v4263
        %v4283 = vadd.f32 %v3585, %v4179
        %v4284 = vadd.f32 %v3672, %v4266
        %v4285 = vadd.f32 %v3587, %v4181
        %v4286 = vadd.f32 %v3674, %v4268
        %v4287 = vadd.f32 %v3590, %v4184
        %v4288 = vadd.f32 %v3677, %v4271
        %v4289 = vadd.f32 %v3592, %v4186
        %v4290 = vadd.f32 %v3679, %v4273
        %vm4291 = vsmask.f32 2304
        %vm4292 = vsmask.f32 6416
        %vm4293 = vmor %vm4291, %vm4292
        %v4294 = vrot.slane %v2469, 5
        %v4295 = vrot.slane %v2472, 6
        %v4296 = vor.u32 %v4294, %v4295
        %v4297 = vrot.slane %v4296, 4
        %v4298 = vshrl.u32 %v2387, 16
        %v4300 = vrot.slane %v4298, 5
        %v4301 = vrot.slane %v2478, 6
        %v4302 = vor.u32 %v4300, %v4301
        %v4303 = vsel %vm4293, %v4297, %v4302
        %v4304 = vrot.slane %v2483, 5
        %v4305 = vrot.slane %v2486, 6
        %v4306 = vor.u32 %v4304, %v4305
        %v4307 = vrot.slane %v4306, 4
        %v4308 = vshrl.u32 %v2388, 16
        %v4310 = vrot.slane %v4308, 5
        %v4311 = vrot.slane %v2492, 6
        %v4312 = vor.u32 %v4310, %v4311
        %v4313 = vsel %vm4293, %v4307, %v4312
        %v4314 = vrot.slane %v2497, 5
        %v4315 = vrot.slane %v2500, 6
        %v4316 = vor.u32 %v4314, %v4315
        %v4317 = vrot.slane %v4316, 4
        %v4318 = vshrl.u32 %v2391, 16
        %v4320 = vrot.slane %v4318, 5
        %v4321 = vrot.slane %v2506, 6
        %v4322 = vor.u32 %v4320, %v4321
        %v4323 = vsel %vm4293, %v4317, %v4322
        %v4324 = vrot.slane %v2511, 5
        %v4325 = vrot.slane %v2514, 6
        %v4326 = vor.u32 %v4324, %v4325
        %v4327 = vrot.slane %v4326, 4
        %v4328 = vshrl.u32 %v2392, 16
        %v4330 = vrot.slane %v4328, 5
        %v4331 = vrot.slane %v2520, 6
        %v4332 = vor.u32 %v4330, %v4331
        %v4333 = vsel %vm4293, %v4327, %v4332
        %v4334 = vrot.slane %v2525, 5
        %v4335 = vrot.slane %v2528, 6
        %v4336 = vor.u32 %v4334, %v4335
        %v4337 = vrot.slane %v4336, 4
        %v4338 = vshrl.u32 %v2395, 16
        %v4340 = vrot.slane %v4338, 5
        %v4341 = vrot.slane %v2534, 6
        %v4342 = vor.u32 %v4340, %v4341
        %v4343 = vsel %vm4293, %v4337, %v4342
        %v4344 = vrot.slane %v2539, 5
        %v4345 = vrot.slane %v2542, 6
        %v4346 = vor.u32 %v4344, %v4345
        %v4347 = vrot.slane %v4346, 4
        %v4348 = vshrl.u32 %v2396, 16
        %v4350 = vrot.slane %v4348, 5
        %v4351 = vrot.slane %v2548, 6
        %v4352 = vor.u32 %v4350, %v4351
        %v4353 = vsel %vm4293, %v4347, %v4352
        %v4354 = vrot.slane %v2553, 5
        %v4355 = vrot.slane %v2556, 6
        %v4356 = vor.u32 %v4354, %v4355
        %v4357 = vrot.slane %v4356, 4
        %v4358 = vshrl.u32 %v2399, 16
        %v4360 = vrot.slane %v4358, 5
        %v4361 = vrot.slane %v2562, 6
        %v4362 = vor.u32 %v4360, %v4361
        %v4363 = vsel %vm4293, %v4357, %v4362
        %v4364 = vrot.slane %v2567, 5
        %v4365 = vrot.slane %v2570, 6
        %v4366 = vor.u32 %v4364, %v4365
        %v4367 = vrot.slane %v4366, 4
        %v4368 = vshrl.u32 %v2400, 16
        %v4370 = vrot.slane %v4368, 5
        %v4371 = vrot.slane %v2576, 6
        %v4372 = vor.u32 %v4370, %v4371
        %v4373 = vsel %vm4293, %v4367, %v4372
        %v4374 = vrot.slane %v2581, 5
        %v4375 = vrot.slane %v2584, 6
        %v4376 = vor.u32 %v4374, %v4375
        %v4377 = vrot.slane %v4376, 4
        %v4378 = vshrl.u32 %v2403, 16
        %v4380 = vrot.slane %v4378, 5
        %v4381 = vrot.slane %v2590, 6
        %v4382 = vor.u32 %v4380, %v4381
        %v4383 = vsel %vm4293, %v4377, %v4382
        %v4384 = vrot.slane %v2595, 5
        %v4385 = vrot.slane %v2598, 6
        %v4386 = vor.u32 %v4384, %v4385
        %v4387 = vrot.slane %v4386, 4
        %v4388 = vshrl.u32 %v2404, 16
        %v4390 = vrot.slane %v4388, 5
        %v4391 = vrot.slane %v2604, 6
        %v4392 = vor.u32 %v4390, %v4391
        %v4393 = vsel %vm4293, %v4387, %v4392
        %v4394 = vrot.slane %v2609, 5
        %v4395 = vrot.slane %v2612, 6
        %v4396 = vor.u32 %v4394, %v4395
        %v4397 = vrot.slane %v4396, 4
        %v4398 = vshrl.u32 %v2407, 16
        %v4400 = vrot.slane %v4398, 5
        %v4401 = vrot.slane %v2618, 6
        %v4402 = vor.u32 %v4400, %v4401
        %v4403 = vsel %vm4293, %v4397, %v4402
        %v4404 = vrot.slane %v2623, 5
        %v4405 = vrot.slane %v2626, 6
        %v4406 = vor.u32 %v4404, %v4405
        %v4407 = vrot.slane %v4406, 4
        %v4408 = vshrl.u32 %v2408, 16
        %v4410 = vrot.slane %v4408, 5
        %v4411 = vrot.slane %v2632, 6
        %v4412 = vor.u32 %v4410, %v4411
        %v4413 = vsel %vm4293, %v4407, %v4412
        %v4414 = vrot.slane %v2637, 5
        %v4415 = vrot.slane %v2640, 6
        %v4416 = vor.u32 %v4414, %v4415
        %v4417 = vrot.slane %v4416, 4
        %v4418 = vshrl.u32 %v2411, 16
        %v4420 = vrot.slane %v4418, 5
        %v4421 = vrot.slane %v2646, 6
        %v4422 = vor.u32 %v4420, %v4421
        %v4423 = vsel %vm4293, %v4417, %v4422
        %v4424 = vrot.slane %v2651, 5
        %v4425 = vrot.slane %v2654, 6
        %v4426 = vor.u32 %v4424, %v4425
        %v4427 = vrot.slane %v4426, 4
        %v4428 = vshrl.u32 %v2412, 16
        %v4430 = vrot.slane %v4428, 5
        %v4431 = vrot.slane %v2660, 6
        %v4432 = vor.u32 %v4430, %v4431
        %v4433 = vsel %vm4293, %v4427, %v4432
        %v4434 = vrot.slane %v2665, 5
        %v4435 = vrot.slane %v2668, 6
        %v4436 = vor.u32 %v4434, %v4435
        %v4437 = vrot.slane %v4436, 4
        %v4438 = vshrl.u32 %v2415, 16
        %v4440 = vrot.slane %v4438, 5
        %v4441 = vrot.slane %v2674, 6
        %v4442 = vor.u32 %v4440, %v4441
        %v4443 = vsel %vm4293, %v4437, %v4442
        %v4444 = vrot.slane %v2679, 5
        %v4445 = vrot.slane %v2682, 6
        %v4446 = vor.u32 %v4444, %v4445
        %v4447 = vrot.slane %v4446, 4
        %v4448 = vshrl.u32 %v2416, 16
        %v4450 = vrot.slane %v4448, 5
        %v4451 = vrot.slane %v2688, 6
        %v4452 = vor.u32 %v4450, %v4451
        %v4453 = vsel %vm4293, %v4447, %v4452
        %s4454 = scalar_lea.vmem %s3, 1152
        %v4455 = vld [vmem:[%s4454] sm:$0xff]
        %v4456 = vld [vmem:[%s4454 + $0x8] sm:$0xff]
        %v4457 = vld [vmem:[%s4454 + $0x10] sm:$0xff]
        %v4458 = vld [vmem:[%s4454 + $0x18] sm:$0xff]
        %v4459 = vld [vmem:[%s4454 + $0x20] sm:$0xff]
        %v4460 = vld [vmem:[%s4454 + $0x28] sm:$0xff]
        %v4461 = vld [vmem:[%s4454 + $0x30] sm:$0xff]
        %v4462 = vld [vmem:[%s4454 + $0x38] sm:$0xff]
        %v4463 = vld [vmem:[%s4454 + $0x40] sm:$0xff]
        %v4464 = vld [vmem:[%s4454 + $0x48] sm:$0xff]
        %v4465 = vld [vmem:[%s4454 + $0x50] sm:$0xff]
        %v4466 = vld [vmem:[%s4454 + $0x58] sm:$0xff]
        %v4467 = vld [vmem:[%s4454 + $0x60] sm:$0xff]
        %v4468 = vld [vmem:[%s4454 + $0x68] sm:$0xff]
        %v4469 = vld [vmem:[%s4454 + $0x70] sm:$0xff]
        %v4470 = vld [vmem:[%s4454 + $0x78] sm:$0xff]
        %v4471 = vld [vmem:[%s4454 + $0x80] sm:$0xff]
        %v4472 = vld [vmem:[%s4454 + $0x88] sm:$0xff]
        %v4473 = vld [vmem:[%s4454 + $0x90] sm:$0xff]
        %v4474 = vld [vmem:[%s4454 + $0x98] sm:$0xff]
        %v4475 = vld [vmem:[%s4454 + $0xa0] sm:$0xff]
        %v4476 = vld [vmem:[%s4454 + $0xa8] sm:$0xff]
        %v4477 = vld [vmem:[%s4454 + $0xb0] sm:$0xff]
        %v4478 = vld [vmem:[%s4454 + $0xb8] sm:$0xff]
        %v4479 = vld [vmem:[%s4454 + $0xc0] sm:$0xff]
        %v4480 = vld [vmem:[%s4454 + $0xc8] sm:$0xff]
        %v4481 = vld [vmem:[%s4454 + $0xd0] sm:$0xff]
        %v4482 = vld [vmem:[%s4454 + $0xd8] sm:$0xff]
        %v4483 = vld [vmem:[%s4454 + $0xe0] sm:$0xff]
        %v4484 = vld [vmem:[%s4454 + $0xe8] sm:$0xff]
        %v4485 = vld [vmem:[%s4454 + $0xf0] sm:$0xff]
        %v4486 = vld [vmem:[%s4454 + $0xf8] sm:$0xff]
        %v4487 = vld [vmem:[%s4454 + $0x100] sm:$0xff]
        %v4488 = vld [vmem:[%s4454 + $0x108] sm:$0xff]
        %v4489 = vld [vmem:[%s4454 + $0x110] sm:$0xff]
        %v4490 = vld [vmem:[%s4454 + $0x118] sm:$0xff]
        %v4491 = vld [vmem:[%s4454 + $0x120] sm:$0xff]
        %v4492 = vld [vmem:[%s4454 + $0x128] sm:$0xff]
        %v4493 = vld [vmem:[%s4454 + $0x130] sm:$0xff]
        %v4494 = vld [vmem:[%s4454 + $0x138] sm:$0xff]
        %v4495 = vld [vmem:[%s4454 + $0x140] sm:$0xff]
        %v4496 = vld [vmem:[%s4454 + $0x148] sm:$0xff]
        %v4497 = vld [vmem:[%s4454 + $0x150] sm:$0xff]
        %v4498 = vld [vmem:[%s4454 + $0x158] sm:$0xff]
        %v4499 = vld [vmem:[%s4454 + $0x160] sm:$0xff]
        %v4500 = vld [vmem:[%s4454 + $0x168] sm:$0xff]
        %v4501 = vld [vmem:[%s4454 + $0x170] sm:$0xff]
        %v4502 = vld [vmem:[%s4454 + $0x178] sm:$0xff]
        %v4503 = vunpack.c.l.b16 %v4303
        %v4504 = vunpack.c.h.b16 %v4303
        %v4505 = vunpack.c.l.b16 %v4313
        %v4506 = vunpack.c.l.b16 %v4323
        %v4507 = vunpack.c.h.b16 %v4323
        %v4508 = vunpack.c.l.b16 %v4333
        %v4509 = vunpack.c.l.b16 %v4343
        %v4510 = vunpack.c.h.b16 %v4343
        %v4511 = vunpack.c.l.b16 %v4353
        %v4512 = vunpack.c.l.b16 %v4363
        %v4513 = vunpack.c.h.b16 %v4363
        %v4514 = vunpack.c.l.b16 %v4373
        %v4515 = vunpack.c.l.b16 %v4383
        %v4516 = vunpack.c.h.b16 %v4383
        %v4517 = vunpack.c.l.b16 %v4393
        %v4518 = vunpack.c.l.b16 %v4403
        %v4519 = vunpack.c.h.b16 %v4403
        %v4520 = vunpack.c.l.b16 %v4413
        %v4521 = vunpack.c.l.b16 %v4423
        %v4522 = vunpack.c.h.b16 %v4423
        %v4523 = vunpack.c.l.b16 %v4433
        %v4524 = vunpack.c.l.b16 %v4443
        %v4525 = vunpack.c.h.b16 %v4443
        %v4526 = vunpack.c.l.b16 %v4453
        %v4527 = vpack.c.b16 %v4506, %v4503
        %v4528 = vpack.c.b16 %v4507, %v4504
        %v4529 = vpack.c.b16 %v4508, %v4505
        %v4530 = vpack.c.b16 %v4512, %v4509
        %v4531 = vpack.c.b16 %v4513, %v4510
        %v4532 = vpack.c.b16 %v4514, %v4511
        %v4533 = vpack.c.b16 %v4518, %v4515
        %v4534 = vpack.c.b16 %v4519, %v4516
        %v4535 = vpack.c.b16 %v4520, %v4517
        %v4536 = vpack.c.b16 %v4524, %v4521
        %v4537 = vpack.c.b16 %v4525, %v4522
        %v4538 = vpack.c.b16 %v4526, %v4523
        %v4599 = vunpack.c.l.b16 %v4455
        %v4600 = vunpack.c.h.b16 %v4455
        %v4601 = vunpack.c.l.b16 %v4456
        %v4602 = vunpack.c.h.b16 %v4456
        %v4603 = vunpack.c.l.b16 %v4457
        %v4604 = vunpack.c.h.b16 %v4457
        %v4605 = vunpack.c.l.b16 %v4458
        %v4606 = vunpack.c.h.b16 %v4458
        %v4607 = vunpack.c.l.b16 %v4459
        %v4608 = vunpack.c.h.b16 %v4459
        %v4609 = vunpack.c.l.b16 %v4460
        %v4610 = vunpack.c.h.b16 %v4460
        %v4611 = vunpack.c.l.b16 %v4461
        %v4612 = vunpack.c.h.b16 %v4461
        %v4613 = vunpack.c.l.b16 %v4462
        %v4614 = vunpack.c.h.b16 %v4462
        %v4615 = vunpack.c.l.b16 %v4463
        %v4616 = vunpack.c.h.b16 %v4463
        %v4617 = vunpack.c.l.b16 %v4464
        %v4618 = vunpack.c.h.b16 %v4464
        %v4619 = vunpack.c.l.b16 %v4465
        %v4620 = vunpack.c.h.b16 %v4465
        %v4621 = vunpack.c.l.b16 %v4466
        %v4622 = vunpack.c.h.b16 %v4466
        %v4623 = vunpack.c.l.b16 %v4467
        %v4624 = vunpack.c.h.b16 %v4467
        %v4625 = vunpack.c.l.b16 %v4468
        %v4626 = vunpack.c.h.b16 %v4468
        %v4627 = vunpack.c.l.b16 %v4469
        %v4628 = vunpack.c.h.b16 %v4469
        %v4629 = vunpack.c.l.b16 %v4470
        %v4630 = vunpack.c.h.b16 %v4470
        %v4631 = vunpack.c.l.b16 %v4471
        %v4632 = vunpack.c.h.b16 %v4471
        %v4633 = vunpack.c.l.b16 %v4472
        %v4634 = vunpack.c.h.b16 %v4472
        %v4635 = vunpack.c.l.b16 %v4473
        %v4636 = vunpack.c.h.b16 %v4473
        %v4637 = vunpack.c.l.b16 %v4474
        %v4638 = vunpack.c.h.b16 %v4474
        %v4639 = vunpack.c.l.b16 %v4475
        %v4640 = vunpack.c.h.b16 %v4475
        %v4641 = vunpack.c.l.b16 %v4476
        %v4642 = vunpack.c.h.b16 %v4476
        %v4643 = vunpack.c.l.b16 %v4477
        %v4644 = vunpack.c.h.b16 %v4477
        %v4645 = vunpack.c.l.b16 %v4478
        %v4646 = vunpack.c.h.b16 %v4478
        %v4647 = vunpack.c.l.b16 %v4479
        %v4648 = vunpack.c.h.b16 %v4479
        %v4649 = vunpack.c.l.b16 %v4480
        %v4650 = vunpack.c.h.b16 %v4480
        %v4651 = vunpack.c.l.b16 %v4481
        %v4652 = vunpack.c.h.b16 %v4481
        %v4653 = vunpack.c.l.b16 %v4482
        %v4654 = vunpack.c.h.b16 %v4482
        %v4655 = vunpack.c.l.b16 %v4483
        %v4656 = vunpack.c.h.b16 %v4483
        %v4657 = vunpack.c.l.b16 %v4484
        %v4658 = vunpack.c.h.b16 %v4484
        %v4659 = vunpack.c.l.b16 %v4485
        %v4660 = vunpack.c.h.b16 %v4485
        %v4661 = vunpack.c.l.b16 %v4486
        %v4662 = vunpack.c.h.b16 %v4486
        %v4663 = vunpack.c.l.b16 %v4487
        %v4664 = vunpack.c.h.b16 %v4487
        %v4665 = vunpack.c.l.b16 %v4488
        %v4666 = vunpack.c.h.b16 %v4488
        %v4667 = vunpack.c.l.b16 %v4489
        %v4668 = vunpack.c.h.b16 %v4489
        %v4669 = vunpack.c.l.b16 %v4490
        %v4670 = vunpack.c.h.b16 %v4490
        %v4671 = vunpack.c.l.b16 %v4491
        %v4672 = vunpack.c.h.b16 %v4491
        %v4673 = vunpack.c.l.b16 %v4492
        %v4674 = vunpack.c.h.b16 %v4492
        %v4675 = vunpack.c.l.b16 %v4493
        %v4676 = vunpack.c.h.b16 %v4493
        %v4677 = vunpack.c.l.b16 %v4494
        %v4678 = vunpack.c.h.b16 %v4494
        %v4679 = vunpack.c.l.b16 %v4495
        %v4680 = vunpack.c.h.b16 %v4495
        %v4681 = vunpack.c.l.b16 %v4496
        %v4682 = vunpack.c.h.b16 %v4496
        %v4683 = vunpack.c.l.b16 %v4497
        %v4684 = vunpack.c.h.b16 %v4497
        %v4685 = vunpack.c.l.b16 %v4498
        %v4686 = vunpack.c.h.b16 %v4498
        %v4687 = vunpack.c.l.b16 %v4499
        %v4688 = vunpack.c.h.b16 %v4499
        %v4689 = vunpack.c.l.b16 %v4500
        %v4690 = vunpack.c.h.b16 %v4500
        %v4691 = vunpack.c.l.b16 %v4501
        %v4692 = vunpack.c.h.b16 %v4501
        %v4693 = vunpack.c.l.b16 %v4502
        %v4694 = vunpack.c.h.b16 %v4502
        %v4695 = vpack.c.b16 %v4601, %v4599
        %v4696 = vpack.c.b16 %v4602, %v4600
        %v4697 = vpack.c.b16 %v4605, %v4603
        %v4698 = vpack.c.b16 %v4606, %v4604
        %v4699 = vpack.c.b16 %v4609, %v4607
        %v4700 = vpack.c.b16 %v4610, %v4608
        %v4701 = vpack.c.b16 %v4613, %v4611
        %v4702 = vpack.c.b16 %v4614, %v4612
        %v4703 = vpack.c.b16 %v4617, %v4615
        %v4704 = vpack.c.b16 %v4618, %v4616
        %v4705 = vpack.c.b16 %v4621, %v4619
        %v4706 = vpack.c.b16 %v4622, %v4620
        %v4707 = vpack.c.b16 %v4625, %v4623
        %v4708 = vpack.c.b16 %v4626, %v4624
        %v4709 = vpack.c.b16 %v4629, %v4627
        %v4710 = vpack.c.b16 %v4630, %v4628
        %v4711 = vpack.c.b16 %v4633, %v4631
        %v4712 = vpack.c.b16 %v4634, %v4632
        %v4713 = vpack.c.b16 %v4637, %v4635
        %v4714 = vpack.c.b16 %v4638, %v4636
        %v4715 = vpack.c.b16 %v4641, %v4639
        %v4716 = vpack.c.b16 %v4642, %v4640
        %v4717 = vpack.c.b16 %v4645, %v4643
        %v4718 = vpack.c.b16 %v4646, %v4644
        %v4719 = vpack.c.b16 %v4649, %v4647
        %v4720 = vpack.c.b16 %v4650, %v4648
        %v4721 = vpack.c.b16 %v4653, %v4651
        %v4722 = vpack.c.b16 %v4654, %v4652
        %v4723 = vpack.c.b16 %v4657, %v4655
        %v4724 = vpack.c.b16 %v4658, %v4656
        %v4725 = vpack.c.b16 %v4661, %v4659
        %v4726 = vpack.c.b16 %v4662, %v4660
        %v4727 = vpack.c.b16 %v4665, %v4663
        %v4728 = vpack.c.b16 %v4666, %v4664
        %v4729 = vpack.c.b16 %v4669, %v4667
        %v4730 = vpack.c.b16 %v4670, %v4668
        %v4731 = vpack.c.b16 %v4673, %v4671
        %v4732 = vpack.c.b16 %v4674, %v4672
        %v4733 = vpack.c.b16 %v4677, %v4675
        %v4734 = vpack.c.b16 %v4678, %v4676
        %v4735 = vpack.c.b16 %v4681, %v4679
        %v4736 = vpack.c.b16 %v4682, %v4680
        %v4737 = vpack.c.b16 %v4685, %v4683
        %v4738 = vpack.c.b16 %v4686, %v4684
        %v4739 = vpack.c.b16 %v4689, %v4687
        %v4740 = vpack.c.b16 %v4690, %v4688
        %v4741 = vpack.c.b16 %v4693, %v4691
        %v4742 = vpack.c.b16 %v4694, %v4692
        %4791 = vmatpush.bf16.msra.mxu0 %v4709
        %4792 = vmatpush.bf16.msra.mxu0 %v4707
        %4793 = vmatpush.bf16.msra.mxu0 %v4705
        %4794 = vmatpush.bf16.msra.mxu0 %v4703
        %4795 = vmatpush.bf16.msra.mxu0 %v4701
        %4796 = vmatpush.bf16.msra.mxu0 %v4699
        %4797 = vmatpush.bf16.msra.mxu0 %v4697
        %4798 = vmatpush.bf16.msra.mxu0 %v4695
        %4799 = vmatmul.bf16.gmra.mxu0 %v4527
        %v4800 = vpop.f32.mrf.mxu0
        %v4801 = vadd.f32 0.0, %v4800
        %v4802 = vpop.f32.mrf.mxu0
        %v4803 = vadd.f32 0.0, %v4802
        %4804 = vmatmul.bf16.gmra.mxu0 %v4530
        %v4805 = vpop.f32.mrf.mxu0
        %v4806 = vadd.f32 0.0, %v4805
        %v4807 = vpop.f32.mrf.mxu0
        %v4808 = vadd.f32 0.0, %v4807
        %4809 = vmatmul.bf16.gmra.mxu0 %v4533
        %v4810 = vpop.f32.mrf.mxu0
        %v4811 = vadd.f32 0.0, %v4810
        %v4812 = vpop.f32.mrf.mxu0
        %v4813 = vadd.f32 0.0, %v4812
        %4814 = vmatmul.bf16.gmra.mxu0 %v4536
        %v4815 = vpop.f32.mrf.mxu0
        %v4816 = vadd.f32 0.0, %v4815
        %v4817 = vpop.f32.mrf.mxu0
        %v4818 = vadd.f32 0.0, %v4817
        %4819 = vdwg.mxu0
        %4820 = vmatpush.bf16.msra.mxu0 %v4725
        %4821 = vmatpush.bf16.msra.mxu0 %v4723
        %4822 = vmatpush.bf16.msra.mxu0 %v4721
        %4823 = vmatpush.bf16.msra.mxu0 %v4719
        %4824 = vmatpush.bf16.msra.mxu0 %v4717
        %4825 = vmatpush.bf16.msra.mxu0 %v4715
        %4826 = vmatpush.bf16.msra.mxu0 %v4713
        %4827 = vmatpush.bf16.msra.mxu0 %v4711
        %4828 = vmatmul.bf16.gmra.mxu0 %v4528
        %v4829 = vpop.f32.mrf.mxu0
        %v4830 = vadd.f32 %v4801, %v4829
        %v4831 = vpop.f32.mrf.mxu0
        %v4832 = vadd.f32 %v4803, %v4831
        %4833 = vmatmul.bf16.gmra.mxu0 %v4531
        %v4834 = vpop.f32.mrf.mxu0
        %v4835 = vadd.f32 %v4806, %v4834
        %v4836 = vpop.f32.mrf.mxu0
        %v4837 = vadd.f32 %v4808, %v4836
        %4838 = vmatmul.bf16.gmra.mxu0 %v4534
        %v4839 = vpop.f32.mrf.mxu0
        %v4840 = vadd.f32 %v4811, %v4839
        %v4841 = vpop.f32.mrf.mxu0
        %v4842 = vadd.f32 %v4813, %v4841
        %4843 = vmatmul.bf16.gmra.mxu0 %v4537
        %v4844 = vpop.f32.mrf.mxu0
        %v4845 = vadd.f32 %v4816, %v4844
        %v4846 = vpop.f32.mrf.mxu0
        %v4847 = vadd.f32 %v4818, %v4846
        %4848 = vdwg.mxu0
        %4849 = vmatpush.bf16.msra.mxu0 %v4741
        %4850 = vmatpush.bf16.msra.mxu0 %v4739
        %4851 = vmatpush.bf16.msra.mxu0 %v4737
        %4852 = vmatpush.bf16.msra.mxu0 %v4735
        %4853 = vmatpush.bf16.msra.mxu0 %v4733
        %4854 = vmatpush.bf16.msra.mxu0 %v4731
        %4855 = vmatpush.bf16.msra.mxu0 %v4729
        %4856 = vmatpush.bf16.msra.mxu0 %v4727
        %4857 = vmatmul.bf16.gmra.mxu0 %v4529
        %v4858 = vpop.f32.mrf.mxu0
        %v4859 = vadd.f32 %v4830, %v4858
        %v4860 = vpop.f32.mrf.mxu0
        %v4861 = vadd.f32 %v4832, %v4860
        %4862 = vmatmul.bf16.gmra.mxu0 %v4532
        %v4863 = vpop.f32.mrf.mxu0
        %v4864 = vadd.f32 %v4835, %v4863
        %v4865 = vpop.f32.mrf.mxu0
        %v4866 = vadd.f32 %v4837, %v4865
        %4867 = vmatmul.bf16.gmra.mxu0 %v4535
        %v4868 = vpop.f32.mrf.mxu0
        %v4869 = vadd.f32 %v4840, %v4868
        %v4870 = vpop.f32.mrf.mxu0
        %v4871 = vadd.f32 %v4842, %v4870
        %4872 = vmatmul.bf16.gmra.mxu0 %v4538
        %v4873 = vpop.f32.mrf.mxu0
        %v4874 = vadd.f32 %v4845, %v4873
        %v4875 = vpop.f32.mrf.mxu0
        %v4876 = vadd.f32 %v4847, %v4875
        %4877 = vdwg.mxu0
        %4878 = vmatpush.bf16.msra.mxu0 %v4710
        %4879 = vmatpush.bf16.msra.mxu0 %v4708
        %4880 = vmatpush.bf16.msra.mxu0 %v4706
        %4881 = vmatpush.bf16.msra.mxu0 %v4704
        %4882 = vmatpush.bf16.msra.mxu0 %v4702
        %4883 = vmatpush.bf16.msra.mxu0 %v4700
        %4884 = vmatpush.bf16.msra.mxu0 %v4698
        %4885 = vmatpush.bf16.msra.mxu0 %v4696
        %4886 = vmatmul.bf16.gmra.mxu0 %v4527
        %v4887 = vpop.f32.mrf.mxu0
        %v4888 = vadd.f32 0.0, %v4887
        %v4889 = vpop.f32.mrf.mxu0
        %v4890 = vadd.f32 0.0, %v4889
        %4891 = vmatmul.bf16.gmra.mxu0 %v4530
        %v4892 = vpop.f32.mrf.mxu0
        %v4893 = vadd.f32 0.0, %v4892
        %v4894 = vpop.f32.mrf.mxu0
        %v4895 = vadd.f32 0.0, %v4894
        %4896 = vmatmul.bf16.gmra.mxu0 %v4533
        %v4897 = vpop.f32.mrf.mxu0
        %v4898 = vadd.f32 0.0, %v4897
        %v4899 = vpop.f32.mrf.mxu0
        %v4900 = vadd.f32 0.0, %v4899
        %4901 = vmatmul.bf16.gmra.mxu0 %v4536
        %v4902 = vpop.f32.mrf.mxu0
        %v4903 = vadd.f32 0.0, %v4902
        %v4904 = vpop.f32.mrf.mxu0
        %v4905 = vadd.f32 0.0, %v4904
        %4906 = vdwg.mxu0
        %4907 = vmatpush.bf16.msra.mxu0 %v4726
        %4908 = vmatpush.bf16.msra.mxu0 %v4724
        %4909 = vmatpush.bf16.msra.mxu0 %v4722
        %4910 = vmatpush.bf16.msra.mxu0 %v4720
        %4911 = vmatpush.bf16.msra.mxu0 %v4718
        %4912 = vmatpush.bf16.msra.mxu0 %v4716
        %4913 = vmatpush.bf16.msra.mxu0 %v4714
        %4914 = vmatpush.bf16.msra.mxu0 %v4712
        %4915 = vmatmul.bf16.gmra.mxu0 %v4528
        %v4916 = vpop.f32.mrf.mxu0
        %v4917 = vadd.f32 %v4888, %v4916
        %v4918 = vpop.f32.mrf.mxu0
        %v4919 = vadd.f32 %v4890, %v4918
        %4920 = vmatmul.bf16.gmra.mxu0 %v4531
        %v4921 = vpop.f32.mrf.mxu0
        %v4922 = vadd.f32 %v4893, %v4921
        %v4923 = vpop.f32.mrf.mxu0
        %v4924 = vadd.f32 %v4895, %v4923
        %4925 = vmatmul.bf16.gmra.mxu0 %v4534
        %v4926 = vpop.f32.mrf.mxu0
        %v4927 = vadd.f32 %v4898, %v4926
        %v4928 = vpop.f32.mrf.mxu0
        %v4929 = vadd.f32 %v4900, %v4928
        %4930 = vmatmul.bf16.gmra.mxu0 %v4537
        %v4931 = vpop.f32.mrf.mxu0
        %v4932 = vadd.f32 %v4903, %v4931
        %v4933 = vpop.f32.mrf.mxu0
        %v4934 = vadd.f32 %v4905, %v4933
        %4935 = vdwg.mxu0
        %4936 = vmatpush.bf16.msra.mxu0 %v4742
        %4937 = vmatpush.bf16.msra.mxu0 %v4740
        %4938 = vmatpush.bf16.msra.mxu0 %v4738
        %4939 = vmatpush.bf16.msra.mxu0 %v4736
        %4940 = vmatpush.bf16.msra.mxu0 %v4734
        %4941 = vmatpush.bf16.msra.mxu0 %v4732
        %4942 = vmatpush.bf16.msra.mxu0 %v4730
        %4943 = vmatpush.bf16.msra.mxu0 %v4728
        %4944 = vmatmul.bf16.gmra.mxu0 %v4529
        %v4945 = vpop.f32.mrf.mxu0
        %v4946 = vadd.f32 %v4917, %v4945
        %v4947 = vpop.f32.mrf.mxu0
        %v4948 = vadd.f32 %v4919, %v4947
        %4949 = vmatmul.bf16.gmra.mxu0 %v4532
        %v4950 = vpop.f32.mrf.mxu0
        %v4951 = vadd.f32 %v4922, %v4950
        %v4952 = vpop.f32.mrf.mxu0
        %v4953 = vadd.f32 %v4924, %v4952
        %4954 = vmatmul.bf16.gmra.mxu0 %v4535
        %v4955 = vpop.f32.mrf.mxu0
        %v4956 = vadd.f32 %v4927, %v4955
        %v4957 = vpop.f32.mrf.mxu0
        %v4958 = vadd.f32 %v4929, %v4957
        %4959 = vmatmul.bf16.gmra.mxu0 %v4538
        %v4960 = vpop.f32.mrf.mxu0
        %v4961 = vadd.f32 %v4932, %v4960
        %v4962 = vpop.f32.mrf.mxu0
        %v4963 = vadd.f32 %v4934, %v4962
        %4964 = vdwg.mxu0
        %v4965 = vadd.f32 %v4275, %v4859
        %v4966 = vadd.f32 %v4276, %v4946
        %v4967 = vadd.f32 %v4277, %v4861
        %v4968 = vadd.f32 %v4278, %v4948
        %v4969 = vadd.f32 %v4279, %v4864
        %v4970 = vadd.f32 %v4280, %v4951
        %v4971 = vadd.f32 %v4281, %v4866
        %v4972 = vadd.f32 %v4282, %v4953
        %v4973 = vadd.f32 %v4283, %v4869
        %v4974 = vadd.f32 %v4284, %v4956
        %v4975 = vadd.f32 %v4285, %v4871
        %v4976 = vadd.f32 %v4286, %v4958
        %v4977 = vadd.f32 %v4287, %v4874
        %v4978 = vadd.f32 %v4288, %v4961
        %v4979 = vadd.f32 %v4289, %v4876
        %v4980 = vadd.f32 %v4290, %v4963
        %vm4981 = vcmask 1041408
        %vm4982 = vcmask 1045508
        %vm4983 = vmor %vm4981, %vm4982
        %v4984 = vrot.slane %v2385, 6
        %v4985 = vrot.slane %v4984, 4
        %v4986 = vrot.slane %v2387, 6
        %v4987 = vsel %vm4983, %v4985, %v4986
        %v4988 = vrot.slane %v2386, 6
        %v4989 = vrot.slane %v4988, 4
        %v4990 = vrot.slane %v2388, 6
        %v4991 = vsel %vm4983, %v4989, %v4990
        %v4992 = vrot.slane %v2389, 6
        %v4993 = vrot.slane %v4992, 4
        %v4994 = vrot.slane %v2391, 6
        %v4995 = vsel %vm4983, %v4993, %v4994
        %v4996 = vrot.slane %v2390, 6
        %v4997 = vrot.slane %v4996, 4
        %v4998 = vrot.slane %v2392, 6
        %v4999 = vsel %vm4983, %v4997, %v4998
        %v5000 = vrot.slane %v2393, 6
        %v5001 = vrot.slane %v5000, 4
        %v5002 = vrot.slane %v2395, 6
        %v5003 = vsel %vm4983, %v5001, %v5002
        %v5004 = vrot.slane %v2394, 6
        %v5005 = vrot.slane %v5004, 4
        %v5006 = vrot.slane %v2396, 6
        %v5007 = vsel %vm4983, %v5005, %v5006
        %v5008 = vrot.slane %v2397, 6
        %v5009 = vrot.slane %v5008, 4
        %v5010 = vrot.slane %v2399, 6
        %v5011 = vsel %vm4983, %v5009, %v5010
        %v5012 = vrot.slane %v2398, 6
        %v5013 = vrot.slane %v5012, 4
        %v5014 = vrot.slane %v2400, 6
        %v5015 = vsel %vm4983, %v5013, %v5014
        %v5016 = vrot.slane %v2401, 6
        %v5017 = vrot.slane %v5016, 4
        %v5018 = vrot.slane %v2403, 6
        %v5019 = vsel %vm4983, %v5017, %v5018
        %v5020 = vrot.slane %v2402, 6
        %v5021 = vrot.slane %v5020, 4
        %v5022 = vrot.slane %v2404, 6
        %v5023 = vsel %vm4983, %v5021, %v5022
        %v5024 = vrot.slane %v2405, 6
        %v5025 = vrot.slane %v5024, 4
        %v5026 = vrot.slane %v2407, 6
        %v5027 = vsel %vm4983, %v5025, %v5026
        %v5028 = vrot.slane %v2406, 6
        %v5029 = vrot.slane %v5028, 4
        %v5030 = vrot.slane %v2408, 6
        %v5031 = vsel %vm4983, %v5029, %v5030
        %v5032 = vrot.slane %v2409, 6
        %v5033 = vrot.slane %v5032, 4
        %v5034 = vrot.slane %v2411, 6
        %v5035 = vsel %vm4983, %v5033, %v5034
        %v5036 = vrot.slane %v2410, 6
        %v5037 = vrot.slane %v5036, 4
        %v5038 = vrot.slane %v2412, 6
        %v5039 = vsel %vm4983, %v5037, %v5038
        %v5040 = vrot.slane %v2413, 6
        %v5041 = vrot.slane %v5040, 4
        %v5042 = vrot.slane %v2415, 6
        %v5043 = vsel %vm4983, %v5041, %v5042
        %v5044 = vrot.slane %v2414, 6
        %v5045 = vrot.slane %v5044, 4
        %v5046 = vrot.slane %v2416, 6
        %v5047 = vsel %vm4983, %v5045, %v5046
        %s5048 = scalar_lea.vmem %s3, 1536
        %v5049 = vld [vmem:[%s5048] sm:$0xff]
        %v5050 = vld [vmem:[%s5048 + $0x8] sm:$0xff]
        %v5051 = vld [vmem:[%s5048 + $0x10] sm:$0xff]
        %v5052 = vld [vmem:[%s5048 + $0x18] sm:$0xff]
        %v5053 = vld [vmem:[%s5048 + $0x20] sm:$0xff]
        %v5054 = vld [vmem:[%s5048 + $0x28] sm:$0xff]
        %v5055 = vld [vmem:[%s5048 + $0x30] sm:$0xff]
        %v5056 = vld [vmem:[%s5048 + $0x38] sm:$0xff]
        %v5057 = vld [vmem:[%s5048 + $0x40] sm:$0xff]
        %v5058 = vld [vmem:[%s5048 + $0x48] sm:$0xff]
        %v5059 = vld [vmem:[%s5048 + $0x50] sm:$0xff]
        %v5060 = vld [vmem:[%s5048 + $0x58] sm:$0xff]
        %v5061 = vld [vmem:[%s5048 + $0x60] sm:$0xff]
        %v5062 = vld [vmem:[%s5048 + $0x68] sm:$0xff]
        %v5063 = vld [vmem:[%s5048 + $0x70] sm:$0xff]
        %v5064 = vld [vmem:[%s5048 + $0x78] sm:$0xff]
        %v5065 = vld [vmem:[%s5048 + $0x80] sm:$0xff]
        %v5066 = vld [vmem:[%s5048 + $0x88] sm:$0xff]
        %v5067 = vld [vmem:[%s5048 + $0x90] sm:$0xff]
        %v5068 = vld [vmem:[%s5048 + $0x98] sm:$0xff]
        %v5069 = vld [vmem:[%s5048 + $0xa0] sm:$0xff]
        %v5070 = vld [vmem:[%s5048 + $0xa8] sm:$0xff]
        %v5071 = vld [vmem:[%s5048 + $0xb0] sm:$0xff]
        %v5072 = vld [vmem:[%s5048 + $0xb8] sm:$0xff]
        %v5073 = vld [vmem:[%s5048 + $0xc0] sm:$0xff]
        %v5074 = vld [vmem:[%s5048 + $0xc8] sm:$0xff]
        %v5075 = vld [vmem:[%s5048 + $0xd0] sm:$0xff]
        %v5076 = vld [vmem:[%s5048 + $0xd8] sm:$0xff]
        %v5077 = vld [vmem:[%s5048 + $0xe0] sm:$0xff]
        %v5078 = vld [vmem:[%s5048 + $0xe8] sm:$0xff]
        %v5079 = vld [vmem:[%s5048 + $0xf0] sm:$0xff]
        %v5080 = vld [vmem:[%s5048 + $0xf8] sm:$0xff]
        %v5081 = vld [vmem:[%s5048 + $0x100] sm:$0xff]
        %v5082 = vld [vmem:[%s5048 + $0x108] sm:$0xff]
        %v5083 = vld [vmem:[%s5048 + $0x110] sm:$0xff]
        %v5084 = vld [vmem:[%s5048 + $0x118] sm:$0xff]
        %v5085 = vld [vmem:[%s5048 + $0x120] sm:$0xff]
        %v5086 = vld [vmem:[%s5048 + $0x128] sm:$0xff]
        %v5087 = vld [vmem:[%s5048 + $0x130] sm:$0xff]
        %v5088 = vld [vmem:[%s5048 + $0x138] sm:$0xff]
        %v5089 = vld [vmem:[%s5048 + $0x140] sm:$0xff]
        %v5090 = vld [vmem:[%s5048 + $0x148] sm:$0xff]
        %v5091 = vld [vmem:[%s5048 + $0x150] sm:$0xff]
        %v5092 = vld [vmem:[%s5048 + $0x158] sm:$0xff]
        %v5093 = vld [vmem:[%s5048 + $0x160] sm:$0xff]
        %v5094 = vld [vmem:[%s5048 + $0x168] sm:$0xff]
        %v5095 = vld [vmem:[%s5048 + $0x170] sm:$0xff]
        %v5096 = vld [vmem:[%s5048 + $0x178] sm:$0xff]
        %v5097 = vunpack.c.l.b16 %v4987
        %v5098 = vunpack.c.h.b16 %v4987
        %v5099 = vunpack.c.l.b16 %v4991
        %v5100 = vunpack.c.l.b16 %v4995
        %v5101 = vunpack.c.h.b16 %v4995
        %v5102 = vunpack.c.l.b16 %v4999
        %v5103 = vunpack.c.l.b16 %v5003
        %v5104 = vunpack.c.h.b16 %v5003
        %v5105 = vunpack.c.l.b16 %v5007
        %v5106 = vunpack.c.l.b16 %v5011
        %v5107 = vunpack.c.h.b16 %v5011
        %v5108 = vunpack.c.l.b16 %v5015
        %v5109 = vunpack.c.l.b16 %v5019
        %v5110 = vunpack.c.h.b16 %v5019
        %v5111 = vunpack.c.l.b16 %v5023
        %v5112 = vunpack.c.l.b16 %v5027
        %v5113 = vunpack.c.h.b16 %v5027
        %v5114 = vunpack.c.l.b16 %v5031
        %v5115 = vunpack.c.l.b16 %v5035
        %v5116 = vunpack.c.h.b16 %v5035
        %v5117 = vunpack.c.l.b16 %v5039
        %v5118 = vunpack.c.l.b16 %v5043
        %v5119 = vunpack.c.h.b16 %v5043
        %v5120 = vunpack.c.l.b16 %v5047
        %v5121 = vpack.c.b16 %v5100, %v5097
        %v5122 = vpack.c.b16 %v5101, %v5098
        %v5123 = vpack.c.b16 %v5102, %v5099
        %v5124 = vpack.c.b16 %v5106, %v5103
        %v5125 = vpack.c.b16 %v5107, %v5104
        %v5126 = vpack.c.b16 %v5108, %v5105
        %v5127 = vpack.c.b16 %v5112, %v5109
        %v5128 = vpack.c.b16 %v5113, %v5110
        %v5129 = vpack.c.b16 %v5114, %v5111
        %v5130 = vpack.c.b16 %v5118, %v5115
        %v5131 = vpack.c.b16 %v5119, %v5116
        %v5132 = vpack.c.b16 %v5120, %v5117
        %v5193 = vunpack.c.l.b16 %v5049
        %v5194 = vunpack.c.h.b16 %v5049
        %v5195 = vunpack.c.l.b16 %v5050
        %v5196 = vunpack.c.h.b16 %v5050
        %v5197 = vunpack.c.l.b16 %v5051
        %v5198 = vunpack.c.h.b16 %v5051
        %v5199 = vunpack.c.l.b16 %v5052
        %v5200 = vunpack.c.h.b16 %v5052
        %v5201 = vunpack.c.l.b16 %v5053
        %v5202 = vunpack.c.h.b16 %v5053
        %v5203 = vunpack.c.l.b16 %v5054
        %v5204 = vunpack.c.h.b16 %v5054
        %v5205 = vunpack.c.l.b16 %v5055
        %v5206 = vunpack.c.h.b16 %v5055
        %v5207 = vunpack.c.l.b16 %v5056
        %v5208 = vunpack.c.h.b16 %v5056
        %v5209 = vunpack.c.l.b16 %v5057
        %v5210 = vunpack.c.h.b16 %v5057
        %v5211 = vunpack.c.l.b16 %v5058
        %v5212 = vunpack.c.h.b16 %v5058
        %v5213 = vunpack.c.l.b16 %v5059
        %v5214 = vunpack.c.h.b16 %v5059
        %v5215 = vunpack.c.l.b16 %v5060
        %v5216 = vunpack.c.h.b16 %v5060
        %v5217 = vunpack.c.l.b16 %v5061
        %v5218 = vunpack.c.h.b16 %v5061
        %v5219 = vunpack.c.l.b16 %v5062
        %v5220 = vunpack.c.h.b16 %v5062
        %v5221 = vunpack.c.l.b16 %v5063
        %v5222 = vunpack.c.h.b16 %v5063
        %v5223 = vunpack.c.l.b16 %v5064
        %v5224 = vunpack.c.h.b16 %v5064
        %v5225 = vunpack.c.l.b16 %v5065
        %v5226 = vunpack.c.h.b16 %v5065
        %v5227 = vunpack.c.l.b16 %v5066
        %v5228 = vunpack.c.h.b16 %v5066
        %v5229 = vunpack.c.l.b16 %v5067
        %v5230 = vunpack.c.h.b16 %v5067
        %v5231 = vunpack.c.l.b16 %v5068
        %v5232 = vunpack.c.h.b16 %v5068
        %v5233 = vunpack.c.l.b16 %v5069
        %v5234 = vunpack.c.h.b16 %v5069
        %v5235 = vunpack.c.l.b16 %v5070
        %v5236 = vunpack.c.h.b16 %v5070
        %v5237 = vunpack.c.l.b16 %v5071
        %v5238 = vunpack.c.h.b16 %v5071
        %v5239 = vunpack.c.l.b16 %v5072
        %v5240 = vunpack.c.h.b16 %v5072
        %v5241 = vunpack.c.l.b16 %v5073
        %v5242 = vunpack.c.h.b16 %v5073
        %v5243 = vunpack.c.l.b16 %v5074
        %v5244 = vunpack.c.h.b16 %v5074
        %v5245 = vunpack.c.l.b16 %v5075
        %v5246 = vunpack.c.h.b16 %v5075
        %v5247 = vunpack.c.l.b16 %v5076
        %v5248 = vunpack.c.h.b16 %v5076
        %v5249 = vunpack.c.l.b16 %v5077
        %v5250 = vunpack.c.h.b16 %v5077
        %v5251 = vunpack.c.l.b16 %v5078
        %v5252 = vunpack.c.h.b16 %v5078
        %v5253 = vunpack.c.l.b16 %v5079
        %v5254 = vunpack.c.h.b16 %v5079
        %v5255 = vunpack.c.l.b16 %v5080
        %v5256 = vunpack.c.h.b16 %v5080
        %v5257 = vunpack.c.l.b16 %v5081
        %v5258 = vunpack.c.h.b16 %v5081
        %v5259 = vunpack.c.l.b16 %v5082
        %v5260 = vunpack.c.h.b16 %v5082
        %v5261 = vunpack.c.l.b16 %v5083
        %v5262 = vunpack.c.h.b16 %v5083
        %v5263 = vunpack.c.l.b16 %v5084
        %v5264 = vunpack.c.h.b16 %v5084
        %v5265 = vunpack.c.l.b16 %v5085
        %v5266 = vunpack.c.h.b16 %v5085
        %v5267 = vunpack.c.l.b16 %v5086
        %v5268 = vunpack.c.h.b16 %v5086
        %v5269 = vunpack.c.l.b16 %v5087
        %v5270 = vunpack.c.h.b16 %v5087
        %v5271 = vunpack.c.l.b16 %v5088
        %v5272 = vunpack.c.h.b16 %v5088
        %v5273 = vunpack.c.l.b16 %v5089
        %v5274 = vunpack.c.h.b16 %v5089
        %v5275 = vunpack.c.l.b16 %v5090
        %v5276 = vunpack.c.h.b16 %v5090
        %v5277 = vunpack.c.l.b16 %v5091
        %v5278 = vunpack.c.h.b16 %v5091
        %v5279 = vunpack.c.l.b16 %v5092
        %v5280 = vunpack.c.h.b16 %v5092
        %v5281 = vunpack.c.l.b16 %v5093
        %v5282 = vunpack.c.h.b16 %v5093
        %v5283 = vunpack.c.l.b16 %v5094
        %v5284 = vunpack.c.h.b16 %v5094
        %v5285 = vunpack.c.l.b16 %v5095
        %v5286 = vunpack.c.h.b16 %v5095
        %v5287 = vunpack.c.l.b16 %v5096
        %v5288 = vunpack.c.h.b16 %v5096
        %v5289 = vpack.c.b16 %v5195, %v5193
        %v5290 = vpack.c.b16 %v5196, %v5194
        %v5291 = vpack.c.b16 %v5199, %v5197
        %v5292 = vpack.c.b16 %v5200, %v5198
        %v5293 = vpack.c.b16 %v5203, %v5201
        %v5294 = vpack.c.b16 %v5204, %v5202
        %v5295 = vpack.c.b16 %v5207, %v5205
        %v5296 = vpack.c.b16 %v5208, %v5206
        %v5297 = vpack.c.b16 %v5211, %v5209
        %v5298 = vpack.c.b16 %v5212, %v5210
        %v5299 = vpack.c.b16 %v5215, %v5213
        %v5300 = vpack.c.b16 %v5216, %v5214
        %v5301 = vpack.c.b16 %v5219, %v5217
        %v5302 = vpack.c.b16 %v5220, %v5218
        %v5303 = vpack.c.b16 %v5223, %v5221
        %v5304 = vpack.c.b16 %v5224, %v5222
        %v5305 = vpack.c.b16 %v5227, %v5225
        %v5306 = vpack.c.b16 %v5228, %v5226
        %v5307 = vpack.c.b16 %v5231, %v5229
        %v5308 = vpack.c.b16 %v5232, %v5230
        %v5309 = vpack.c.b16 %v5235, %v5233
        %v5310 = vpack.c.b16 %v5236, %v5234
        %v5311 = vpack.c.b16 %v5239, %v5237
        %v5312 = vpack.c.b16 %v5240, %v5238
        %v5313 = vpack.c.b16 %v5243, %v5241
        %v5314 = vpack.c.b16 %v5244, %v5242
        %v5315 = vpack.c.b16 %v5247, %v5245
        %v5316 = vpack.c.b16 %v5248, %v5246
        %v5317 = vpack.c.b16 %v5251, %v5249
        %v5318 = vpack.c.b16 %v5252, %v5250
        %v5319 = vpack.c.b16 %v5255, %v5253
        %v5320 = vpack.c.b16 %v5256, %v5254
        %v5321 = vpack.c.b16 %v5259, %v5257
        %v5322 = vpack.c.b16 %v5260, %v5258
        %v5323 = vpack.c.b16 %v5263, %v5261
        %v5324 = vpack.c.b16 %v5264, %v5262
        %v5325 = vpack.c.b16 %v5267, %v5265
        %v5326 = vpack.c.b16 %v5268, %v5266
        %v5327 = vpack.c.b16 %v5271, %v5269
        %v5328 = vpack.c.b16 %v5272, %v5270
        %v5329 = vpack.c.b16 %v5275, %v5273
        %v5330 = vpack.c.b16 %v5276, %v5274
        %v5331 = vpack.c.b16 %v5279, %v5277
        %v5332 = vpack.c.b16 %v5280, %v5278
        %v5333 = vpack.c.b16 %v5283, %v5281
        %v5334 = vpack.c.b16 %v5284, %v5282
        %v5335 = vpack.c.b16 %v5287, %v5285
        %v5336 = vpack.c.b16 %v5288, %v5286
        %5385 = vmatpush.bf16.msra.mxu0 %v5303
        %5386 = vmatpush.bf16.msra.mxu0 %v5301
        %5387 = vmatpush.bf16.msra.mxu0 %v5299
        %5388 = vmatpush.bf16.msra.mxu0 %v5297
        %5389 = vmatpush.bf16.msra.mxu0 %v5295
        %5390 = vmatpush.bf16.msra.mxu0 %v5293
        %5391 = vmatpush.bf16.msra.mxu0 %v5291
        %5392 = vmatpush.bf16.msra.mxu0 %v5289
        %5393 = vmatmul.bf16.gmra.mxu0 %v5121
        %v5394 = vpop.f32.mrf.mxu0
        %v5395 = vadd.f32 0.0, %v5394
        %v5396 = vpop.f32.mrf.mxu0
        %v5397 = vadd.f32 0.0, %v5396
        %5398 = vmatmul.bf16.gmra.mxu0 %v5124
        %v5399 = vpop.f32.mrf.mxu0
        %v5400 = vadd.f32 0.0, %v5399
        %v5401 = vpop.f32.mrf.mxu0
        %v5402 = vadd.f32 0.0, %v5401
        %5403 = vmatmul.bf16.gmra.mxu0 %v5127
        %v5404 = vpop.f32.mrf.mxu0
        %v5405 = vadd.f32 0.0, %v5404
        %v5406 = vpop.f32.mrf.mxu0
        %v5407 = vadd.f32 0.0, %v5406
        %5408 = vmatmul.bf16.gmra.mxu0 %v5130
        %v5409 = vpop.f32.mrf.mxu0
        %v5410 = vadd.f32 0.0, %v5409
        %v5411 = vpop.f32.mrf.mxu0
        %v5412 = vadd.f32 0.0, %v5411
        %5413 = vdwg.mxu0
        %5414 = vmatpush.bf16.msra.mxu0 %v5319
        %5415 = vmatpush.bf16.msra.mxu0 %v5317
        %5416 = vmatpush.bf16.msra.mxu0 %v5315
        %5417 = vmatpush.bf16.msra.mxu0 %v5313
        %5418 = vmatpush.bf16.msra.mxu0 %v5311
        %5419 = vmatpush.bf16.msra.mxu0 %v5309
        %5420 = vmatpush.bf16.msra.mxu0 %v5307
        %5421 = vmatpush.bf16.msra.mxu0 %v5305
        %5422 = vmatmul.bf16.gmra.mxu0 %v5122
        %v5423 = vpop.f32.mrf.mxu0
        %v5424 = vadd.f32 %v5395, %v5423
        %v5425 = vpop.f32.mrf.mxu0
        %v5426 = vadd.f32 %v5397, %v5425
        %5427 = vmatmul.bf16.gmra.mxu0 %v5125
        %v5428 = vpop.f32.mrf.mxu0
        %v5429 = vadd.f32 %v5400, %v5428
        %v5430 = vpop.f32.mrf.mxu0
        %v5431 = vadd.f32 %v5402, %v5430
        %5432 = vmatmul.bf16.gmra.mxu0 %v5128
        %v5433 = vpop.f32.mrf.mxu0
        %v5434 = vadd.f32 %v5405, %v5433
        %v5435 = vpop.f32.mrf.mxu0
        %v5436 = vadd.f32 %v5407, %v5435
        %5437 = vmatmul.bf16.gmra.mxu0 %v5131
        %v5438 = vpop.f32.mrf.mxu0
        %v5439 = vadd.f32 %v5410, %v5438
        %v5440 = vpop.f32.mrf.mxu0
        %v5441 = vadd.f32 %v5412, %v5440
        %5442 = vdwg.mxu0
        %5443 = vmatpush.bf16.msra.mxu0 %v5335
        %5444 = vmatpush.bf16.msra.mxu0 %v5333
        %5445 = vmatpush.bf16.msra.mxu0 %v5331
        %5446 = vmatpush.bf16.msra.mxu0 %v5329
        %5447 = vmatpush.bf16.msra.mxu0 %v5327
        %5448 = vmatpush.bf16.msra.mxu0 %v5325
        %5449 = vmatpush.bf16.msra.mxu0 %v5323
        %5450 = vmatpush.bf16.msra.mxu0 %v5321
        %5451 = vmatmul.bf16.gmra.mxu0 %v5123
        %v5452 = vpop.f32.mrf.mxu0
        %v5453 = vadd.f32 %v5424, %v5452
        %v5454 = vpop.f32.mrf.mxu0
        %v5455 = vadd.f32 %v5426, %v5454
        %5456 = vmatmul.bf16.gmra.mxu0 %v5126
        %v5457 = vpop.f32.mrf.mxu0
        %v5458 = vadd.f32 %v5429, %v5457
        %v5459 = vpop.f32.mrf.mxu0
        %v5460 = vadd.f32 %v5431, %v5459
        %5461 = vmatmul.bf16.gmra.mxu0 %v5129
        %v5462 = vpop.f32.mrf.mxu0
        %v5463 = vadd.f32 %v5434, %v5462
        %v5464 = vpop.f32.mrf.mxu0
        %v5465 = vadd.f32 %v5436, %v5464
        %5466 = vmatmul.bf16.gmra.mxu0 %v5132
        %v5467 = vpop.f32.mrf.mxu0
        %v5468 = vadd.f32 %v5439, %v5467
        %v5469 = vpop.f32.mrf.mxu0
        %v5470 = vadd.f32 %v5441, %v5469
        %5471 = vdwg.mxu0
        %5472 = vmatpush.bf16.msra.mxu0 %v5304
        %5473 = vmatpush.bf16.msra.mxu0 %v5302
        %5474 = vmatpush.bf16.msra.mxu0 %v5300
        %5475 = vmatpush.bf16.msra.mxu0 %v5298
        %5476 = vmatpush.bf16.msra.mxu0 %v5296
        %5477 = vmatpush.bf16.msra.mxu0 %v5294
        %5478 = vmatpush.bf16.msra.mxu0 %v5292
        %5479 = vmatpush.bf16.msra.mxu0 %v5290
        %5480 = vmatmul.bf16.gmra.mxu0 %v5121
        %v5481 = vpop.f32.mrf.mxu0
        %v5482 = vadd.f32 0.0, %v5481
        %v5483 = vpop.f32.mrf.mxu0
        %v5484 = vadd.f32 0.0, %v5483
        %5485 = vmatmul.bf16.gmra.mxu0 %v5124
        %v5486 = vpop.f32.mrf.mxu0
        %v5487 = vadd.f32 0.0, %v5486
        %v5488 = vpop.f32.mrf.mxu0
        %v5489 = vadd.f32 0.0, %v5488
        %5490 = vmatmul.bf16.gmra.mxu0 %v5127
        %v5491 = vpop.f32.mrf.mxu0
        %v5492 = vadd.f32 0.0, %v5491
        %v5493 = vpop.f32.mrf.mxu0
        %v5494 = vadd.f32 0.0, %v5493
        %5495 = vmatmul.bf16.gmra.mxu0 %v5130
        %v5496 = vpop.f32.mrf.mxu0
        %v5497 = vadd.f32 0.0, %v5496
        %v5498 = vpop.f32.mrf.mxu0
        %v5499 = vadd.f32 0.0, %v5498
        %5500 = vdwg.mxu0
        %5501 = vmatpush.bf16.msra.mxu0 %v5320
        %5502 = vmatpush.bf16.msra.mxu0 %v5318
        %5503 = vmatpush.bf16.msra.mxu0 %v5316
        %5504 = vmatpush.bf16.msra.mxu0 %v5314
        %5505 = vmatpush.bf16.msra.mxu0 %v5312
        %5506 = vmatpush.bf16.msra.mxu0 %v5310
        %5507 = vmatpush.bf16.msra.mxu0 %v5308
        %5508 = vmatpush.bf16.msra.mxu0 %v5306
        %5509 = vmatmul.bf16.gmra.mxu0 %v5122
        %v5510 = vpop.f32.mrf.mxu0
        %v5511 = vadd.f32 %v5482, %v5510
        %v5512 = vpop.f32.mrf.mxu0
        %v5513 = vadd.f32 %v5484, %v5512
        %5514 = vmatmul.bf16.gmra.mxu0 %v5125
        %v5515 = vpop.f32.mrf.mxu0
        %v5516 = vadd.f32 %v5487, %v5515
        %v5517 = vpop.f32.mrf.mxu0
        %v5518 = vadd.f32 %v5489, %v5517
        %5519 = vmatmul.bf16.gmra.mxu0 %v5128
        %v5520 = vpop.f32.mrf.mxu0
        %v5521 = vadd.f32 %v5492, %v5520
        %v5522 = vpop.f32.mrf.mxu0
        %v5523 = vadd.f32 %v5494, %v5522
        %5524 = vmatmul.bf16.gmra.mxu0 %v5131
        %v5525 = vpop.f32.mrf.mxu0
        %v5526 = vadd.f32 %v5497, %v5525
        %v5527 = vpop.f32.mrf.mxu0
        %v5528 = vadd.f32 %v5499, %v5527
        %5529 = vdwg.mxu0
        %5530 = vmatpush.bf16.msra.mxu0 %v5336
        %5531 = vmatpush.bf16.msra.mxu0 %v5334
        %5532 = vmatpush.bf16.msra.mxu0 %v5332
        %5533 = vmatpush.bf16.msra.mxu0 %v5330
        %5534 = vmatpush.bf16.msra.mxu0 %v5328
        %5535 = vmatpush.bf16.msra.mxu0 %v5326
        %5536 = vmatpush.bf16.msra.mxu0 %v5324
        %5537 = vmatpush.bf16.msra.mxu0 %v5322
        %5538 = vmatmul.bf16.gmra.mxu0 %v5123
        %v5539 = vpop.f32.mrf.mxu0
        %v5540 = vadd.f32 %v5511, %v5539
        %v5541 = vpop.f32.mrf.mxu0
        %v5542 = vadd.f32 %v5513, %v5541
        %5543 = vmatmul.bf16.gmra.mxu0 %v5126
        %v5544 = vpop.f32.mrf.mxu0
        %v5545 = vadd.f32 %v5516, %v5544
        %v5546 = vpop.f32.mrf.mxu0
        %v5547 = vadd.f32 %v5518, %v5546
        %5548 = vmatmul.bf16.gmra.mxu0 %v5129
        %v5549 = vpop.f32.mrf.mxu0
        %v5550 = vadd.f32 %v5521, %v5549
        %v5551 = vpop.f32.mrf.mxu0
        %v5552 = vadd.f32 %v5523, %v5551
        %5553 = vmatmul.bf16.gmra.mxu0 %v5132
        %v5554 = vpop.f32.mrf.mxu0
        %v5555 = vadd.f32 %v5526, %v5554
        %v5556 = vpop.f32.mrf.mxu0
        %v5557 = vadd.f32 %v5528, %v5556
        %5558 = vdwg.mxu0
        %v5559 = vadd.f32 %v4965, %v5453
        %v5560 = vadd.f32 %v4966, %v5540
        %v5561 = vadd.f32 %v4967, %v5455
        %v5562 = vadd.f32 %v4968, %v5542
        %v5563 = vadd.f32 %v4969, %v5458
        %v5564 = vadd.f32 %v4970, %v5545
        %v5565 = vadd.f32 %v4971, %v5460
        %v5566 = vadd.f32 %v4972, %v5547
        %v5567 = vadd.f32 %v4973, %v5463
        %v5568 = vadd.f32 %v4974, %v5550
        %v5569 = vadd.f32 %v4975, %v5465
        %v5570 = vadd.f32 %v4976, %v5552
        %v5571 = vadd.f32 %v4977, %v5468
        %v5572 = vadd.f32 %v4978, %v5555
        %v5573 = vadd.f32 %v4979, %v5470
        %v5574 = vadd.f32 %v4980, %v5557
        %v5575 = vld [vmem:[%s4] sm:$0x3]
        %v5577 = vperm.slane %v5575, 0
        %v5578 = vperm.slane %v5575, 1
        %v5581 = vadd.f32 %v5559, %v5577
        %v5582 = vadd.f32 %v5560, %v5578
        %v5583 = vadd.f32 %v5561, %v5577
        %v5584 = vadd.f32 %v5562, %v5578
        %v5585 = vadd.f32 %v5563, %v5577
        %v5586 = vadd.f32 %v5564, %v5578
        %v5587 = vadd.f32 %v5565, %v5577
        %v5588 = vadd.f32 %v5566, %v5578
        %v5589 = vadd.f32 %v5567, %v5577
        %v5590 = vadd.f32 %v5568, %v5578
        %v5591 = vadd.f32 %v5569, %v5577
        %v5592 = vadd.f32 %v5570, %v5578
        %v5593 = vadd.f32 %v5571, %v5577
        %v5594 = vadd.f32 %v5572, %v5578
        %v5595 = vadd.f32 %v5573, %v5577
        %v5596 = vadd.f32 %v5574, %v5578
        %v5597 = vmax.f32 %v5581, 0.0
        %v5598 = vmax.f32 %v5582, 0.0
        %v5599 = vmax.f32 %v5583, 0.0
        %v5600 = vmax.f32 %v5584, 0.0
        %v5601 = vmax.f32 %v5585, 0.0
        %v5602 = vmax.f32 %v5586, 0.0
        %v5603 = vmax.f32 %v5587, 0.0
        %v5604 = vmax.f32 %v5588, 0.0
        %v5605 = vmax.f32 %v5589, 0.0
        %v5606 = vmax.f32 %v5590, 0.0
        %v5607 = vmax.f32 %v5591, 0.0
        %v5608 = vmax.f32 %v5592, 0.0
        %v5609 = vmax.f32 %v5593, 0.0
        %v5610 = vmax.f32 %v5594, 0.0
        %v5611 = vmax.f32 %v5595, 0.0
        %v5612 = vmax.f32 %v5596, 0.0
        %v5613 = vmax.f32 %v5597, %v5598
        %v5614 = vmax.f32 %v5599, %v5600
        %v5615 = vmax.f32 %v5601, %v5602
        %v5616 = vmax.f32 %v5603, %v5604
        %v5617 = vmax.f32 %v5605, %v5606
        %v5618 = vmax.f32 %v5607, %v5608
        %v5619 = vmax.f32 %v5609, %v5610
        %v5620 = vmax.f32 %v5611, %v5612
        %v5629 = vrot.slane %v5613, 2
        %v5630 = vrot.slane %v5613, 4
        %v5631 = vrot.slane %v5613, 6
        %v5632 = vrot.slane %v5614, 2
        %v5633 = vrot.slane %v5614, 4
        %v5634 = vrot.slane %v5614, 6
        %v5635 = vrot.slane %v5615, 2
        %v5636 = vrot.slane %v5615, 4
        %v5637 = vrot.slane %v5615, 6
        %v5638 = vrot.slane %v5616, 2
        %v5639 = vrot.slane %v5616, 4
        %v5640 = vrot.slane %v5616, 6
        %v5641 = vrot.slane %v5617, 2
        %v5642 = vrot.slane %v5617, 4
        %v5643 = vrot.slane %v5617, 6
        %v5644 = vrot.slane %v5618, 2
        %v5645 = vrot.slane %v5618, 4
        %v5646 = vrot.slane %v5618, 6
        %v5647 = vrot.slane %v5619, 2
        %v5648 = vrot.slane %v5619, 4
        %v5649 = vrot.slane %v5619, 6
        %v5650 = vrot.slane %v5620, 2
        %v5651 = vrot.slane %v5620, 4
        %v5652 = vrot.slane %v5620, 6
        %v5677 = vrot.slane %v5613, 7
        %v5678 = vrot.slane %v5677, 2
        %v5679 = vrot.slane %v5629, 7
        %v5680 = vrot.slane %v5679, 2
        %v5681 = vrot.slane %v5630, 7
        %v5682 = vrot.slane %v5681, 2
        %v5683 = vrot.slane %v5631, 7
        %v5684 = vrot.slane %v5683, 2
        %v5685 = vrot.slane %v5614, 7
        %v5686 = vrot.slane %v5685, 2
        %v5687 = vrot.slane %v5632, 7
        %v5688 = vrot.slane %v5687, 2
        %v5689 = vrot.slane %v5633, 7
        %v5690 = vrot.slane %v5689, 2
        %v5691 = vrot.slane %v5634, 7
        %v5692 = vrot.slane %v5691, 2
        %v5693 = vrot.slane %v5615, 7
        %v5694 = vrot.slane %v5693, 2
        %v5695 = vrot.slane %v5635, 7
        %v5696 = vrot.slane %v5695, 2
        %v5697 = vrot.slane %v5636, 7
        %v5698 = vrot.slane %v5697, 2
        %v5699 = vrot.slane %v5637, 7
        %v5700 = vrot.slane %v5699, 2
        %v5701 = vrot.slane %v5616, 7
        %v5702 = vrot.slane %v5701, 2
        %v5703 = vrot.slane %v5638, 7
        %v5704 = vrot.slane %v5703, 2
        %v5705 = vrot.slane %v5639, 7
        %v5706 = vrot.slane %v5705, 2
        %v5707 = vrot.slane %v5640, 7
        %v5708 = vrot.slane %v5707, 2
        %v5709 = vrot.slane %v5617, 7
        %v5710 = vrot.slane %v5709, 2
        %v5711 = vrot.slane %v5641, 7
        %v5712 = vrot.slane %v5711, 2
        %v5713 = vrot.slane %v5642, 7
        %v5714 = vrot.slane %v5713, 2
        %v5715 = vrot.slane %v5643, 7
        %v5716 = vrot.slane %v5715, 2
        %v5717 = vrot.slane %v5618, 7
        %v5718 = vrot.slane %v5717, 2
        %v5719 = vrot.slane %v5644, 7
        %v5720 = vrot.slane %v5719, 2
        %v5721 = vrot.slane %v5645, 7
        %v5722 = vrot.slane %v5721, 2
        %v5723 = vrot.slane %v5646, 7
        %v5724 = vrot.slane %v5723, 2
        %v5725 = vrot.slane %v5619, 7
        %v5726 = vrot.slane %v5725, 2
        %v5727 = vrot.slane %v5647, 7
        %v5728 = vrot.slane %v5727, 2
        %v5729 = vrot.slane %v5648, 7
        %v5730 = vrot.slane %v5729, 2
        %v5731 = vrot.slane %v5649, 7
        %v5732 = vrot.slane %v5731, 2
        %v5733 = vrot.slane %v5620, 7
        %v5734 = vrot.slane %v5733, 2
        %v5735 = vrot.slane %v5650, 7
        %v5736 = vrot.slane %v5735, 2
        %v5737 = vrot.slane %v5651, 7
        %v5738 = vrot.slane %v5737, 2
        %v5739 = vrot.slane %v5652, 7
        %v5740 = vrot.slane %v5739, 2
        %v5773 = vmax.f32 %v5613, %v5678
        %v5774 = vmax.f32 %v5629, %v5680
        %v5775 = vmax.f32 %v5630, %v5682
        %v5776 = vmax.f32 %v5631, %v5684
        %v5777 = vmax.f32 %v5614, %v5686
        %v5778 = vmax.f32 %v5632, %v5688
        %v5779 = vmax.f32 %v5633, %v5690
        %v5780 = vmax.f32 %v5634, %v5692
        %v5781 = vmax.f32 %v5615, %v5694
        %v5782 = vmax.f32 %v5635, %v5696
        %v5783 = vmax.f32 %v5636, %v5698
        %v5784 = vmax.f32 %v5637, %v5700
        %v5785 = vmax.f32 %v5616, %v5702
        %v5786 = vmax.f32 %v5638, %v5704
        %v5787 = vmax.f32 %v5639, %v5706
        %v5788 = vmax.f32 %v5640, %v5708
        %v5789 = vmax.f32 %v5617, %v5710
        %v5790 = vmax.f32 %v5641, %v5712
        %v5791 = vmax.f32 %v5642, %v5714
        %v5792 = vmax.f32 %v5643, %v5716
        %v5793 = vmax.f32 %v5618, %v5718
        %v5794 = vmax.f32 %v5644, %v5720
        %v5795 = vmax.f32 %v5645, %v5722
        %v5796 = vmax.f32 %v5646, %v5724
        %v5797 = vmax.f32 %v5619, %v5726
        %v5798 = vmax.f32 %v5647, %v5728
        %v5799 = vmax.f32 %v5648, %v5730
        %v5800 = vmax.f32 %v5649, %v5732
        %v5801 = vmax.f32 %v5620, %v5734
        %v5802 = vmax.f32 %v5650, %v5736
        %v5803 = vmax.f32 %v5651, %v5738
        %v5804 = vmax.f32 %v5652, %v5740
        %vm5837 = vcmask 1044484
        %v5838 = vsel %vm5837, %v5773, %v5773
        %vm5839 = vcmask 1046534
        %v5840 = vsel %vm5839, %v5773, %v5838
        %v5841 = vrot.slane %v5774, 7
        %vm5842 = vcmask 1041409
        %v5843 = vsel %vm5842, %v5841, %v5840
        %vm5844 = vcmask 1043459
        %v5845 = vsel %vm5844, %v5841, %v5843
        %vm5846 = vcmask 1045509
        %v5847 = vsel %vm5846, %v5841, %v5845
        %vm5848 = vcmask 1047559
        %v5849 = vsel %vm5848, %v5841, %v5847
        %v5850 = vsel %vm5837, %v5775, %v5775
        %v5851 = vsel %vm5839, %v5775, %v5850
        %v5852 = vrot.slane %v5776, 7
        %v5853 = vsel %vm5842, %v5852, %v5851
        %v5854 = vsel %vm5844, %v5852, %v5853
        %v5855 = vsel %vm5846, %v5852, %v5854
        %v5856 = vsel %vm5848, %v5852, %v5855
        %v5857 = vsel %vm5837, %v5777, %v5777
        %v5858 = vsel %vm5839, %v5777, %v5857
        %v5859 = vrot.slane %v5778, 7
        %v5860 = vsel %vm5842, %v5859, %v5858
        %v5861 = vsel %vm5844, %v5859, %v5860
        %v5862 = vsel %vm5846, %v5859, %v5861
        %v5863 = vsel %vm5848, %v5859, %v5862
        %v5864 = vsel %vm5837, %v5779, %v5779
        %v5865 = vsel %vm5839, %v5779, %v5864
        %v5866 = vrot.slane %v5780, 7
        %v5867 = vsel %vm5842, %v5866, %v5865
        %v5868 = vsel %vm5844, %v5866, %v5867
        %v5869 = vsel %vm5846, %v5866, %v5868
        %v5870 = vsel %vm5848, %v5866, %v5869
        %v5871 = vsel %vm5837, %v5781, %v5781
        %v5872 = vsel %vm5839, %v5781, %v5871
        %v5873 = vrot.slane %v5782, 7
        %v5874 = vsel %vm5842, %v5873, %v5872
        %v5875 = vsel %vm5844, %v5873, %v5874
        %v5876 = vsel %vm5846, %v5873, %v5875
        %v5877 = vsel %vm5848, %v5873, %v5876
        %v5878 = vsel %vm5837, %v5783, %v5783
        %v5879 = vsel %vm5839, %v5783, %v5878
        %v5880 = vrot.slane %v5784, 7
        %v5881 = vsel %vm5842, %v5880, %v5879
        %v5882 = vsel %vm5844, %v5880, %v5881
        %v5883 = vsel %vm5846, %v5880, %v5882
        %v5884 = vsel %vm5848, %v5880, %v5883
        %v5885 = vsel %vm5837, %v5785, %v5785
        %v5886 = vsel %vm5839, %v5785, %v5885
        %v5887 = vrot.slane %v5786, 7
        %v5888 = vsel %vm5842, %v5887, %v5886
        %v5889 = vsel %vm5844, %v5887, %v5888
        %v5890 = vsel %vm5846, %v5887, %v5889
        %v5891 = vsel %vm5848, %v5887, %v5890
        %v5892 = vsel %vm5837, %v5787, %v5787
        %v5893 = vsel %vm5839, %v5787, %v5892
        %v5894 = vrot.slane %v5788, 7
        %v5895 = vsel %vm5842, %v5894, %v5893
        %v5896 = vsel %vm5844, %v5894, %v5895
        %v5897 = vsel %vm5846, %v5894, %v5896
        %v5898 = vsel %vm5848, %v5894, %v5897
        %v5899 = vsel %vm5837, %v5789, %v5789
        %v5900 = vsel %vm5839, %v5789, %v5899
        %v5901 = vrot.slane %v5790, 7
        %v5902 = vsel %vm5842, %v5901, %v5900
        %v5903 = vsel %vm5844, %v5901, %v5902
        %v5904 = vsel %vm5846, %v5901, %v5903
        %v5905 = vsel %vm5848, %v5901, %v5904
        %v5906 = vsel %vm5837, %v5791, %v5791
        %v5907 = vsel %vm5839, %v5791, %v5906
        %v5908 = vrot.slane %v5792, 7
        %v5909 = vsel %vm5842, %v5908, %v5907
        %v5910 = vsel %vm5844, %v5908, %v5909
        %v5911 = vsel %vm5846, %v5908, %v5910
        %v5912 = vsel %vm5848, %v5908, %v5911
        %v5913 = vsel %vm5837, %v5793, %v5793
        %v5914 = vsel %vm5839, %v5793, %v5913
        %v5915 = vrot.slane %v5794, 7
        %v5916 = vsel %vm5842, %v5915, %v5914
        %v5917 = vsel %vm5844, %v5915, %v5916
        %v5918 = vsel %vm5846, %v5915, %v5917
        %v5919 = vsel %vm5848, %v5915, %v5918
        %v5920 = vsel %vm5837, %v5795, %v5795
        %v5921 = vsel %vm5839, %v5795, %v5920
        %v5922 = vrot.slane %v5796, 7
        %v5923 = vsel %vm5842, %v5922, %v5921
        %v5924 = vsel %vm5844, %v5922, %v5923
        %v5925 = vsel %vm5846, %v5922, %v5924
        %v5926 = vsel %vm5848, %v5922, %v5925
        %v5927 = vsel %vm5837, %v5797, %v5797
        %v5928 = vsel %vm5839, %v5797, %v5927
        %v5929 = vrot.slane %v5798, 7
        %v5930 = vsel %vm5842, %v5929, %v5928
        %v5931 = vsel %vm5844, %v5929, %v5930
        %v5932 = vsel %vm5846, %v5929, %v5931
        %v5933 = vsel %vm5848, %v5929, %v5932
        %v5934 = vsel %vm5837, %v5799, %v5799
        %v5935 = vsel %vm5839, %v5799, %v5934
        %v5936 = vrot.slane %v5800, 7
        %v5937 = vsel %vm5842, %v5936, %v5935
        %v5938 = vsel %vm5844, %v5936, %v5937
        %v5939 = vsel %vm5846, %v5936, %v5938
        %v5940 = vsel %vm5848, %v5936, %v5939
        %v5941 = vsel %vm5837, %v5801, %v5801
        %v5942 = vsel %vm5839, %v5801, %v5941
        %v5943 = vrot.slane %v5802, 7
        %v5944 = vsel %vm5842, %v5943, %v5942
        %v5945 = vsel %vm5844, %v5943, %v5944
        %v5946 = vsel %vm5846, %v5943, %v5945
        %v5947 = vsel %vm5848, %v5943, %v5946
        %v5948 = vsel %vm5837, %v5803, %v5803
        %v5949 = vsel %vm5839, %v5803, %v5948
        %v5950 = vrot.slane %v5804, 7
        %v5951 = vsel %vm5842, %v5950, %v5949
        %v5952 = vsel %vm5844, %v5950, %v5951
        %v5953 = vsel %vm5846, %v5950, %v5952
        %v5954 = vsel %vm5848, %v5950, %v5953
        %v5971 = vrot.slane %v5863, 4
        %vm5972 = vcmask 1047556
        %v5973 = vsel %vm5972, %v5971, %v5849
        %v5975 = vunpack.c.l.s4 1934713408
        %v5976 = vunpack.c.0.s8 %v5975
        %v5977 = vperm.slane %v5973, %v5976
        %v5978 = vrot.slane %v5977, 4
        %v5979 = vsel %vm5972, 0.0, %v5978
        %v5980 = vrot.slane %v5891, 4
        %v5981 = vsel %vm5972, %v5980, %v5877
        %v5983 = vunpack.c.l.s4 1934713408
        %v5984 = vunpack.c.0.s8 %v5983
        %v5985 = vperm.slane %v5981, %v5984
        %v5986 = vrot.slane %v5985, 4
        %v5987 = vsel %vm5972, 0.0, %v5986
        %v5988 = vrot.slane %v5919, 4
        %v5989 = vsel %vm5972, %v5988, %v5905
        %v5991 = vunpack.c.l.s4 1934713408
        %v5992 = vunpack.c.0.s8 %v5991
        %v5993 = vperm.slane %v5989, %v5992
        %v5994 = vrot.slane %v5993, 4
        %v5995 = vsel %vm5972, 0.0, %v5994
        %v5996 = vrot.slane %v5947, 4
        %v5997 = vsel %vm5972, %v5996, %v5933
        %v5999 = vunpack.c.l.s4 1934713408
        %v6000 = vunpack.c.0.s8 %v5999
        %v6001 = vperm.slane %v5997, %v6000
        %v6002 = vrot.slane %v6001, 4
        %v6003 = vsel %vm5972, 0.0, %v6002
        %v6004 = vrot.slane %v5870, 4
        %v6005 = vsel %vm5972, %v6004, %v5856
        %v6007 = vunpack.c.l.s4 1934713408
        %v6008 = vunpack.c.0.s8 %v6007
        %v6009 = vperm.slane %v6005, %v6008
        %v6010 = vrot.slane %v6009, 4
        %v6011 = vsel %vm5972, 0.0, %v6010
        %v6012 = vrot.slane %v5898, 4
        %v6013 = vsel %vm5972, %v6012, %v5884
        %v6015 = vunpack.c.l.s4 1934713408
        %v6016 = vunpack.c.0.s8 %v6015
        %v6017 = vperm.slane %v6013, %v6016
        %v6018 = vrot.slane %v6017, 4
        %v6019 = vsel %vm5972, 0.0, %v6018
        %v6020 = vrot.slane %v5926, 4
        %v6021 = vsel %vm5972, %v6020, %v5912
        %v6023 = vunpack.c.l.s4 1934713408
        %v6024 = vunpack.c.0.s8 %v6023
        %v6025 = vperm.slane %v6021, %v6024
        %v6026 = vrot.slane %v6025, 4
        %v6027 = vsel %vm5972, 0.0, %v6026
        %v6028 = vrot.slane %v5954, 4
        %v6029 = vsel %vm5972, %v6028, %v5940
        %v6031 = vunpack.c.l.s4 1934713408
        %v6032 = vunpack.c.0.s8 %v6031
        %v6033 = vperm.slane %v6029, %v6032
        %v6034 = vrot.slane %v6033, 4
        %v6035 = vsel %vm5972, 0.0, %v6034
        %6040 = vst [vmem:[#allocation1] ss:$4 sm:$0xff] %v5977
        %s6041 = scalar_lea.vmem [#allocation1], 1
        %6042 = vst [vmem:[%s6041] ss:$4 sm:$0xff] %v5985
        %s6043 = scalar_lea.vmem [#allocation1], 2
        %6044 = vst [vmem:[%s6043] ss:$4 sm:$0xff] %v5993
        %s6045 = scalar_lea.vmem [#allocation1], 3
        %6046 = vst [vmem:[%s6045] ss:$4 sm:$0xff] %v6001
        %v6047 = vld.sshfl [vmem:[#allocation1] sm:$0xff pattern:$0x73625140]
        %6053 = vst [vmem:[#allocation1] ss:$4 sm:$0xff] %v5979
        %s6054 = scalar_lea.vmem [#allocation1], 1
        %6055 = vst [vmem:[%s6054] ss:$4 sm:$0xff] %v5987
        %s6056 = scalar_lea.vmem [#allocation1], 2
        %6057 = vst [vmem:[%s6056] ss:$4 sm:$0xff] %v5995
        %s6058 = scalar_lea.vmem [#allocation1], 3
        %6059 = vst [vmem:[%s6058] ss:$4 sm:$0xff] %v6003
        %v6060 = vld.sshfl [vmem:[#allocation1] sm:$0xff pattern:$0x73625140]
        %6066 = vst [vmem:[#allocation1] ss:$4 sm:$0xff] %v6009
        %s6067 = scalar_lea.vmem [#allocation1], 1
        %6068 = vst [vmem:[%s6067] ss:$4 sm:$0xff] %v6017
        %s6069 = scalar_lea.vmem [#allocation1], 2
        %6070 = vst [vmem:[%s6069] ss:$4 sm:$0xff] %v6025
        %s6071 = scalar_lea.vmem [#allocation1], 3
        %6072 = vst [vmem:[%s6071] ss:$4 sm:$0xff] %v6033
        %v6073 = vld.sshfl [vmem:[#allocation1] sm:$0xff pattern:$0x73625140]
        %6079 = vst [vmem:[#allocation1] ss:$4 sm:$0xff] %v6011
        %s6080 = scalar_lea.vmem [#allocation1], 1
        %6081 = vst [vmem:[%s6080] ss:$4 sm:$0xff] %v6019
        %s6082 = scalar_lea.vmem [#allocation1], 2
        %6083 = vst [vmem:[%s6082] ss:$4 sm:$0xff] %v6027
        %s6084 = scalar_lea.vmem [#allocation1], 3
        %6085 = vst [vmem:[%s6084] ss:$4 sm:$0xff] %v6035
        %v6086 = vld.sshfl [vmem:[#allocation1] sm:$0xff pattern:$0x73625140]
        %v6088 = vpack.c.bf16 %v6047, %v6047
        %v6089 = vpack.c.bf16 %v6060, %v6060
        %v6090 = vpack.c.bf16 %v6073, %v6073
        %v6091 = vpack.c.bf16 %v6086, %v6086
        %v6092 = vld [vmem:[%s5] sm:$0xf]
        %v6093 = vld [vmem:[%s5 + $0x4] sm:$0xf]
        %v6094 = vld [vmem:[%s5 + $0x8] sm:$0xf]
        %v6095 = vld [vmem:[%s5 + $0xc] sm:$0xf]
        %v6096 = vld [vmem:[%s5 + $0x10] sm:$0xf]
        %v6097 = vld [vmem:[%s5 + $0x14] sm:$0xf]
        %v6098 = vld [vmem:[%s5 + $0x18] sm:$0xf]
        %v6099 = vld [vmem:[%s5 + $0x1c] sm:$0xf]
        %v6100 = vld [vmem:[%s5 + $0x20] sm:$0xf]
        %v6101 = vld [vmem:[%s5 + $0x24] sm:$0xf]
        %v6102 = vld [vmem:[%s5 + $0x28] sm:$0xf]
        %v6103 = vld [vmem:[%s5 + $0x2c] sm:$0xf]
        %v6104 = vld [vmem:[%s5 + $0x30] sm:$0xf]
        %v6105 = vld [vmem:[%s5 + $0x34] sm:$0xf]
        %v6106 = vld [vmem:[%s5 + $0x38] sm:$0xf]
        %v6107 = vld [vmem:[%s5 + $0x3c] sm:$0xf]
        %v6108 = vld [vmem:[%s5 + $0x40] sm:$0xf]
        %v6109 = vld [vmem:[%s5 + $0x44] sm:$0xf]
        %v6110 = vld [vmem:[%s5 + $0x48] sm:$0xf]
        %v6111 = vld [vmem:[%s5 + $0x4c] sm:$0xf]
        %v6112 = vld [vmem:[%s5 + $0x50] sm:$0xf]
        %v6113 = vld [vmem:[%s5 + $0x54] sm:$0xf]
        %v6114 = vld [vmem:[%s5 + $0x58] sm:$0xf]
        %v6115 = vld [vmem:[%s5 + $0x5c] sm:$0xf]
        %v6116 = vld [vmem:[%s5 + $0x60] sm:$0xf]
        %v6117 = vld [vmem:[%s5 + $0x64] sm:$0xf]
        %v6118 = vld [vmem:[%s5 + $0x68] sm:$0xf]
        %v6119 = vld [vmem:[%s5 + $0x6c] sm:$0xf]
        %v6120 = vld [vmem:[%s5 + $0x70] sm:$0xf]
        %v6121 = vld [vmem:[%s5 + $0x74] sm:$0xf]
        %v6122 = vld [vmem:[%s5 + $0x78] sm:$0xf]
        %v6123 = vld [vmem:[%s5 + $0x7c] sm:$0xf]
        %v6124 = vld [vmem:[%s5 + $0x80] sm:$0xf]
        %v6125 = vld [vmem:[%s5 + $0x84] sm:$0xf]
        %v6126 = vld [vmem:[%s5 + $0x88] sm:$0xf]
        %v6127 = vld [vmem:[%s5 + $0x8c] sm:$0xf]
        %v6128 = vld [vmem:[%s5 + $0x90] sm:$0xf]
        %v6129 = vld [vmem:[%s5 + $0x94] sm:$0xf]
        %v6130 = vld [vmem:[%s5 + $0x98] sm:$0xf]
        %v6131 = vld [vmem:[%s5 + $0x9c] sm:$0xf]
        %v6132 = vld [vmem:[%s5 + $0xa0] sm:$0xf]
        %v6133 = vld [vmem:[%s5 + $0xa4] sm:$0xf]
        %v6134 = vld [vmem:[%s5 + $0xa8] sm:$0xf]
        %v6135 = vld [vmem:[%s5 + $0xac] sm:$0xf]
        %v6136 = vld [vmem:[%s5 + $0xb0] sm:$0xf]
        %v6137 = vld [vmem:[%s5 + $0xb4] sm:$0xf]
        %v6138 = vld [vmem:[%s5 + $0xb8] sm:$0xf]
        %v6139 = vld [vmem:[%s5 + $0xbc] sm:$0xf]
        %v6140 = vld [vmem:[%s5 + $0xc0] sm:$0xf]
        %v6141 = vld [vmem:[%s5 + $0xc4] sm:$0xf]
        %v6142 = vld [vmem:[%s5 + $0xc8] sm:$0xf]
        %v6143 = vld [vmem:[%s5 + $0xcc] sm:$0xf]
        %v6144 = vld [vmem:[%s5 + $0xd0] sm:$0xf]
        %v6145 = vld [vmem:[%s5 + $0xd4] sm:$0xf]
        %v6146 = vld [vmem:[%s5 + $0xd8] sm:$0xf]
        %v6147 = vld [vmem:[%s5 + $0xdc] sm:$0xf]
        %v6148 = vld [vmem:[%s5 + $0xe0] sm:$0xf]
        %v6149 = vld [vmem:[%s5 + $0xe4] sm:$0xf]
        %v6150 = vld [vmem:[%s5 + $0xe8] sm:$0xf]
        %v6151 = vld [vmem:[%s5 + $0xec] sm:$0xf]
        %v6152 = vld [vmem:[%s5 + $0xf0] sm:$0xf]
        %v6153 = vld [vmem:[%s5 + $0xf4] sm:$0xf]
        %v6154 = vld [vmem:[%s5 + $0xf8] sm:$0xf]
        %v6155 = vld [vmem:[%s5 + $0xfc] sm:$0xf]
        %v6156 = vld [vmem:[%s6] sm:$0x1]
        %v6158 = vperm.slane %v6156, 0
        %v6224 = vunpack.c.l.b16 %v6092
        %v6225 = vunpack.c.l.b16 %v6093
        %v6226 = vunpack.c.l.b16 %v6094
        %v6227 = vunpack.c.l.b16 %v6095
        %v6228 = vunpack.c.l.b16 %v6096
        %v6229 = vunpack.c.l.b16 %v6097
        %v6230 = vunpack.c.l.b16 %v6098
        %v6231 = vunpack.c.l.b16 %v6099
        %v6232 = vunpack.c.l.b16 %v6100
        %v6233 = vunpack.c.l.b16 %v6101
        %v6234 = vunpack.c.l.b16 %v6102
        %v6235 = vunpack.c.l.b16 %v6103
        %v6236 = vunpack.c.l.b16 %v6104
        %v6237 = vunpack.c.l.b16 %v6105
        %v6238 = vunpack.c.l.b16 %v6106
        %v6239 = vunpack.c.l.b16 %v6107
        %v6240 = vunpack.c.l.b16 %v6108
        %v6241 = vunpack.c.l.b16 %v6109
        %v6242 = vunpack.c.l.b16 %v6110
        %v6243 = vunpack.c.l.b16 %v6111
        %v6244 = vunpack.c.l.b16 %v6112
        %v6245 = vunpack.c.l.b16 %v6113
        %v6246 = vunpack.c.l.b16 %v6114
        %v6247 = vunpack.c.l.b16 %v6115
        %v6248 = vunpack.c.l.b16 %v6116
        %v6249 = vunpack.c.l.b16 %v6117
        %v6250 = vunpack.c.l.b16 %v6118
        %v6251 = vunpack.c.l.b16 %v6119
        %v6252 = vunpack.c.l.b16 %v6120
        %v6253 = vunpack.c.l.b16 %v6121
        %v6254 = vunpack.c.l.b16 %v6122
        %v6255 = vunpack.c.l.b16 %v6123
        %v6256 = vunpack.c.l.b16 %v6124
        %v6257 = vunpack.c.l.b16 %v6125
        %v6258 = vunpack.c.l.b16 %v6126
        %v6259 = vunpack.c.l.b16 %v6127
        %v6260 = vunpack.c.l.b16 %v6128
        %v6261 = vunpack.c.l.b16 %v6129
        %v6262 = vunpack.c.l.b16 %v6130
        %v6263 = vunpack.c.l.b16 %v6131
        %v6264 = vunpack.c.l.b16 %v6132
        %v6265 = vunpack.c.l.b16 %v6133
        %v6266 = vunpack.c.l.b16 %v6134
        %v6267 = vunpack.c.l.b16 %v6135
        %v6268 = vunpack.c.l.b16 %v6136
        %v6269 = vunpack.c.l.b16 %v6137
        %v6270 = vunpack.c.l.b16 %v6138
        %v6271 = vunpack.c.l.b16 %v6139
        %v6272 = vunpack.c.l.b16 %v6140
        %v6273 = vunpack.c.l.b16 %v6141
        %v6274 = vunpack.c.l.b16 %v6142
        %v6275 = vunpack.c.l.b16 %v6143
        %v6276 = vunpack.c.l.b16 %v6144
        %v6277 = vunpack.c.l.b16 %v6145
        %v6278 = vunpack.c.l.b16 %v6146
        %v6279 = vunpack.c.l.b16 %v6147
        %v6280 = vunpack.c.l.b16 %v6148
        %v6281 = vunpack.c.l.b16 %v6149
        %v6282 = vunpack.c.l.b16 %v6150
        %v6283 = vunpack.c.l.b16 %v6151
        %v6284 = vunpack.c.l.b16 %v6152
        %v6285 = vunpack.c.l.b16 %v6153
        %v6286 = vunpack.c.l.b16 %v6154
        %v6287 = vunpack.c.l.b16 %v6155
        %v6288 = vpack.c.b16 %v6225, %v6224
        %v6289 = vpack.c.b16 %v6227, %v6226
        %v6290 = vpack.c.b16 %v6229, %v6228
        %v6291 = vpack.c.b16 %v6231, %v6230
        %v6292 = vpack.c.b16 %v6233, %v6232
        %v6293 = vpack.c.b16 %v6235, %v6234
        %v6294 = vpack.c.b16 %v6237, %v6236
        %v6295 = vpack.c.b16 %v6239, %v6238
        %v6296 = vpack.c.b16 %v6241, %v6240
        %v6297 = vpack.c.b16 %v6243, %v6242
        %v6298 = vpack.c.b16 %v6245, %v6244
        %v6299 = vpack.c.b16 %v6247, %v6246
        %v6300 = vpack.c.b16 %v6249, %v6248
        %v6301 = vpack.c.b16 %v6251, %v6250
        %v6302 = vpack.c.b16 %v6253, %v6252
        %v6303 = vpack.c.b16 %v6255, %v6254
        %v6304 = vpack.c.b16 %v6257, %v6256
        %v6305 = vpack.c.b16 %v6259, %v6258
        %v6306 = vpack.c.b16 %v6261, %v6260
        %v6307 = vpack.c.b16 %v6263, %v6262
        %v6308 = vpack.c.b16 %v6265, %v6264
        %v6309 = vpack.c.b16 %v6267, %v6266
        %v6310 = vpack.c.b16 %v6269, %v6268
        %v6311 = vpack.c.b16 %v6271, %v6270
        %v6312 = vpack.c.b16 %v6273, %v6272
        %v6313 = vpack.c.b16 %v6275, %v6274
        %v6314 = vpack.c.b16 %v6277, %v6276
        %v6315 = vpack.c.b16 %v6279, %v6278
        %v6316 = vpack.c.b16 %v6281, %v6280
        %v6317 = vpack.c.b16 %v6283, %v6282
        %v6318 = vpack.c.b16 %v6285, %v6284
        %v6319 = vpack.c.b16 %v6287, %v6286
        %6352 = vmatpush.bf16.msra.mxu0 %v6295
        %6353 = vmatpush.bf16.msra.mxu0 %v6294
        %6354 = vmatpush.bf16.msra.mxu0 %v6293
        %6355 = vmatpush.bf16.msra.mxu0 %v6292
        %6356 = vmatpush.bf16.msra.mxu0 %v6291
        %6357 = vmatpush.bf16.msra.mxu0 %v6290
        %6358 = vmatpush.bf16.msra.mxu0 %v6289
        %6359 = vmatpush.bf16.msra.mxu0 %v6288
        %6360 = vmatmul.bf16.gmra.mxu0 %v6088
        %v6361 = vpop.f32.mrf.mxu0
        %v6362 = vadd.f32 %v6158, %v6361
        %v6363 = vpop.f32.mrf.mxu0
        %6364 = vdwg.mxu0
        %6365 = vmatpush.bf16.msra.mxu0 %v6303
        %6366 = vmatpush.bf16.msra.mxu0 %v6302
        %6367 = vmatpush.bf16.msra.mxu0 %v6301
        %6368 = vmatpush.bf16.msra.mxu0 %v6300
        %6369 = vmatpush.bf16.msra.mxu0 %v6299
        %6370 = vmatpush.bf16.msra.mxu0 %v6298
        %6371 = vmatpush.bf16.msra.mxu0 %v6297
        %6372 = vmatpush.bf16.msra.mxu0 %v6296
        %6373 = vmatmul.bf16.gmra.mxu0 %v6089
        %v6374 = vpop.f32.mrf.mxu0
        %v6375 = vadd.f32 %v6362, %v6374
        %v6376 = vpop.f32.mrf.mxu0
        %6377 = vdwg.mxu0
        %6378 = vmatpush.bf16.msra.mxu0 %v6311
        %6379 = vmatpush.bf16.msra.mxu0 %v6310
        %6380 = vmatpush.bf16.msra.mxu0 %v6309
        %6381 = vmatpush.bf16.msra.mxu0 %v6308
        %6382 = vmatpush.bf16.msra.mxu0 %v6307
        %6383 = vmatpush.bf16.msra.mxu0 %v6306
        %6384 = vmatpush.bf16.msra.mxu0 %v6305
        %6385 = vmatpush.bf16.msra.mxu0 %v6304
        %6386 = vmatmul.bf16.gmra.mxu0 %v6090
        %v6387 = vpop.f32.mrf.mxu0
        %v6388 = vadd.f32 %v6375, %v6387
        %v6389 = vpop.f32.mrf.mxu0
        %6390 = vdwg.mxu0
        %6391 = vmatpush.bf16.msra.mxu0 %v6319
        %6392 = vmatpush.bf16.msra.mxu0 %v6318
        %6393 = vmatpush.bf16.msra.mxu0 %v6317
        %6394 = vmatpush.bf16.msra.mxu0 %v6316
        %6395 = vmatpush.bf16.msra.mxu0 %v6315
        %6396 = vmatpush.bf16.msra.mxu0 %v6314
        %6397 = vmatpush.bf16.msra.mxu0 %v6313
        %6398 = vmatpush.bf16.msra.mxu0 %v6312
        %6399 = vmatmul.bf16.gmra.mxu0 %v6091
        %v6400 = vpop.f32.mrf.mxu0
        %v6401 = vadd.f32 %v6388, %v6400
        %v6402 = vpop.f32.mrf.mxu0
        %6403 = vdwg.mxu0
        %v6404 = vmax.f32 %v6401, 0.0
        %v6405 = vpack.c.bf16 %v6404, %v6404
        %v6406 = vld [vmem:[%s7] sm:$0xf]
        %v6407 = vld [vmem:[%s7 + $0x4] sm:$0xf]
        %v6408 = vld [vmem:[%s7 + $0x8] sm:$0xf]
        %v6409 = vld [vmem:[%s7 + $0xc] sm:$0xf]
        %v6410 = vld [vmem:[%s7 + $0x10] sm:$0xf]
        %v6411 = vld [vmem:[%s7 + $0x14] sm:$0xf]
        %v6412 = vld [vmem:[%s7 + $0x18] sm:$0xf]
        %v6413 = vld [vmem:[%s7 + $0x1c] sm:$0xf]
        %v6414 = vld [vmem:[%s7 + $0x20] sm:$0xf]
        %v6415 = vld [vmem:[%s7 + $0x24] sm:$0xf]
        %v6416 = vld [vmem:[%s7 + $0x28] sm:$0xf]
        %v6417 = vld [vmem:[%s7 + $0x2c] sm:$0xf]
        %v6418 = vld [vmem:[%s7 + $0x30] sm:$0xf]
        %v6419 = vld [vmem:[%s7 + $0x34] sm:$0xf]
        %v6420 = vld [vmem:[%s7 + $0x38] sm:$0xf]
        %v6421 = vld [vmem:[%s7 + $0x3c] sm:$0xf]
        %v6422 = vld [vmem:[%s8] sm:$0x1]
        %v6424 = vperm.slane %v6422, 0
        %v6442 = vunpack.c.l.b16 %v6406
        %v6443 = vunpack.c.l.b16 %v6407
        %v6444 = vunpack.c.l.b16 %v6408
        %v6445 = vunpack.c.l.b16 %v6409
        %v6446 = vunpack.c.l.b16 %v6410
        %v6447 = vunpack.c.l.b16 %v6411
        %v6448 = vunpack.c.l.b16 %v6412
        %v6449 = vunpack.c.l.b16 %v6413
        %v6450 = vunpack.c.l.b16 %v6414
        %v6451 = vunpack.c.l.b16 %v6415
        %v6452 = vunpack.c.l.b16 %v6416
        %v6453 = vunpack.c.l.b16 %v6417
        %v6454 = vunpack.c.l.b16 %v6418
        %v6455 = vunpack.c.l.b16 %v6419
        %v6456 = vunpack.c.l.b16 %v6420
        %v6457 = vunpack.c.l.b16 %v6421
        %v6458 = vpack.c.b16 %v6443, %v6442
        %v6459 = vpack.c.b16 %v6445, %v6444
        %v6460 = vpack.c.b16 %v6447, %v6446
        %v6461 = vpack.c.b16 %v6449, %v6448
        %v6462 = vpack.c.b16 %v6451, %v6450
        %v6463 = vpack.c.b16 %v6453, %v6452
        %v6464 = vpack.c.b16 %v6455, %v6454
        %v6465 = vpack.c.b16 %v6457, %v6456
        %6474 = vmatpush.bf16.msra.mxu0 %v6465
        %6475 = vmatpush.bf16.msra.mxu0 %v6464
        %6476 = vmatpush.bf16.msra.mxu0 %v6463
        %6477 = vmatpush.bf16.msra.mxu0 %v6462
        %6478 = vmatpush.bf16.msra.mxu0 %v6461
        %6479 = vmatpush.bf16.msra.mxu0 %v6460
        %6480 = vmatpush.bf16.msra.mxu0 %v6459
        %6481 = vmatpush.bf16.msra.mxu0 %v6458
        %6482 = vmatmul.bf16.gmra.mxu0 %v6405
        %v6483 = vpop.f32.mrf.mxu0
        %v6484 = vadd.f32 %v6424, %v6483
        %v6485 = vpop.f32.mrf.mxu0
        %6486 = vdwg.mxu0
        %v6487 = vmax.f32 %v6484, 0.0
        %v6488 = vpack.c.bf16 %v6487, %v6487
        %v6489 = vld [vmem:[%s9] sm:$0xf]
        %v6490 = vld [vmem:[%s9 + $0x4] sm:$0xf]
        %v6491 = vld [vmem:[%s9 + $0x8] sm:$0xf]
        %v6492 = vld [vmem:[%s9 + $0xc] sm:$0xf]
        %v6493 = vld [vmem:[%s9 + $0x10] sm:$0xf]
        %v6494 = vld [vmem:[%s9 + $0x14] sm:$0xf]
        %v6495 = vld [vmem:[%s9 + $0x18] sm:$0xf]
        %v6496 = vld [vmem:[%s9 + $0x1c] sm:$0xf]
        %v6497 = vld [vmem:[%s9 + $0x20] sm:$0xf]
        %v6498 = vld [vmem:[%s9 + $0x24] sm:$0xf]
        %v6499 = vld [vmem:[%s9 + $0x28] sm:$0xf]
        %v6500 = vld [vmem:[%s9 + $0x2c] sm:$0xf]
        %v6501 = vld [vmem:[%s9 + $0x30] sm:$0xf]
        %v6502 = vld [vmem:[%s9 + $0x34] sm:$0xf]
        %v6503 = vld [vmem:[%s9 + $0x38] sm:$0xf]
        %v6504 = vld [vmem:[%s9 + $0x3c] sm:$0xf]
        %v6505 = vld [vmem:[%s10] sm:$0x1]
        %v6507 = vperm.slane %v6505, 0
        %v6525 = vunpack.c.l.b16 %v6489
        %v6526 = vunpack.c.l.b16 %v6490
        %v6527 = vunpack.c.l.b16 %v6491
        %v6528 = vunpack.c.l.b16 %v6492
        %v6529 = vunpack.c.l.b16 %v6493
        %v6530 = vunpack.c.l.b16 %v6494
        %v6531 = vunpack.c.l.b16 %v6495
        %v6532 = vunpack.c.l.b16 %v6496
        %v6533 = vunpack.c.l.b16 %v6497
        %v6534 = vunpack.c.l.b16 %v6498
        %v6535 = vunpack.c.l.b16 %v6499
        %v6536 = vunpack.c.l.b16 %v6500
        %v6537 = vunpack.c.l.b16 %v6501
        %v6538 = vunpack.c.l.b16 %v6502
        %v6539 = vunpack.c.l.b16 %v6503
        %v6540 = vunpack.c.l.b16 %v6504
        %v6541 = vpack.c.b16 %v6526, %v6525
        %v6542 = vpack.c.b16 %v6528, %v6527
        %v6543 = vpack.c.b16 %v6530, %v6529
        %v6544 = vpack.c.b16 %v6532, %v6531
        %v6545 = vpack.c.b16 %v6534, %v6533
        %v6546 = vpack.c.b16 %v6536, %v6535
        %v6547 = vpack.c.b16 %v6538, %v6537
        %v6548 = vpack.c.b16 %v6540, %v6539
        %6557 = vmatpush.bf16.msra.mxu0 %v6548
        %6558 = vmatpush.bf16.msra.mxu0 %v6547
        %6559 = vmatpush.bf16.msra.mxu0 %v6546
        %6560 = vmatpush.bf16.msra.mxu0 %v6545
        %6561 = vmatpush.bf16.msra.mxu0 %v6544
        %6562 = vmatpush.bf16.msra.mxu0 %v6543
        %6563 = vmatpush.bf16.msra.mxu0 %v6542
        %6564 = vmatpush.bf16.msra.mxu0 %v6541
        %6565 = vmatmul.bf16.gmra.mxu0 %v6488
        %v6566 = vpop.f32.mrf.mxu0
        %v6567 = vadd.f32 %v6507, %v6566
        %v6568 = vpop.f32.mrf.mxu0
        %6569 = vdwg.mxu0
        %6570 = vst [vmem:[%s514] sm:$0xff] %v6567
        %p6571 = scmp.lt.s32.totalorder %s22, 1
        %s6572 = scalar_select %p6571, %s22, 1
        %s6573 = smul.addr %s6572, 8
        %s6574 = scalar_lea.vmem %s11, %s6573
        // Predicated region
        $region103: #{cnn_forward.1} parent=97 // pred_check
          %p6575 = pneg %p276
        $region104: #{cnn_forward.1} parent=97 // pred_check_branch
          %6577 = sbr.rel (%p6575) target = $region106
        $region105: #{cnn_forward.1} parent=97 // pred_region
          _
        $region106: #{cnn_forward.1} parent=97 // pred_fallthru
          _
      $region98: #{cnn_forward.1} parent=5 // pred_fallthru
        _
      %p6578 = scmp.le.s32.totalorder 2, %s17
      // Predicated region
      $region107: #{cnn_forward.1} parent=5 // pred_check
        %p6579 = pneg %p6578
      $region108: #{cnn_forward.1} parent=5 // pred_check_branch
        %6581 = sbr.rel (%p6579) target = $region110
      $region109: #{cnn_forward.1} parent=5 // pred_region
        %s6582 = ssub.s32 %s17, 2
        // Predicated region
        $region111: #{cnn_forward.1} parent=109 // pred_check
          %p6583 = pneg %p282
        $region112: #{cnn_forward.1} parent=109 // pred_check_branch
          %6585 = sbr.rel (%p6583) target = $region114
        $region113: #{cnn_forward.1} parent=109 // pred_region
          %p6586 = scmp.lt.s32.totalorder %s23, 1
          %s6587 = scalar_select %p6586, %s23, 1
          %s6588 = smul.addr %s6587, 8
          %s6589 = scalar_lea.vmem %s11, %s6588
        $region114: #{cnn_forward.1} parent=109 // pred_fallthru
          _
      $region110: #{cnn_forward.1} parent=5 // pred_fallthru
        _
    $region6: #{cnn_forward.1} parent=1 // loop_footer
      %s21 = sadd.s32 1, %s17
    $region7: #{cnn_forward.1} parent=1 // loop_footer_branch
      %16 = sbr.rel target = $region3
    $region8: #{cnn_forward.1} parent=1 // loop_exit
      _

</llo_original>
